<compile_context>
chip_gen: v7x
topology: tpu7x:2x2x1
jax: 0.10.0
libtpu: 0.0.40
codegen_flags: <defaults>
</compile_context>

<pallas_src>
import functools

import jax
import jax.numpy as jnp
from jax.experimental import pallas as pl
from jax.experimental.pallas import tpu as pltpu


def _round_up(x, m):
    return (x + m - 1) // m * m


_MiB = 1024 * 1024


def _vmem_limit(bytes_needed):
    # Raise the scoped-VMEM limit above the 16/32 MiB defaults, but never above
    # 48 MiB so the kernel stays inside v7x's 64 MiB physical VMEM per core.
    return int(min(max(int(bytes_needed * 1.5), 32 * _MiB), 48 * _MiB))


def _const_spec(shape, grid_ndim, single_buffer):
    """BlockSpec for a block revisited every step (constant index map)."""
    if grid_ndim == 2:
        imap = lambda c, k: (0,) * len(shape)
    else:
        imap = lambda k: (0,) * len(shape)
    if single_buffer:
        return pl.BlockSpec(shape, imap, pipeline_mode=pl.Buffered(1))
    return pl.BlockSpec(shape, imap)


# --------------------------------------------------------------------------
# Pass 1: fused vertex linear  +  scatter-add to edges (H @ Y1)  +  W2_b
# --------------------------------------------------------------------------
def edge_agg_kernel(x_ref, h_ref, wf_ref, bf_ref, w2b_ref,
                    y2_ref, xew_ref, xe_acc):
    k = pl.program_id(1)

    @pl.when(k == 0)
    def _():
        xe_acc[...] = jnp.zeros_like(xe_acc)

    # Fused vertex-level linear: X_tile @ [W1 | W2_a] + [b1 | b2]
    y = jnp.dot(x_ref[...], wf_ref[...],
                preferred_element_type=jnp.float32) + bf_ref[...]
    fp = y2_ref.shape[-1]              # Fout_p (128-aligned => free lane split)
    y1 = y[:, :fp]                     # feeds the edge scatter-add
    y2_ref[...] = y[:, fp:].astype(y2_ref.dtype)   # X @ W2_a + b2 (bf16 out)

    # scatter_add(Y1[vertex], edges) == H @ Y1 : natural-orientation contraction
    # of the int8 incidence column tile, upcast to bf16 in-register, f32 acc.
    xe_acc[...] += jnp.dot(h_ref[...].astype(jnp.bfloat16),
                           y1.astype(jnp.bfloat16),
                           preferred_element_type=jnp.float32)

    @pl.when(k == pl.num_programs(1) - 1)
    def _():
        # bf16 x bf16 epilogue matmul (v5e has no fast f32 MXU path).
        xew_ref[...] = jnp.dot(xe_acc[...].astype(jnp.bfloat16), w2b_ref[...],
                               preferred_element_type=jnp.float32
                               ).astype(xew_ref.dtype)


# --------------------------------------------------------------------------
# Pass 2: gather back to vertices (H^T @ XeW) + degree scale + residual + W3
# --------------------------------------------------------------------------
def vertex_out_kernel(y2_ref, ht_ref, x0_ref, xew_ref, w3_ref, b3_ref,
                      out_ref, *, alpha):
    ht = ht_ref[...]
    # gather: H^T tile @ XeW (bf16 MXU, f32 acc)
    hx = jnp.dot(ht.astype(jnp.bfloat16), xew_ref[...],
                 preferred_element_type=jnp.float32)
    # Vertex degree as a row-sum of the same incidence tile (XLU slot, hidden
    # under the MXU-bound step) -> no separate deg_v input stream.
    deg = jnp.sum(ht.astype(jnp.float32), axis=-1, keepdims=True)
    xv = deg * y2_ref[...].astype(jnp.float32) + hx
    xm = (1.0 - alpha) * xv + alpha * x0_ref[...]
    out = jnp.dot(xm.astype(jnp.bfloat16), w3_ref[...],
                  preferred_element_type=jnp.float32) + b3_ref[...]
    out_ref[...] = out.astype(out_ref.dtype)


# --------------------------------------------------------------------------
# Wrapper: padding / weight split + fuse / incidence construction (glue)
# --------------------------------------------------------------------------
def _forward(X, vertex, edges, X0, params, num_edges, alpha, tile_n,
             single_buffer):
    N, Fin = X.shape
    Fout = params["w1"].shape[-1]
    E = int(num_edges)

    n_split = 2                              # 2-TC partial-sum split of pass 1
    Np = _round_up(max(N, 8), n_split * tile_n)
    Ep = _round_up(max(E, 8), 128)
    Fp = _round_up(Fout, 128)
    Finp = _round_up(Fin, 128)
    nK = Np // tile_n
    nK2 = nK // n_split

    # Zero-padded operands (padded rows/cols of the incidence are zero).
    Xp = jnp.zeros((Np, Finp), jnp.float32).at[:N, :Fin].set(X)
    X0p = jnp.zeros((Np, Fp), jnp.float32).at[:N, :Fout].set(X0)
    # Incidence counts built directly as int8 (no f32 transient); exact for
    # multiplicities <= 127.  Upcast to bf16 inside the kernels.
    H = jnp.zeros((Ep, Np), jnp.int8).at[edges, vertex].add(1)    # H   [E, N]
    Ht = jnp.zeros((Np, Ep), jnp.int8).at[vertex, edges].add(1)   # H^T [N, E]

    # Split W2 column-block-wise and lane-fuse W1 with W2_a (no activation cat).
    w1, b1 = params["w1"], params["b1"]
    w2, b2 = params["w2"], params["b2"]
    w3, b3 = params["w3"], params["b3"]
    w2a, w2b = w2[:Fin], w2[Fin:]

    Wf = jnp.zeros((Finp, 2 * Fp), jnp.float32)
    Wf = Wf.at[:Fin, :Fout].set(w1).at[:Fin, Fp:Fp + Fout].set(w2a)
    bf = jnp.zeros((1, 2 * Fp), jnp.float32)
    bf = bf.at[:, :Fout].set(b1).at[:, Fp:Fp + Fout].set(b2)
    W2b = jnp.zeros((Fp, Fp), jnp.bfloat16).at[:Fout, :Fout].set(
        w2b.astype(jnp.bfloat16))
    W3 = jnp.zeros((Fp, Fp), jnp.bfloat16).at[:Fout, :Fout].set(
        w3.astype(jnp.bfloat16))
    b3p = jnp.zeros((1, Fp), jnp.float32).at[:, :Fout].set(b3)

    # ---- pass 1 ----
    p1_vmem = (Ep * Fp * 4 + 2 * Ep * Fp * 2 + 2 * Ep * tile_n
               + 2 * tile_n * Finp * 4 + 2 * tile_n * Fp * 2
               + Finp * 2 * Fp * 4 + 2 * Fp * 4 + Fp * Fp * 2)
    y2, xew_p = pl.pallas_call(
        edge_agg_kernel,
        out_shape=(jax.ShapeDtypeStruct((Np, Fp), jnp.bfloat16),
                   jax.ShapeDtypeStruct((n_split * Ep, Fp), jnp.bfloat16)),
        grid_spec=pltpu.PrefetchScalarGridSpec(
            num_scalar_prefetch=0,
            grid=(n_split, nK2),
            in_specs=[
                pl.BlockSpec((tile_n, Finp), lambda c, k: (c * nK2 + k, 0)),
                pl.BlockSpec((Ep, tile_n), lambda c, k: (0, c * nK2 + k)),
                _const_spec((Finp, 2 * Fp), 2, single_buffer),   # [W1|W2_a]
                _const_spec((1, 2 * Fp), 2, single_buffer),      # [b1|b2]
                _const_spec((Fp, Fp), 2, single_buffer),         # W2_b
            ],
            out_specs=(
                pl.BlockSpec((tile_n, Fp), lambda c, k: (c * nK2 + k, 0)),  # Y2
                pl.BlockSpec((Ep, Fp), lambda c, k: (c, 0)),   # XeW partial/core
            ),
            scratch_shapes=[pltpu.VMEM((Ep, Fp), jnp.float32)],
        ),
        compiler_params=pltpu.CompilerParams(
            dimension_semantics=("parallel", "arbitrary"),
            vmem_limit_bytes=_vmem_limit(p1_vmem)),
        cost_estimate=pl.CostEstimate(
            flops=int(2 * Np * Finp * 2 * Fp + 2 * Np * Ep * Fp
                      + 2 * n_split * Ep * Fp * Fp),
            transcendentals=0,
            bytes_accessed=int(4 * Np * Finp + Np * Ep + 2 * Np * Fp
                               + 2 * n_split * Ep * Fp)),
    )(Xp, H, Wf, bf, W2b)

    # Sum the per-core partial XeW halves (W2_b is linear; cheap XLA add).
    xew = (xew_p[:Ep].astype(jnp.float32)
           + xew_p[Ep:].astype(jnp.float32)).astype(jnp.bfloat16)

    # ---- pass 2 ----
    p2_vmem = (2 * tile_n * Ep + 2 * tile_n * Fp * 2 + 2 * tile_n * Fp * 4
               + Ep * Fp * 2 + Fp * Fp * 2 + Fp * 4 + 2 * tile_n * Fp * 4)
    out = pl.pallas_call(
        functools.partial(vertex_out_kernel, alpha=alpha),
        out_shape=jax.ShapeDtypeStruct((Np, Fp), jnp.float32),
        grid_spec=pltpu.PrefetchScalarGridSpec(
            num_scalar_prefetch=0,
            grid=(nK,),
            in_specs=[
                pl.BlockSpec((tile_n, Fp), lambda k: (k, 0)),   # Y2 (bf16)
                pl.BlockSpec((tile_n, Ep), lambda k: (k, 0)),   # H^T tile (int8)
                pl.BlockSpec((tile_n, Fp), lambda k: (k, 0)),   # X0 tile
                _const_spec((Ep, Fp), 1, single_buffer),        # XeW (bf16)
                _const_spec((Fp, Fp), 1, single_buffer),        # W3 (bf16)
                _const_spec((1, Fp), 1, single_buffer),         # b3
            ],
            out_specs=pl.BlockSpec((tile_n, Fp), lambda k: (k, 0)),
        ),
        compiler_params=pltpu.CompilerParams(
            dimension_semantics=("parallel",),
            vmem_limit_bytes=_vmem_limit(p2_vmem)),
        cost_estimate=pl.CostEstimate(
            flops=int(2 * Np * Ep * Fp + 2 * Np * Fp * Fp),
            transcendentals=0,
            bytes_accessed=int(Np * Ep + 2 * Np * Fp + 4 * Np * Fp
                               + 4 * Np * Fp + 2 * Ep * Fp)),
    )(y2, Ht, X0p, xew, W3, b3p)

    return out[:N, :Fout]


def equiv_set_conv(X, vertex, edges, X0, params, num_edges, *,
                   alpha=0.5, tile_n=256):
    # tile_n=256 matches the 256-deep v6e/v7x MXU and halves the resident
    # accumulator RMW sweeps; drop to 128 for very large Ep (see E-tiling TODO).
    try:
        return _forward(X, vertex, edges, X0, params, num_edges, alpha, tile_n,
                        single_buffer=True)
    except Exception:
        # Fallback if BlockSpec(pipeline_mode=pl.Buffered(1)) is not supported
        # by the installed JAX's TPU pallas_call pipeline.
        return _forward(X, vertex, edges, X0, params, num_edges, alpha, tile_n,
                        single_buffer=False)


# --------------------------------------------------------------------------
# Synthetic params + pure-JAX reference
# --------------------------------------------------------------------------
def make_params(key, in_features, out_features):
    """PyTorch-Linear-like uniform init for W1, W2, W (=W3)."""
    def linear(k, fan_in, fan_out):
        kw, kb = jax.random.split(k)
        bound = 1.0 / jnp.sqrt(float(fan_in))
        w = jax.random.uniform(kw, (fan_in, fan_out), jnp.float32, -bound, bound)
        b = jax.random.uniform(kb, (1, fan_out), jnp.float32, -bound, bound)
        return w, b

    k1, k2, k3 = jax.random.split(key, 3)
    w1, b1 = linear(k1, in_features, out_features)
    w2, b2 = linear(k2, in_features + out_features, out_features)
    w3, b3 = linear(k3, out_features, out_features)
    return dict(w1=w1, b1=b1, w2=w2, b2=b2, w3=w3, b3=b3)


def reference_forward(X, vertex, edges, X0, params, num_edges, alpha=0.5):
    """Pure-JAX mirror of EquivSetConv.forward (aggr='add')."""
    N = X.shape[-2]
    Xve = (X @ params["w1"] + params["b1"])[vertex]
    Xe = jax.ops.segment_sum(Xve, edges, num_segments=num_edges)
    Xev_in = jnp.concatenate([X[vertex], Xe[edges]], axis=-1)
    Xev = Xev_in @ params["w2"] + params["b2"]
    Xv = jax.ops.segment_sum(Xev, vertex, num_segments=N)
    Xm = (1.0 - alpha) * Xv + alpha * X0
    return Xm @ params["w3"] + params["b3"]


if __name__ == "__main__":
    # Small synthetic hypergraph: N vertices, E hyperedges, nnz incidences.
    N, Fin, Fout = 16, 8, 16
    E, nnz = 6, 24

    key = jax.random.PRNGKey(0)
    kx, kx0, kp = jax.random.split(key, 3)

    X = jax.random.normal(kx, (N, Fin), jnp.float32)
    X0 = jax.random.normal(kx0, (N, Fout), jnp.float32)   # residual feats (Fout)

    # Deterministic incidence lists; every vertex and every edge appears.
    vertex = jnp.concatenate(
        [jnp.arange(N, dtype=jnp.int32),
         (jnp.arange(nnz - N, dtype=jnp.int32) * 3) % N])
    edges = jnp.arange(nnz, dtype=jnp.int32) % E

    params = make_params(kp, Fin, Fout)

    out = equiv_set_conv(X, vertex, edges, X0, params, E, alpha=0.5)
    out = jax.block_until_ready(out)

    ref = reference_forward(X, vertex, edges, X0, params, E, alpha=0.5)
    assert out.shape == (N, Fout)
    assert bool(jnp.all(jnp.isfinite(out)))
    assert jnp.allclose(out, ref, rtol=2e-2, atol=2e-2), "mismatch vs JAX reference"

    print("KERNEL_OK")
</pallas_src>

<mosaic_0001>
module attributes {stable_mosaic.version = 11 : i64} {
  func.func @edge_agg_kernel(%arg0: i32, %arg1: i32, %arg2: memref<256x128xf32, #tpu.memory_space<vmem>>, %arg3: memref<128x256xi8, #tpu.memory_space<vmem>>, %arg4: memref<128x256xf32, #tpu.memory_space<vmem>>, %arg5: memref<1x256xf32, #tpu.memory_space<vmem>>, %arg6: memref<128x128xbf16, #tpu.memory_space<vmem>>, %arg7: memref<256x128xbf16, #tpu.memory_space<vmem>>, %arg8: memref<128x128xbf16, #tpu.memory_space<vmem>>, %arg9: memref<128x128xf32, #tpu.memory_space<vmem>>) attributes {dimension_semantics = [#tpu.dimension_semantics<parallel>, #tpu.dimension_semantics<arbitrary>], iteration_bounds = array<i64: 2, 1>, scalar_prefetch = 0 : i64, scratch_operands = 1 : i64, tpu.core_type = #tpu.core_type<tc>, window_params = [{transform_indices = @transform_0, window_bounds = array<i64: 256, 128>}, {transform_indices = @transform_1, window_bounds = array<i64: 128, 256>}, {pipeline_mode = #tpu.pipeline_mode<synchronous>, transform_indices = @transform_2, window_bounds = array<i64: 128, 256>}, {pipeline_mode = #tpu.pipeline_mode<synchronous>, transform_indices = @transform_3, window_bounds = array<i64: 1, 256>}, {pipeline_mode = #tpu.pipeline_mode<synchronous>, transform_indices = @transform_4, window_bounds = array<i64: 128, 128>}, {transform_indices = @transform_5, window_bounds = array<i64: 256, 128>}, {transform_indices = @transform_6, window_bounds = array<i64: 128, 128>}]} {
    %c0_i32 = arith.constant 0 : i32
    %0 = arith.cmpi eq, %arg1, %c0_i32 : i32
    %1 = arith.extui %0 : i1 to i32
    %c0_i32_0 = arith.constant 0 : i32
    %2 = arith.cmpi ne, %1, %c0_i32_0 : i32
    scf.if %2 {
      %cst_17 = arith.constant 0.000000e+00 : f32
      %23 = vector.broadcast %cst_17 : f32 to vector<128x128xf32>
      %c0_18 = arith.constant 0 : index
      %c0_19 = arith.constant 0 : index
      %24 = vector.load %arg9[%c0_18, %c0_19] : memref<128x128xf32, #tpu.memory_space<vmem>>, vector<128x128xf32>
      tpu.vector_store %arg9[%c0_18, %c0_19], %23 {strides = array<i32>} : memref<128x128xf32, #tpu.memory_space<vmem>>, vector<128x128xf32>,
    } else {
    }
    %c0 = arith.constant 0 : index
    %c0_1 = arith.constant 0 : index
    %3 = vector.load %arg2[%c0, %c0_1] : memref<256x128xf32, #tpu.memory_space<vmem>>, vector<256x128xf32>
    %c0_2 = arith.constant 0 : index
    %c0_3 = arith.constant 0 : index
    %4 = vector.load %arg4[%c0_2, %c0_3] : memref<128x256xf32, #tpu.memory_space<vmem>>, vector<128x256xf32>
    %cst = arith.constant dense<0.000000e+00> : vector<256x256xf32>
    %5 = tpu.matmul %3, %4, %cst {dimension_numbers = #tpu.dot_dimension_numbers<[1], [0], [0], [1], [0, 0, 1, 1], [], []>} : vector<256x128xf32>, vector<128x256xf32>, vector<256x256xf32> -> vector<256x256xf32>
    %c0_4 = arith.constant 0 : index
    %c0_5 = arith.constant 0 : index
    %6 = vector.load %arg5[%c0_4, %c0_5] : memref<1x256xf32, #tpu.memory_space<vmem>>, vector<1x256xf32>
    %7 = vector.broadcast %6 : vector<1x256xf32> to vector<256x256xf32>
    %8 = arith.addf %5, %7 : vector<256x256xf32>
    %9 = vector.extract_strided_slice %8 {offsets = [0, 0], sizes = [256, 128], strides = [1, 1]} : vector<256x256xf32> to vector<256x128xf32>
    %10 = vector.extract_strided_slice %8 {offsets = [0, 128], sizes = [256, 128], strides = [1, 1]} : vector<256x256xf32> to vector<256x128xf32>
    %11 = arith.truncf %10 : vector<256x128xf32> to vector<256x128xbf16>
    %c0_6 = arith.constant 0 : index
    %c0_7 = arith.constant 0 : index
    %12 = vector.load %arg7[%c0_6, %c0_7] : memref<256x128xbf16, #tpu.memory_space<vmem>>, vector<256x128xbf16>
    tpu.vector_store %arg7[%c0_6, %c0_7], %11 {strides = array<i32>} : memref<256x128xbf16, #tpu.memory_space<vmem>>, vector<256x128xbf16>,
    %c0_8 = arith.constant 0 : index
    %c0_9 = arith.constant 0 : index
    %13 = vector.load %arg9[%c0_8, %c0_9] : memref<128x128xf32, #tpu.memory_space<vmem>>, vector<128x128xf32>
    %c0_10 = arith.constant 0 : index
    %c0_11 = arith.constant 0 : index
    %14 = vector.load %arg3[%c0_10, %c0_11] : memref<128x256xi8, #tpu.memory_space<vmem>>, vector<128x256xi8>
    %15 = arith.sitofp %14 : vector<128x256xi8> to vector<128x256xbf16>
    %16 = arith.truncf %9 : vector<256x128xf32> to vector<256x128xbf16>
    %cst_12 = arith.constant dense<0.000000e+00> : vector<128x128xf32>
    %17 = tpu.matmul %15, %16, %cst_12 {dimension_numbers = #tpu.dot_dimension_numbers<[1], [0], [0], [1], [0, 0, 1, 1], [], []>} : vector<128x256xbf16>, vector<256x128xbf16>, vector<128x128xf32> -> vector<128x128xf32>
    %18 = arith.addf %13, %17 : vector<128x128xf32>
    %c0_13 = arith.constant 0 : index
    %c0_14 = arith.constant 0 : index
    %19 = vector.load %arg9[%c0_13, %c0_14] : memref<128x128xf32, #tpu.memory_space<vmem>>, vector<128x128xf32>
    tpu.vector_store %arg9[%c0_13, %c0_14], %18 {strides = array<i32>} : memref<128x128xf32, #tpu.memory_space<vmem>>, vector<128x128xf32>,
    %c0_i32_15 = arith.constant 0 : i32
    %20 = arith.cmpi eq, %arg1, %c0_i32_15 : i32
    %21 = arith.extui %20 : i1 to i32
    %c0_i32_16 = arith.constant 0 : i32
    %22 = arith.cmpi ne, %21, %c0_i32_16 : i32
    scf.if %22 {
      %c0_17 = arith.constant 0 : index
      %c0_18 = arith.constant 0 : index
      %23 = vector.load %arg9[%c0_17, %c0_18] : memref<128x128xf32, #tpu.memory_space<vmem>>, vector<128x128xf32>
      %24 = arith.truncf %23 : vector<128x128xf32> to vector<128x128xbf16>
      %c0_19 = arith.constant 0 : index
      %c0_20 = arith.constant 0 : index
      %25 = vector.load %arg6[%c0_19, %c0_20] : memref<128x128xbf16, #tpu.memory_space<vmem>>, vector<128x128xbf16>
      %cst_21 = arith.constant dense<0.000000e+00> : vector<128x128xf32>
      %26 = tpu.matmul %24, %25, %cst_21 {dimension_numbers = #tpu.dot_dimension_numbers<[1], [0], [0], [1], [0, 0, 1, 1], [], []>} : vector<128x128xbf16>, vector<128x128xbf16>, vector<128x128xf32> -> vector<128x128xf32>
      %27 = arith.truncf %26 : vector<128x128xf32> to vector<128x128xbf16>
      %c0_22 = arith.constant 0 : index
      %c0_23 = arith.constant 0 : index
      %28 = vector.load %arg8[%c0_22, %c0_23] : memref<128x128xbf16, #tpu.memory_space<vmem>>, vector<128x128xbf16>
      tpu.vector_store %arg8[%c0_22, %c0_23], %27 {strides = array<i32>} : memref<128x128xbf16, #tpu.memory_space<vmem>>, vector<128x128xbf16>,
    } else {
    }
    return
  }
  func.func @transform_0(%arg0: i32, %arg1: i32) -> (i32, i32) {
    %c1_i32 = arith.constant 1 : i32
    %0 = arith.muli %arg0, %c1_i32 : i32
    %1 = arith.addi %0, %arg1 : i32
    %c0_i32 = arith.constant 0 : i32
    %c0_i32_0 = arith.constant 0 : i32
    return %1, %c0_i32 : i32, i32
  }
  func.func @transform_1(%arg0: i32, %arg1: i32) -> (i32, i32) {
    %c1_i32 = arith.constant 1 : i32
    %0 = arith.muli %arg0, %c1_i32 : i32
    %1 = arith.addi %0, %arg1 : i32
    %c0_i32 = arith.constant 0 : i32
    %c0_i32_0 = arith.constant 0 : i32
    return %c0_i32, %1 : i32, i32
  }
  func.func @transform_2(%arg0: i32, %arg1: i32) -> (i32, i32) {
    %c0_i32 = arith.constant 0 : i32
    %c0_i32_0 = arith.constant 0 : i32
    %c0_i32_1 = arith.constant 0 : i32
    return %c0_i32, %c0_i32_0 : i32, i32
  }
  func.func @transform_3(%arg0: i32, %arg1: i32) -> (i32, i32) {
    %c0_i32 = arith.constant 0 : i32
    %c0_i32_0 = arith.constant 0 : i32
    %c0_i32_1 = arith.constant 0 : i32
    return %c0_i32, %c0_i32_0 : i32, i32
  }
  func.func @transform_4(%arg0: i32, %arg1: i32) -> (i32, i32) {
    %c0_i32 = arith.constant 0 : i32
    %c0_i32_0 = arith.constant 0 : i32
    %c0_i32_1 = arith.constant 0 : i32
    return %c0_i32, %c0_i32_0 : i32, i32
  }
  func.func @transform_5(%arg0: i32, %arg1: i32) -> (i32, i32) {
    %c1_i32 = arith.constant 1 : i32
    %0 = arith.muli %arg0, %c1_i32 : i32
    %1 = arith.addi %0, %arg1 : i32
    %c0_i32 = arith.constant 0 : i32
    %c0_i32_0 = arith.constant 0 : i32
    return %1, %c0_i32 : i32, i32
  }
  func.func @transform_6(%arg0: i32, %arg1: i32) -> (i32, i32) {
    %c0_i32 = arith.constant 0 : i32
    %c0_i32_0 = arith.constant 0 : i32
    return %arg0, %c0_i32 : i32, i32
  }
}

module attributes {stable_mosaic.version = 11 : i64} {
  func.func @edge_agg_kernel(%arg0: i32, %arg1: i32, %arg2: memref<256x128xf32, #tpu.memory_space<vmem>>, %arg3: memref<128x256xi8, #tpu.memory_space<vmem>>, %arg4: memref<128x256xf32, #tpu.memory_space<vmem>>, %arg5: memref<1x256xf32, #tpu.memory_space<vmem>>, %arg6: memref<128x128xbf16, #tpu.memory_space<vmem>>, %arg7: memref<256x128xbf16, #tpu.memory_space<vmem>>, %arg8: memref<128x128xbf16, #tpu.memory_space<vmem>>, %arg9: memref<128x128xf32, #tpu.memory_space<vmem>>) attributes {dimension_semantics = [#tpu.dimension_semantics<parallel>, #tpu.dimension_semantics<arbitrary>], iteration_bounds = array<i64: 2, 1>, scalar_prefetch = 0 : i64, scratch_operands = 1 : i64, tpu.core_type = #tpu.core_type<tc>, window_params = [{transform_indices = @transform_0, window_bounds = array<i64: 256, 128>}, {transform_indices = @transform_1, window_bounds = array<i64: 128, 256>}, {pipeline_mode = #tpu.pipeline_mode<synchronous>, transform_indices = @transform_2, window_bounds = array<i64: 128, 256>}, {pipeline_mode = #tpu.pipeline_mode<synchronous>, transform_indices = @transform_3, window_bounds = array<i64: 1, 256>}, {pipeline_mode = #tpu.pipeline_mode<synchronous>, transform_indices = @transform_4, window_bounds = array<i64: 128, 128>}, {transform_indices = @transform_5, window_bounds = array<i64: 256, 128>}, {transform_indices = @transform_6, window_bounds = array<i64: 128, 128>}]} {
    %c0_i32 = arith.constant 0 : i32
    %0 = arith.cmpi eq, %arg1, %c0_i32 : i32
    %1 = arith.extui %0 : i1 to i32
    %c0_i32_0 = arith.constant 0 : i32
    %2 = arith.cmpi ne, %1, %c0_i32_0 : i32
    scf.if %2 {
      %cst_17 = arith.constant 0.000000e+00 : f32
      %23 = vector.broadcast %cst_17 : f32 to vector<128x128xf32>
      %c0_18 = arith.constant 0 : index
      %c0_19 = arith.constant 0 : index
      %24 = vector.load %arg9[%c0_18, %c0_19] : memref<128x128xf32, #tpu.memory_space<vmem>>, vector<128x128xf32>
      tpu.vector_store %arg9[%c0_18, %c0_19], %23 {strides = array<i32>} : memref<128x128xf32, #tpu.memory_space<vmem>>, vector<128x128xf32>,
    } else {
    }
    %c0 = arith.constant 0 : index
    %c0_1 = arith.constant 0 : index
    %3 = vector.load %arg2[%c0, %c0_1] : memref<256x128xf32, #tpu.memory_space<vmem>>, vector<256x128xf32>
    %c0_2 = arith.constant 0 : index
    %c0_3 = arith.constant 0 : index
    %4 = vector.load %arg4[%c0_2, %c0_3] : memref<128x256xf32, #tpu.memory_space<vmem>>, vector<128x256xf32>
    %cst = arith.constant dense<0.000000e+00> : vector<256x256xf32>
    %5 = tpu.matmul %3, %4, %cst {dimension_numbers = #tpu.dot_dimension_numbers<[1], [0], [0], [1], [0, 0, 1, 1], [], []>} : vector<256x128xf32>, vector<128x256xf32>, vector<256x256xf32> -> vector<256x256xf32>
    %c0_4 = arith.constant 0 : index
    %c0_5 = arith.constant 0 : index
    %6 = vector.load %arg5[%c0_4, %c0_5] : memref<1x256xf32, #tpu.memory_space<vmem>>, vector<1x256xf32>
    %7 = vector.broadcast %6 : vector<1x256xf32> to vector<256x256xf32>
    %8 = arith.addf %5, %7 : vector<256x256xf32>
    %9 = vector.extract_strided_slice %8 {offsets = [0, 0], sizes = [256, 128], strides = [1, 1]} : vector<256x256xf32> to vector<256x128xf32>
    %10 = vector.extract_strided_slice %8 {offsets = [0, 128], sizes = [256, 128], strides = [1, 1]} : vector<256x256xf32> to vector<256x128xf32>
    %11 = arith.truncf %10 : vector<256x128xf32> to vector<256x128xbf16>
    %c0_6 = arith.constant 0 : index
    %c0_7 = arith.constant 0 : index
    %12 = vector.load %arg7[%c0_6, %c0_7] : memref<256x128xbf16, #tpu.memory_space<vmem>>, vector<256x128xbf16>
    tpu.vector_store %arg7[%c0_6, %c0_7], %11 {strides = array<i32>} : memref<256x128xbf16, #tpu.memory_space<vmem>>, vector<256x128xbf16>,
    %c0_8 = arith.constant 0 : index
    %c0_9 = arith.constant 0 : index
    %13 = vector.load %arg9[%c0_8, %c0_9] : memref<128x128xf32, #tpu.memory_space<vmem>>, vector<128x128xf32>
    %c0_10 = arith.constant 0 : index
    %c0_11 = arith.constant 0 : index
    %14 = vector.load %arg3[%c0_10, %c0_11] : memref<128x256xi8, #tpu.memory_space<vmem>>, vector<128x256xi8>
    %15 = arith.sitofp %14 : vector<128x256xi8> to vector<128x256xbf16>
    %16 = arith.truncf %9 : vector<256x128xf32> to vector<256x128xbf16>
    %cst_12 = arith.constant dense<0.000000e+00> : vector<128x128xf32>
    %17 = tpu.matmul %15, %16, %cst_12 {dimension_numbers = #tpu.dot_dimension_numbers<[1], [0], [0], [1], [0, 0, 1, 1], [], []>} : vector<128x256xbf16>, vector<256x128xbf16>, vector<128x128xf32> -> vector<128x128xf32>
    %18 = arith.addf %13, %17 : vector<128x128xf32>
    %c0_13 = arith.constant 0 : index
    %c0_14 = arith.constant 0 : index
    %19 = vector.load %arg9[%c0_13, %c0_14] : memref<128x128xf32, #tpu.memory_space<vmem>>, vector<128x128xf32>
    tpu.vector_store %arg9[%c0_13, %c0_14], %18 {strides = array<i32>} : memref<128x128xf32, #tpu.memory_space<vmem>>, vector<128x128xf32>,
    %c0_i32_15 = arith.constant 0 : i32
    %20 = arith.cmpi eq, %arg1, %c0_i32_15 : i32
    %21 = arith.extui %20 : i1 to i32
    %c0_i32_16 = arith.constant 0 : i32
    %22 = arith.cmpi ne, %21, %c0_i32_16 : i32
    scf.if %22 {
      %c0_17 = arith.constant 0 : index
      %c0_18 = arith.constant 0 : index
      %23 = vector.load %arg9[%c0_17, %c0_18] : memref<128x128xf32, #tpu.memory_space<vmem>>, vector<128x128xf32>
      %24 = arith.truncf %23 : vector<128x128xf32> to vector<128x128xbf16>
      %c0_19 = arith.constant 0 : index
      %c0_20 = arith.constant 0 : index
      %25 = vector.load %arg6[%c0_19, %c0_20] : memref<128x128xbf16, #tpu.memory_space<vmem>>, vector<128x128xbf16>
      %cst_21 = arith.constant dense<0.000000e+00> : vector<128x128xf32>
      %26 = tpu.matmul %24, %25, %cst_21 {dimension_numbers = #tpu.dot_dimension_numbers<[1], [0], [0], [1], [0, 0, 1, 1], [], []>} : vector<128x128xbf16>, vector<128x128xbf16>, vector<128x128xf32> -> vector<128x128xf32>
      %27 = arith.truncf %26 : vector<128x128xf32> to vector<128x128xbf16>
      %c0_22 = arith.constant 0 : index
      %c0_23 = arith.constant 0 : index
      %28 = vector.load %arg8[%c0_22, %c0_23] : memref<128x128xbf16, #tpu.memory_space<vmem>>, vector<128x128xbf16>
      tpu.vector_store %arg8[%c0_22, %c0_23], %27 {strides = array<i32>} : memref<128x128xbf16, #tpu.memory_space<vmem>>, vector<128x128xbf16>,
    } else {
    }
    return
  }
  func.func @transform_0(%arg0: i32, %arg1: i32) -> (i32, i32) {
    %c1_i32 = arith.constant 1 : i32
    %0 = arith.muli %arg0, %c1_i32 : i32
    %1 = arith.addi %0, %arg1 : i32
    %c0_i32 = arith.constant 0 : i32
    %c0_i32_0 = arith.constant 0 : i32
    return %1, %c0_i32 : i32, i32
  }
  func.func @transform_1(%arg0: i32, %arg1: i32) -> (i32, i32) {
    %c1_i32 = arith.constant 1 : i32
    %0 = arith.muli %arg0, %c1_i32 : i32
    %1 = arith.addi %0, %arg1 : i32
    %c0_i32 = arith.constant 0 : i32
    %c0_i32_0 = arith.constant 0 : i32
    return %c0_i32, %1 : i32, i32
  }
  func.func @transform_2(%arg0: i32, %arg1: i32) -> (i32, i32) {
    %c0_i32 = arith.constant 0 : i32
    %c0_i32_0 = arith.constant 0 : i32
    %c0_i32_1 = arith.constant 0 : i32
    return %c0_i32, %c0_i32_0 : i32, i32
  }
  func.func @transform_3(%arg0: i32, %arg1: i32) -> (i32, i32) {
    %c0_i32 = arith.constant 0 : i32
    %c0_i32_0 = arith.constant 0 : i32
    %c0_i32_1 = arith.constant 0 : i32
    return %c0_i32, %c0_i32_0 : i32, i32
  }
  func.func @transform_4(%arg0: i32, %arg1: i32) -> (i32, i32) {
    %c0_i32 = arith.constant 0 : i32
    %c0_i32_0 = arith.constant 0 : i32
    %c0_i32_1 = arith.constant 0 : i32
    return %c0_i32, %c0_i32_0 : i32, i32
  }
  func.func @transform_5(%arg0: i32, %arg1: i32) -> (i32, i32) {
    %c1_i32 = arith.constant 1 : i32
    %0 = arith.muli %arg0, %c1_i32 : i32
    %1 = arith.addi %0, %arg1 : i32
    %c0_i32 = arith.constant 0 : i32
    %c0_i32_0 = arith.constant 0 : i32
    return %1, %c0_i32 : i32, i32
  }
  func.func @transform_6(%arg0: i32, %arg1: i32) -> (i32, i32) {
    %c0_i32 = arith.constant 0 : i32
    %c0_i32_0 = arith.constant 0 : i32
    return %arg0, %c0_i32 : i32, i32
  }
}

</mosaic_0001>

<llo_original>
// kernel: tpu_custom_call.1
$region0: #{tpu_custom_call.1}
  #allocation0 [shape = 'u32[]', space=smem, size = 0x4, offset = 0x4, fixed_abs, tag = 'smem constant byte address 0x4 - core index']
  #allocation1 [shape = 'u32[144,128]{1,0:T(1,128)}', space=vmem, size = 0x12000, scoped, tag = 'internal scratch']
  #allocation2 [shape = 'f32[128,128]{1,0:T(8,128)}', space=vmem, size = 0x10000, scoped, tag = 'scratch operand']
  %s0 = inlined_call_operand.hbm [shape: f32[512,128], index: 0, kind: input, shape index: {}]
  %s1 = inlined_call_operand.hbm [shape: s8[128,512], index: 1, kind: input, shape index: {}]
  %s2 = inlined_call_operand.hbm [shape: f32[128,256], index: 2, kind: input, shape index: {}]
  %s3 = inlined_call_operand.vmem [shape: f32[1,256], index: 3, kind: input, shape index: {}]
  %s4 = inlined_call_operand.hbm [shape: bf16[128,128], index: 4, kind: input, shape index: {}]
  %s5 = inlined_call_operand.hbm [shape: bf16[512,128], index: 5, kind: output, shape index: {0}]
  %s6 = inlined_call_operand.hbm [shape: bf16[256,128], index: 6, kind: output, shape index: {1}]
  %7 = xla_tuple %s5, %s6
  %s8 = sld [smem:[#allocation0]]
  $region85: #{tpu_custom_call.1} parent=0
    _
  %s10 = ssub.s32 1, %s8
  %s11 = scalar_select 0, %s10, %s8
  $region1: #{tpu_custom_call.1} parent=0
    #allocation3 [shape = 'u8[262144]{0}', space=vmem, size = 0x40000, scoped, tag = 'input window, operand 0']
    #allocation4 [shape = 's32[2]{0}', space=sflag, size = 0x8, scoped, tag = 'scoped memory for tpu_custom_call.1']
    #allocation5 [shape = 's32[2]{0}', space=sflag, size = 0x8, scoped, tag = 'scoped memory for tpu_custom_call.1']
    #allocation6 [shape = 'u8[65536]{0}', space=vmem, size = 0x10000, scoped, tag = 'input window, operand 1']
    #allocation7 [shape = 's32[2]{0}', space=sflag, size = 0x8, scoped, tag = 'scoped memory for tpu_custom_call.1']
    #allocation8 [shape = 'u8[131072]{0}', space=vmem, size = 0x20000, scoped, tag = 'input window, operand 2, single buffered']
    #allocation9 [shape = 'u8[32768]{0}', space=vmem, size = 0x8000, scoped, tag = 'input window, operand 4, single buffered']
    #allocation10 [shape = 's32[1]{0}', space=sflag, size = 0x4, scoped, tag = 'scoped memory for tpu_custom_call.1']
    #allocation11 [shape = 'u8[131072]{0}', space=vmem, size = 0x20000, scoped, tag = 'output window, operand 0']
    #allocation12 [shape = 'u8[65536]{0}', space=vmem, size = 0x10000, scoped, tag = 'output window, operand 1']
    #allocation13 [shape = 's32[2]{0}', space=sflag, size = 0x8, scoped, tag = 'scoped memory for tpu_custom_call.1']
    %12 = vsyncpa [#allocation4], 0
    %s13 = scalar_lea.sflag [#allocation4], 1
    %14 = vsyncpa %s13, 0
    %15 = vsyncpa [#allocation7], 0
    %s16 = scalar_lea.sflag [#allocation7], 1
    %17 = vsyncpa %s16, 0
    %18 = vsyncpa [#allocation10], 0
    %19 = vsyncpa [#allocation5], 0
    %s20 = scalar_lea.sflag [#allocation5], 1
    %21 = vsyncpa %s20, 0
    %22 = vsyncpa [#allocation13], 0
    %s23 = scalar_lea.sflag [#allocation13], 1
    %24 = vsyncpa %s23, 0
    loop: start=0, step=1, limit=4
    $region2: #{tpu_custom_call.1} parent=1 // loop_pre_header
      _
    $region3: #{tpu_custom_call.1} parent=1 // loop_header
      %s26 = sphi 0, %s30
      %p27 = scmp.ge.s32.totalorder %s26, 4
      %s33 = sphi 0, %s45
      %s34 = sphi 0, %s41
      %s35 = sphi 0, %s33
      %s36 = sphi 0, %s34
      %s37 = sphi 0, %s35
      %s38 = sphi 0, %s36
      %s50 = sphi 0, %s52
      %s53 = sphi 0, %s50
      %s54 = sphi 0, %s53
      %s70 = sphi 0, %s54
      %s78 = sphi 0, %s80
      %s81 = sphi 0, %s78
      %s82 = sphi 0, %s81
      %s98 = sphi 0, %s82
      %s102 = sphi 0, %s102
      %s104 = sphi 0, %s102
      %s105 = sphi 0, %s104
      %s119 = sphi 0, %s105
      %s123 = sphi 0, %s123
      %s125 = sphi 0, %s123
      %s126 = sphi 0, %s125
      %s140 = sphi 0, %s126
      %s144 = sphi 0, %s144
      %s146 = sphi 0, %s144
      %s147 = sphi 0, %s146
      %s161 = sphi 0, %s147
      %s169 = sphi 0, %s171
      %s172 = sphi 0, %s169
      %s173 = sphi 0, %s172
      %s189 = sphi 0, %s173
      %s195 = sphi 0, %s197
      %s198 = sphi 0, %s195
      %s199 = sphi 0, %s198
      %s215 = sphi 0, %s199
    $region4: #{tpu_custom_call.1} parent=1 // loop_header_branch
      %29 = sbr.rel (%p27) target = $region8
    $region5: #{tpu_custom_call.1} parent=1 // loop_body
      %s31 = ssub.s32 %s26, 1
      %s32 = ssub.s32 %s26, 2
      %s39 = sadd.s32 1, %s34
      %p40 = scmp.ge.s32.totalorder %s39, 1
      %s41 = scalar_select %p40, 0, %s39
      %s42 = sadd.s32 1, %s33
      %s43 = scalar_select %p40, %s42, %s33
      %p44 = scmp.ge.s32.totalorder %s43, 2
      %s45 = scalar_select %p44, 0, %s43
      %s46 = sadd.s32 %s33, %s34
      %s47 = sadd.s32 %s45, %s41
      %s48 = ssub.s32 %s46, %s47
      %p49 = scmp.eq.s32.totalorder %s48, 0
      %s51 = sadd.s32 %s50, 1
      %s52 = scalar_select %p49, %s50, %s51
      %p55 = pneg %p49
      %p56 = scmp.eq.s32.totalorder %s26, 1
      %p57 = por %p55, %p56
      %p58 = scmp.ne.s32.totalorder %s50, %s53
      %p59 = scmp.eq.s32.totalorder %s26, 0
      %p60 = por %p58, %p59
      %p61 = scmp.ne.s32.totalorder %s50, %s53
      %p62 = scmp.eq.s32.totalorder %s31, 1
      %p63 = por %p61, %p62
      %p64 = scmp.ne.s32.totalorder %s53, %s54
      %p65 = scmp.eq.s32.totalorder %s31, 0
      %p66 = por %p64, %p65
      %p67 = scmp.ne.s32.totalorder %s53, %s54
      %p68 = scmp.eq.s32.totalorder %s32, 1
      %p69 = por %p67, %p68
      %p71 = scmp.ne.s32.totalorder %s54, %s70
      %p72 = scmp.eq.s32.totalorder %s32, 0
      %p73 = por %p71, %p72
      %s74 = sadd.s32 %s33, %s34
      %s75 = sadd.s32 %s45, %s41
      %s76 = ssub.s32 %s74, %s75
      %p77 = scmp.eq.s32.totalorder %s76, 0
      %s79 = sadd.s32 %s78, 1
      %s80 = scalar_select %p77, %s78, %s79
      %p83 = pneg %p77
      %p84 = scmp.eq.s32.totalorder %s26, 1
      %p85 = por %p83, %p84
      %p86 = scmp.ne.s32.totalorder %s78, %s81
      %p87 = scmp.eq.s32.totalorder %s26, 0
      %p88 = por %p86, %p87
      %p89 = scmp.ne.s32.totalorder %s78, %s81
      %p90 = scmp.eq.s32.totalorder %s31, 1
      %p91 = por %p89, %p90
      %p92 = scmp.ne.s32.totalorder %s81, %s82
      %p93 = scmp.eq.s32.totalorder %s31, 0
      %p94 = por %p92, %p93
      %p95 = scmp.ne.s32.totalorder %s81, %s82
      %p96 = scmp.eq.s32.totalorder %s32, 1
      %p97 = por %p95, %p96
      %p99 = scmp.ne.s32.totalorder %s82, %s98
      %p100 = scmp.eq.s32.totalorder %s32, 0
      %p101 = por %p99, %p100
      %s103 = sadd.s32 %s102, 1
      %p106 = scmp.eq.s32.totalorder %s26, 1
      %p107 = scmp.ne.s32.totalorder %s102, %s104
      %p108 = scmp.eq.s32.totalorder %s26, 0
      %p109 = por %p107, %p108
      %p110 = scmp.ne.s32.totalorder %s102, %s104
      %p111 = scmp.eq.s32.totalorder %s31, 1
      %p112 = por %p110, %p111
      %p113 = scmp.ne.s32.totalorder %s104, %s105
      %p114 = scmp.eq.s32.totalorder %s31, 0
      %p115 = por %p113, %p114
      %p116 = scmp.ne.s32.totalorder %s104, %s105
      %p117 = scmp.eq.s32.totalorder %s32, 1
      %p118 = por %p116, %p117
      %p120 = scmp.ne.s32.totalorder %s105, %s119
      %p121 = scmp.eq.s32.totalorder %s32, 0
      %p122 = por %p120, %p121
      %s124 = sadd.s32 %s123, 1
      %p127 = scmp.eq.s32.totalorder %s26, 1
      %p128 = scmp.ne.s32.totalorder %s123, %s125
      %p129 = scmp.eq.s32.totalorder %s26, 0
      %p130 = por %p128, %p129
      %p131 = scmp.ne.s32.totalorder %s123, %s125
      %p132 = scmp.eq.s32.totalorder %s31, 1
      %p133 = por %p131, %p132
      %p134 = scmp.ne.s32.totalorder %s125, %s126
      %p135 = scmp.eq.s32.totalorder %s31, 0
      %p136 = por %p134, %p135
      %p137 = scmp.ne.s32.totalorder %s125, %s126
      %p138 = scmp.eq.s32.totalorder %s32, 1
      %p139 = por %p137, %p138
      %p141 = scmp.ne.s32.totalorder %s126, %s140
      %p142 = scmp.eq.s32.totalorder %s32, 0
      %p143 = por %p141, %p142
      %s145 = sadd.s32 %s144, 1
      %p148 = scmp.eq.s32.totalorder %s26, 1
      %p149 = scmp.ne.s32.totalorder %s144, %s146
      %p150 = scmp.eq.s32.totalorder %s26, 0
      %p151 = por %p149, %p150
      %p152 = scmp.ne.s32.totalorder %s144, %s146
      %p153 = scmp.eq.s32.totalorder %s31, 1
      %p154 = por %p152, %p153
      %p155 = scmp.ne.s32.totalorder %s146, %s147
      %p156 = scmp.eq.s32.totalorder %s31, 0
      %p157 = por %p155, %p156
      %p158 = scmp.ne.s32.totalorder %s146, %s147
      %p159 = scmp.eq.s32.totalorder %s32, 1
      %p160 = por %p158, %p159
      %p162 = scmp.ne.s32.totalorder %s147, %s161
      %p163 = scmp.eq.s32.totalorder %s32, 0
      %p164 = por %p162, %p163
      %s165 = sadd.s32 %s33, %s34
      %s166 = sadd.s32 %s45, %s41
      %s167 = ssub.s32 %s165, %s166
      %p168 = scmp.eq.s32.totalorder %s167, 0
      %s170 = sadd.s32 %s169, 1
      %s171 = scalar_select %p168, %s169, %s170
      %p174 = pneg %p168
      %p175 = scmp.eq.s32.totalorder %s26, 1
      %p176 = por %p174, %p175
      %p177 = scmp.ne.s32.totalorder %s169, %s172
      %p178 = scmp.eq.s32.totalorder %s26, 0
      %p179 = por %p177, %p178
      %p180 = scmp.ne.s32.totalorder %s169, %s172
      %p181 = scmp.eq.s32.totalorder %s31, 1
      %p182 = por %p180, %p181
      %p183 = scmp.ne.s32.totalorder %s172, %s173
      %p184 = scmp.eq.s32.totalorder %s31, 0
      %p185 = por %p183, %p184
      %p186 = scmp.ne.s32.totalorder %s172, %s173
      %p187 = scmp.eq.s32.totalorder %s32, 1
      %p188 = por %p186, %p187
      %p190 = scmp.ne.s32.totalorder %s173, %s189
      %p191 = scmp.eq.s32.totalorder %s32, 0
      %p192 = por %p190, %p191
      %s193 = ssub.s32 %s33, %s45
      %p194 = scmp.eq.s32.totalorder %s193, 0
      %s196 = sadd.s32 %s195, 1
      %s197 = scalar_select %p194, %s195, %s196
      %p200 = pneg %p194
      %p201 = scmp.eq.s32.totalorder %s26, 1
      %p202 = por %p200, %p201
      %p203 = scmp.ne.s32.totalorder %s195, %s198
      %p204 = scmp.eq.s32.totalorder %s26, 0
      %p205 = por %p203, %p204
      %p206 = scmp.ne.s32.totalorder %s195, %s198
      %p207 = scmp.eq.s32.totalorder %s31, 1
      %p208 = por %p206, %p207
      %p209 = scmp.ne.s32.totalorder %s198, %s199
      %p210 = scmp.eq.s32.totalorder %s31, 0
      %p211 = por %p209, %p210
      %p212 = scmp.ne.s32.totalorder %s198, %s199
      %p213 = scmp.eq.s32.totalorder %s32, 1
      %p214 = por %p212, %p213
      %p216 = scmp.ne.s32.totalorder %s199, %s215
      %p217 = scmp.eq.s32.totalorder %s32, 0
      %p218 = por %p216, %p217
      %p219 = scmp.le.s32.totalorder 1, %s26
      %p220 = scmp.lt.s32.totalorder %s26, 3
      %p221 = pnand %p219, %p220
      %p222 = pneg %p221
      // Predicated region
      $region9: #{tpu_custom_call.1} parent=5 // pred_check
        _
      $region10: #{tpu_custom_call.1} parent=5 // pred_check_branch
        %224 = sbr.rel (%p221) target = $region12
      $region11: #{tpu_custom_call.1} parent=5 // pred_region
        %s225 = ssub.s32 %s26, 1
        // Predicated region
        $region13: #{tpu_custom_call.1} parent=11 // pred_check
          %p226 = pneg %p115
        $region14: #{tpu_custom_call.1} parent=11 // pred_check_branch
          %228 = sbr.rel (%p226) target = $region16
        $region15: #{tpu_custom_call.1} parent=11 // pred_region
          %s230 = ssub.s32 4096, 4096
          %231 = vsyncadd [#allocation7], %s230
          %s232 = sshll.u32 [#allocation8], 4
          %s233 = int_to_ptr.vmem [resolvable:$true] %s232
          %238 = dma.hbm_to_vmem [thread:$0]  %s2, 4096, %s233, [#allocation7], 256, 256, 16
        $region16: #{tpu_custom_call.1} parent=11 // pred_fallthru
          _
        // Predicated region
        $region17: #{tpu_custom_call.1} parent=11 // pred_check
          %p239 = pneg %p136
        $region18: #{tpu_custom_call.1} parent=11 // pred_check_branch
          %241 = sbr.rel (%p239) target = $region20
        $region19: #{tpu_custom_call.1} parent=11 // pred_region
          _
        $region20: #{tpu_custom_call.1} parent=11 // pred_fallthru
          _
        // Predicated region
        $region21: #{tpu_custom_call.1} parent=11 // pred_check
          %p242 = pneg %p157
        $region22: #{tpu_custom_call.1} parent=11 // pred_check_branch
          %244 = sbr.rel (%p242) target = $region24
        $region23: #{tpu_custom_call.1} parent=11 // pred_region
          %s246 = ssub.s32 1024, 1024
          %247 = vsyncadd [#allocation10], %s246
          %s248 = sshll.u32 [#allocation9], 4
          %s249 = int_to_ptr.vmem [resolvable:$true] %s248
          %254 = dma.hbm_to_vmem [thread:$0]  %s4, 1024, %s249, [#allocation10], 64, 64, 4
        $region24: #{tpu_custom_call.1} parent=11 // pred_fallthru
          _
      $region12: #{tpu_custom_call.1} parent=5 // pred_fallthru
        _
      %p255 = scmp.lt.s32.totalorder %s26, 2
      // Predicated region
      $region25: #{tpu_custom_call.1} parent=5 // pred_check
        %p256 = pneg %p255
      $region26: #{tpu_custom_call.1} parent=5 // pred_check_branch
        %258 = sbr.rel (%p256) target = $region28
      $region27: #{tpu_custom_call.1} parent=5 // pred_region
        // Predicated region
        $region29: #{tpu_custom_call.1} parent=27 // pred_check
          %p259 = pneg %p60
        $region30: #{tpu_custom_call.1} parent=27 // pred_check_branch
          %261 = sbr.rel (%p259) target = $region32
        $region31: #{tpu_custom_call.1} parent=27 // pred_region
          %s262 = sand.u32 %s50, 1
          %s263 = scalar_lea.sflag [#allocation4], %s262
          %s264 = sand.u32 %s50, 1
          %s265 = smul.addr %s264, 256
          %s266 = scalar_lea.vmem [#allocation3], %s265
          %s267 = sadd.s32 %s33, %s34
          %s268 = smul.u32 32, %s267
          %s270 = ssub.s32 4096, 4096
          %271 = vsyncadd %s263, %s270
          %s272 = smul.addr %s268, 128
          %s273 = scalar_lea.hbm %s0, %s272
          %s274 = sshll.u32 %s266, 4
          %s275 = int_to_ptr.vmem [resolvable:$true] %s274
          %280 = dma.hbm_to_vmem [thread:$0]  %s273, 4096, %s275, %s263, 128, 128, 8
        $region32: #{tpu_custom_call.1} parent=27 // pred_fallthru
          _
        // Predicated region
        $region33: #{tpu_custom_call.1} parent=27 // pred_check
          %p281 = pneg %p88
        $region34: #{tpu_custom_call.1} parent=27 // pred_check_branch
          %283 = sbr.rel (%p281) target = $region36
        $region35: #{tpu_custom_call.1} parent=27 // pred_region
          %s284 = sand.u32 %s26, 1
          %s285 = scalar_lea.sflag [#allocation7], %s284
          %s286 = sand.u32 %s78, 1
          %s287 = smul.addr %s286, 64
          %s288 = scalar_lea.vmem [#allocation6], %s287
          %s289 = sadd.s32 %s33, %s34
          %s290 = smul.u32 2, %s289
          %s292 = ssub.s32 1024, 1024
          %293 = vsyncadd %s285, %s292
          %s294 = smul.addr %s290, 128
          %s295 = scalar_lea.hbm %s1, %s294
          %s296 = sshll.u32 %s288, 4
          %s297 = int_to_ptr.vmem [resolvable:$true] %s296
          %302 = dma.hbm_to_vmem [thread:$0]  %s295, 1024, %s297, %s285, 512, 256, 16
        $region36: #{tpu_custom_call.1} parent=27 // pred_fallthru
          _
      $region28: #{tpu_custom_call.1} parent=5 // pred_fallthru
        _
      %p303 = scmp.le.s32.totalorder 1, %s26
      %p304 = scmp.lt.s32.totalorder %s26, 3
      %p305 = pnand %p303, %p304
      %p306 = pneg %p305
      // Predicated region
      $region37: #{tpu_custom_call.1} parent=5 // pred_check
        _
      $region38: #{tpu_custom_call.1} parent=5 // pred_check_branch
        %308 = sbr.rel (%p305) target = $region40
      $region39: #{tpu_custom_call.1} parent=5 // pred_region
        %s309 = ssub.s32 %s26, 1
        %s310 = sand.u32 %s53, 1
        %s311 = scalar_lea.sflag [#allocation4], %s310
        %s312 = sand.u32 %s53, 1
        %s313 = smul.addr %s312, 256
        %s314 = scalar_lea.vmem [#allocation3], %s313
        // Predicated region
        $region41: #{tpu_custom_call.1} parent=39 // pred_check
          %p315 = pneg %p66
        $region42: #{tpu_custom_call.1} parent=39 // pred_check_branch
          %317 = sbr.rel (%p315) target = $region44
        $region43: #{tpu_custom_call.1} parent=39 // pred_region
          %318 = dma.done %s311, 4096
        $region44: #{tpu_custom_call.1} parent=39 // pred_fallthru
          _
        %s319 = sand.u32 %s31, 1
        %s320 = scalar_lea.sflag [#allocation7], %s319
        %s321 = sand.u32 %s81, 1
        %s322 = smul.addr %s321, 64
        %s323 = scalar_lea.vmem [#allocation6], %s322
        // Predicated region
        $region45: #{tpu_custom_call.1} parent=39 // pred_check
          %p324 = pneg %p94
        $region46: #{tpu_custom_call.1} parent=39 // pred_check_branch
          %326 = sbr.rel (%p324) target = $region48
        $region47: #{tpu_custom_call.1} parent=39 // pred_region
          %327 = dma.done %s320, 1024
        $region48: #{tpu_custom_call.1} parent=39 // pred_fallthru
          _
        // Predicated region
        $region49: #{tpu_custom_call.1} parent=39 // pred_check
          %p328 = pneg %p115
        $region50: #{tpu_custom_call.1} parent=39 // pred_check_branch
          %330 = sbr.rel (%p328) target = $region52
        $region51: #{tpu_custom_call.1} parent=39 // pred_region
          %331 = dma.done [#allocation7], 4096
        $region52: #{tpu_custom_call.1} parent=39 // pred_fallthru
          _
        // Predicated region
        $region53: #{tpu_custom_call.1} parent=39 // pred_check
          %p332 = pneg %p157
        $region54: #{tpu_custom_call.1} parent=39 // pred_check_branch
          %334 = sbr.rel (%p332) target = $region56
        $region55: #{tpu_custom_call.1} parent=39 // pred_region
          %335 = dma.done [#allocation10], 1024
        $region56: #{tpu_custom_call.1} parent=39 // pred_fallthru
          _
        %s336 = sand.u32 %s53, 1
        %s337 = scalar_lea.sflag [#allocation4], %s336
        %s338 = sand.u32 %s53, 1
        %s339 = smul.addr %s338, 256
        %s340 = scalar_lea.vmem [#allocation3], %s339
        %p341 = pneg %p66
        %p342 = pneg %p63
        %s343 = sand.u32 %s31, 1
        %s344 = scalar_lea.sflag [#allocation7], %s343
        %s345 = sand.u32 %s81, 1
        %s346 = smul.addr %s345, 64
        %s347 = scalar_lea.vmem [#allocation6], %s346
        %p348 = pneg %p94
        %p349 = pneg %p91
        %p350 = pneg %p115
        %p351 = pneg %p112
        %p352 = pneg %p136
        %p353 = pneg %p133
        %p354 = pneg %p157
        %p355 = pneg %p154
        %p356 = pneg %p185
        %p357 = pneg %p182
        %s358 = sand.u32 %s172, 1
        %s359 = scalar_lea.sflag [#allocation5], %s358
        %s360 = sand.u32 %s172, 1
        %s361 = smul.addr %s360, 128
        %s362 = scalar_lea.vmem [#allocation11], %s361
        %p363 = pneg %p211
        %p364 = pneg %p208
        %s365 = sand.u32 %s198, 1
        %s366 = scalar_lea.sflag [#allocation13], %s365
        %s367 = sand.u32 %s198, 1
        %s368 = smul.addr %s367, 64
        %s369 = scalar_lea.vmem [#allocation12], %s368
        %s370 = sadd.s32 %s35, %s36
        %s371 = smul.u32 32, %s370
        %s372 = sadd.s32 %s35, %s36
        %s373 = smul.u32 2, %s372
        %s374 = sadd.s32 %s35, %s36
        %s375 = smul.u32 32, %s374
        %s376 = smul.u32 16, %s35
        %p378 = scmp.eq.s32.totalorder %s36, 0
        // Predicated region
        $region57: #{tpu_custom_call.1} parent=39 // pred_check
          %p379 = pneg %p378
        $region58: #{tpu_custom_call.1} parent=39 // pred_check_branch
          %381 = sbr.rel (%p379) target = $region60
        $region59: #{tpu_custom_call.1} parent=39 // pred_region
          %382 = vst [vmem:[#allocation2] sm:$0xff] 0.0
          %383 = vst [vmem:[#allocation2 + $0x8] sm:$0xff] 0.0
          %384 = vst [vmem:[#allocation2 + $0x10] sm:$0xff] 0.0
          %385 = vst [vmem:[#allocation2 + $0x18] sm:$0xff] 0.0
          %386 = vst [vmem:[#allocation2 + $0x20] sm:$0xff] 0.0
          %387 = vst [vmem:[#allocation2 + $0x28] sm:$0xff] 0.0
          %388 = vst [vmem:[#allocation2 + $0x30] sm:$0xff] 0.0
          %389 = vst [vmem:[#allocation2 + $0x38] sm:$0xff] 0.0
          %390 = vst [vmem:[#allocation2 + $0x40] sm:$0xff] 0.0
          %391 = vst [vmem:[#allocation2 + $0x48] sm:$0xff] 0.0
          %392 = vst [vmem:[#allocation2 + $0x50] sm:$0xff] 0.0
          %393 = vst [vmem:[#allocation2 + $0x58] sm:$0xff] 0.0
          %394 = vst [vmem:[#allocation2 + $0x60] sm:$0xff] 0.0
          %395 = vst [vmem:[#allocation2 + $0x68] sm:$0xff] 0.0
          %396 = vst [vmem:[#allocation2 + $0x70] sm:$0xff] 0.0
          %397 = vst [vmem:[#allocation2 + $0x78] sm:$0xff] 0.0
        $region60: #{tpu_custom_call.1} parent=39 // pred_fallthru
          _
        %v398 = vld [vmem:[%s314] sm:$0xff]
        %v399 = vld [vmem:[%s314 + $0x8] sm:$0xff]
        %v400 = vld [vmem:[%s314 + $0x10] sm:$0xff]
        %v401 = vld [vmem:[%s314 + $0x18] sm:$0xff]
        %v402 = vld [vmem:[%s314 + $0x20] sm:$0xff]
        %v403 = vld [vmem:[%s314 + $0x28] sm:$0xff]
        %v404 = vld [vmem:[%s314 + $0x30] sm:$0xff]
        %v405 = vld [vmem:[%s314 + $0x38] sm:$0xff]
        %v406 = vld [vmem:[%s314 + $0x40] sm:$0xff]
        %v407 = vld [vmem:[%s314 + $0x48] sm:$0xff]
        %v408 = vld [vmem:[%s314 + $0x50] sm:$0xff]
        %v409 = vld [vmem:[%s314 + $0x58] sm:$0xff]
        %v410 = vld [vmem:[%s314 + $0x60] sm:$0xff]
        %v411 = vld [vmem:[%s314 + $0x68] sm:$0xff]
        %v412 = vld [vmem:[%s314 + $0x70] sm:$0xff]
        %v413 = vld [vmem:[%s314 + $0x78] sm:$0xff]
        %v414 = vld [vmem:[%s314 + $0x80] sm:$0xff]
        %v415 = vld [vmem:[%s314 + $0x88] sm:$0xff]
        %v416 = vld [vmem:[%s314 + $0x90] sm:$0xff]
        %v417 = vld [vmem:[%s314 + $0x98] sm:$0xff]
        %v418 = vld [vmem:[%s314 + $0xa0] sm:$0xff]
        %v419 = vld [vmem:[%s314 + $0xa8] sm:$0xff]
        %v420 = vld [vmem:[%s314 + $0xb0] sm:$0xff]
        %v421 = vld [vmem:[%s314 + $0xb8] sm:$0xff]
        %v422 = vld [vmem:[%s314 + $0xc0] sm:$0xff]
        %v423 = vld [vmem:[%s314 + $0xc8] sm:$0xff]
        %v424 = vld [vmem:[%s314 + $0xd0] sm:$0xff]
        %v425 = vld [vmem:[%s314 + $0xd8] sm:$0xff]
        %v426 = vld [vmem:[%s314 + $0xe0] sm:$0xff]
        %v427 = vld [vmem:[%s314 + $0xe8] sm:$0xff]
        %v428 = vld [vmem:[%s314 + $0xf0] sm:$0xff]
        %v429 = vld [vmem:[%s314 + $0xf8] sm:$0xff]
        %v430 = vld [vmem:[#allocation8] sm:$0xff]
        %v431 = vld [vmem:[#allocation8 + $0x8] sm:$0xff]
        %v432 = vld [vmem:[#allocation8 + $0x10] sm:$0xff]
        %v433 = vld [vmem:[#allocation8 + $0x18] sm:$0xff]
        %v434 = vld [vmem:[#allocation8 + $0x20] sm:$0xff]
        %v435 = vld [vmem:[#allocation8 + $0x28] sm:$0xff]
        %v436 = vld [vmem:[#allocation8 + $0x30] sm:$0xff]
        %v437 = vld [vmem:[#allocation8 + $0x38] sm:$0xff]
        %v438 = vld [vmem:[#allocation8 + $0x40] sm:$0xff]
        %v439 = vld [vmem:[#allocation8 + $0x48] sm:$0xff]
        %v440 = vld [vmem:[#allocation8 + $0x50] sm:$0xff]
        %v441 = vld [vmem:[#allocation8 + $0x58] sm:$0xff]
        %v442 = vld [vmem:[#allocation8 + $0x60] sm:$0xff]
        %v443 = vld [vmem:[#allocation8 + $0x68] sm:$0xff]
        %v444 = vld [vmem:[#allocation8 + $0x70] sm:$0xff]
        %v445 = vld [vmem:[#allocation8 + $0x78] sm:$0xff]
        %v446 = vld [vmem:[#allocation8 + $0x80] sm:$0xff]
        %v447 = vld [vmem:[#allocation8 + $0x88] sm:$0xff]
        %v448 = vld [vmem:[#allocation8 + $0x90] sm:$0xff]
        %v449 = vld [vmem:[#allocation8 + $0x98] sm:$0xff]
        %v450 = vld [vmem:[#allocation8 + $0xa0] sm:$0xff]
        %v451 = vld [vmem:[#allocation8 + $0xa8] sm:$0xff]
        %v452 = vld [vmem:[#allocation8 + $0xb0] sm:$0xff]
        %v453 = vld [vmem:[#allocation8 + $0xb8] sm:$0xff]
        %v454 = vld [vmem:[#allocation8 + $0xc0] sm:$0xff]
        %v455 = vld [vmem:[#allocation8 + $0xc8] sm:$0xff]
        %v456 = vld [vmem:[#allocation8 + $0xd0] sm:$0xff]
        %v457 = vld [vmem:[#allocation8 + $0xd8] sm:$0xff]
        %v458 = vld [vmem:[#allocation8 + $0xe0] sm:$0xff]
        %v459 = vld [vmem:[#allocation8 + $0xe8] sm:$0xff]
        %v460 = vld [vmem:[#allocation8 + $0xf0] sm:$0xff]
        %v461 = vld [vmem:[#allocation8 + $0xf8] sm:$0xff]
        %v462 = vld [vmem:[%s3] sm:$0x3]
        %v464 = vlaneseq
        %v465 = vshrl.u32 %v464, 7
        %v466 = vsub.s32 0, %v465
        %v467 = vrot.slane %v462, %v466
        %v468 = vlaneseq
        %v469 = vshrl.u32 %v468, 7
        %v470 = vsub.s32 1, %v469
        %v471 = vrot.slane %v462, %v470
        %474 = vmatprep.subr.mxu0 %v431
        %475 = vmatpush1.msra.mxu0 %v430
        %476 = vmatprep.subr.mxu0 %v433
        %477 = vmatpush1.msra.mxu0 %v432
        %478 = vmatprep.subr.mxu0 %v435
        %479 = vmatpush1.msra.mxu0 %v434
        %480 = vmatprep.subr.mxu0 %v437
        %481 = vmatpush1.msra.mxu0 %v436
        %482 = vmatprep.subr.mxu0 %v439
        %483 = vmatpush1.msra.mxu0 %v438
        %484 = vmatprep.subr.mxu0 %v441
        %485 = vmatpush1.msra.mxu0 %v440
        %486 = vmatprep.subr.mxu0 %v443
        %487 = vmatpush1.msra.mxu0 %v442
        %488 = vmatprep.subr.mxu0 %v445
        %489 = vmatpush1.msra.mxu0 %v444
        %490 = vmatprep.subr.mxu0 %v447
        %491 = vmatpush1.msra.mxu0 %v446
        %492 = vmatprep.subr.mxu0 %v449
        %493 = vmatpush1.msra.mxu0 %v448
        %494 = vmatprep.subr.mxu0 %v451
        %495 = vmatpush1.msra.mxu0 %v450
        %496 = vmatprep.subr.mxu0 %v453
        %497 = vmatpush1.msra.mxu0 %v452
        %498 = vmatprep.subr.mxu0 %v455
        %499 = vmatpush1.msra.mxu0 %v454
        %500 = vmatprep.subr.mxu0 %v457
        %501 = vmatpush1.msra.mxu0 %v456
        %502 = vmatprep.subr.mxu0 %v459
        %503 = vmatpush1.msra.mxu0 %v458
        %504 = vmatprep.subr.mxu0 %v461
        %505 = vmatpush1.msra.mxu0 %v460
        %506 = vmatprep.subr.mxu0 0.0
        %507 = vmatpush1.msra.mxu0 0.0
        %508 = vmatprep.subr.mxu0 0.0
        %509 = vmatpush1.msra.mxu0 0.0
        %510 = vmatprep.subr.mxu0 0.0
        %511 = vmatpush1.msra.mxu0 0.0
        %512 = vmatprep.subr.mxu0 0.0
        %513 = vmatpush1.msra.mxu0 0.0
        %514 = vmatprep.subr.mxu0 0.0
        %515 = vmatpush1.msra.mxu0 0.0
        %516 = vmatprep.subr.mxu0 0.0
        %517 = vmatpush1.msra.mxu0 0.0
        %518 = vmatprep.subr.mxu0 0.0
        %519 = vmatpush1.msra.mxu0 0.0
        %520 = vmatprep.subr.mxu0 0.0
        %521 = vmatpush1.msra.mxu0 0.0
        %522 = vmatprep.subr.mxu0 0.0
        %523 = vmatpush1.msra.mxu0 0.0
        %524 = vmatprep.subr.mxu0 0.0
        %525 = vmatpush1.msra.mxu0 0.0
        %526 = vmatprep.subr.mxu0 0.0
        %527 = vmatpush1.msra.mxu0 0.0
        %528 = vmatprep.subr.mxu0 0.0
        %529 = vmatpush1.msra.mxu0 0.0
        %530 = vmatprep.subr.mxu0 0.0
        %531 = vmatpush1.msra.mxu0 0.0
        %532 = vmatprep.subr.mxu0 0.0
        %533 = vmatpush1.msra.mxu0 0.0
        %534 = vmatprep.subr.mxu0 0.0
        %535 = vmatpush1.msra.mxu0 0.0
        %536 = vmatprep.subr.mxu0 0.0
        %537 = vmatpush1.msra.mxu0 0.0
        %538 = vmatprep.mubr.f32.mxu0 0.0
        %539 = vmatmul.mubr.f32.gmra.mrb[0].mxu0 %v398
        %v540 = vpop.f32.mrb[0].mxu0
        %v541 = vadd.f32 %v467, %v540
        %v542 = vpop.f32.mrb[0].mxu0
        %v543 = vadd.f32 %v471, %v542
        %544 = vmatprep.mubr.f32.mxu0 0.0
        %545 = vmatmul.mubr.f32.gmra.mrb[0].mxu0 %v399
        %v546 = vpop.f32.mrb[0].mxu0
        %v547 = vadd.f32 %v467, %v546
        %v548 = vpop.f32.mrb[0].mxu0
        %v549 = vadd.f32 %v471, %v548
        %550 = vmatprep.mubr.f32.mxu0 0.0
        %551 = vmatmul.mubr.f32.gmra.mrb[0].mxu0 %v400
        %v552 = vpop.f32.mrb[0].mxu0
        %v553 = vadd.f32 %v467, %v552
        %v554 = vpop.f32.mrb[0].mxu0
        %v555 = vadd.f32 %v471, %v554
        %556 = vmatprep.mubr.f32.mxu0 0.0
        %557 = vmatmul.mubr.f32.gmra.mrb[0].mxu0 %v401
        %v558 = vpop.f32.mrb[0].mxu0
        %v559 = vadd.f32 %v467, %v558
        %v560 = vpop.f32.mrb[0].mxu0
        %v561 = vadd.f32 %v471, %v560
        %562 = vmatprep.mubr.f32.mxu0 0.0
        %563 = vmatmul.mubr.f32.gmra.mrb[0].mxu0 %v402
        %v564 = vpop.f32.mrb[0].mxu0
        %v565 = vadd.f32 %v467, %v564
        %v566 = vpop.f32.mrb[0].mxu0
        %v567 = vadd.f32 %v471, %v566
        %568 = vmatprep.mubr.f32.mxu0 0.0
        %569 = vmatmul.mubr.f32.gmra.mrb[0].mxu0 %v403
        %v570 = vpop.f32.mrb[0].mxu0
        %v571 = vadd.f32 %v467, %v570
        %v572 = vpop.f32.mrb[0].mxu0
        %v573 = vadd.f32 %v471, %v572
        %574 = vmatprep.mubr.f32.mxu0 0.0
        %575 = vmatmul.mubr.f32.gmra.mrb[0].mxu0 %v404
        %v576 = vpop.f32.mrb[0].mxu0
        %v577 = vadd.f32 %v467, %v576
        %v578 = vpop.f32.mrb[0].mxu0
        %v579 = vadd.f32 %v471, %v578
        %580 = vmatprep.mubr.f32.mxu0 0.0
        %581 = vmatmul.mubr.f32.gmra.mrb[0].mxu0 %v405
        %v582 = vpop.f32.mrb[0].mxu0
        %v583 = vadd.f32 %v467, %v582
        %v584 = vpop.f32.mrb[0].mxu0
        %v585 = vadd.f32 %v471, %v584
        %586 = vmatprep.mubr.f32.mxu0 0.0
        %587 = vmatmul.mubr.f32.gmra.mrb[0].mxu0 %v406
        %v588 = vpop.f32.mrb[0].mxu0
        %v589 = vadd.f32 %v467, %v588
        %v590 = vpop.f32.mrb[0].mxu0
        %v591 = vadd.f32 %v471, %v590
        %592 = vmatprep.mubr.f32.mxu0 0.0
        %593 = vmatmul.mubr.f32.gmra.mrb[0].mxu0 %v407
        %v594 = vpop.f32.mrb[0].mxu0
        %v595 = vadd.f32 %v467, %v594
        %v596 = vpop.f32.mrb[0].mxu0
        %v597 = vadd.f32 %v471, %v596
        %598 = vmatprep.mubr.f32.mxu0 0.0
        %599 = vmatmul.mubr.f32.gmra.mrb[0].mxu0 %v408
        %v600 = vpop.f32.mrb[0].mxu0
        %v601 = vadd.f32 %v467, %v600
        %v602 = vpop.f32.mrb[0].mxu0
        %v603 = vadd.f32 %v471, %v602
        %604 = vmatprep.mubr.f32.mxu0 0.0
        %605 = vmatmul.mubr.f32.gmra.mrb[0].mxu0 %v409
        %v606 = vpop.f32.mrb[0].mxu0
        %v607 = vadd.f32 %v467, %v606
        %v608 = vpop.f32.mrb[0].mxu0
        %v609 = vadd.f32 %v471, %v608
        %610 = vmatprep.mubr.f32.mxu0 0.0
        %611 = vmatmul.mubr.f32.gmra.mrb[0].mxu0 %v410
        %v612 = vpop.f32.mrb[0].mxu0
        %v613 = vadd.f32 %v467, %v612
        %v614 = vpop.f32.mrb[0].mxu0
        %v615 = vadd.f32 %v471, %v614
        %616 = vmatprep.mubr.f32.mxu0 0.0
        %617 = vmatmul.mubr.f32.gmra.mrb[0].mxu0 %v411
        %v618 = vpop.f32.mrb[0].mxu0
        %v619 = vadd.f32 %v467, %v618
        %v620 = vpop.f32.mrb[0].mxu0
        %v621 = vadd.f32 %v471, %v620
        %622 = vmatprep.mubr.f32.mxu0 0.0
        %623 = vmatmul.mubr.f32.gmra.mrb[0].mxu0 %v412
        %v624 = vpop.f32.mrb[0].mxu0
        %v625 = vadd.f32 %v467, %v624
        %v626 = vpop.f32.mrb[0].mxu0
        %v627 = vadd.f32 %v471, %v626
        %628 = vmatprep.mubr.f32.mxu0 0.0
        %629 = vmatmul.mubr.f32.gmra.mrb[0].mxu0 %v413
        %v630 = vpop.f32.mrb[0].mxu0
        %v631 = vadd.f32 %v467, %v630
        %v632 = vpop.f32.mrb[0].mxu0
        %v633 = vadd.f32 %v471, %v632
        %634 = vmatprep.mubr.f32.mxu0 0.0
        %635 = vmatmul.mubr.f32.gmra.mrb[0].mxu0 %v414
        %v636 = vpop.f32.mrb[0].mxu0
        %v637 = vadd.f32 %v467, %v636
        %v638 = vpop.f32.mrb[0].mxu0
        %v639 = vadd.f32 %v471, %v638
        %640 = vmatprep.mubr.f32.mxu0 0.0
        %641 = vmatmul.mubr.f32.gmra.mrb[0].mxu0 %v415
        %v642 = vpop.f32.mrb[0].mxu0
        %v643 = vadd.f32 %v467, %v642
        %v644 = vpop.f32.mrb[0].mxu0
        %v645 = vadd.f32 %v471, %v644
        %646 = vmatprep.mubr.f32.mxu0 0.0
        %647 = vmatmul.mubr.f32.gmra.mrb[0].mxu0 %v416
        %v648 = vpop.f32.mrb[0].mxu0
        %v649 = vadd.f32 %v467, %v648
        %v650 = vpop.f32.mrb[0].mxu0
        %v651 = vadd.f32 %v471, %v650
        %652 = vmatprep.mubr.f32.mxu0 0.0
        %653 = vmatmul.mubr.f32.gmra.mrb[0].mxu0 %v417
        %v654 = vpop.f32.mrb[0].mxu0
        %v655 = vadd.f32 %v467, %v654
        %v656 = vpop.f32.mrb[0].mxu0
        %v657 = vadd.f32 %v471, %v656
        %658 = vmatprep.mubr.f32.mxu0 0.0
        %659 = vmatmul.mubr.f32.gmra.mrb[0].mxu0 %v418
        %v660 = vpop.f32.mrb[0].mxu0
        %v661 = vadd.f32 %v467, %v660
        %v662 = vpop.f32.mrb[0].mxu0
        %v663 = vadd.f32 %v471, %v662
        %664 = vmatprep.mubr.f32.mxu0 0.0
        %665 = vmatmul.mubr.f32.gmra.mrb[0].mxu0 %v419
        %v666 = vpop.f32.mrb[0].mxu0
        %v667 = vadd.f32 %v467, %v666
        %v668 = vpop.f32.mrb[0].mxu0
        %v669 = vadd.f32 %v471, %v668
        %670 = vmatprep.mubr.f32.mxu0 0.0
        %671 = vmatmul.mubr.f32.gmra.mrb[0].mxu0 %v420
        %v672 = vpop.f32.mrb[0].mxu0
        %v673 = vadd.f32 %v467, %v672
        %v674 = vpop.f32.mrb[0].mxu0
        %v675 = vadd.f32 %v471, %v674
        %676 = vmatprep.mubr.f32.mxu0 0.0
        %677 = vmatmul.mubr.f32.gmra.mrb[0].mxu0 %v421
        %v678 = vpop.f32.mrb[0].mxu0
        %v679 = vadd.f32 %v467, %v678
        %v680 = vpop.f32.mrb[0].mxu0
        %v681 = vadd.f32 %v471, %v680
        %682 = vmatprep.mubr.f32.mxu0 0.0
        %683 = vmatmul.mubr.f32.gmra.mrb[0].mxu0 %v422
        %v684 = vpop.f32.mrb[0].mxu0
        %v685 = vadd.f32 %v467, %v684
        %v686 = vpop.f32.mrb[0].mxu0
        %v687 = vadd.f32 %v471, %v686
        %688 = vmatprep.mubr.f32.mxu0 0.0
        %689 = vmatmul.mubr.f32.gmra.mrb[0].mxu0 %v423
        %v690 = vpop.f32.mrb[0].mxu0
        %v691 = vadd.f32 %v467, %v690
        %v692 = vpop.f32.mrb[0].mxu0
        %v693 = vadd.f32 %v471, %v692
        %694 = vmatprep.mubr.f32.mxu0 0.0
        %695 = vmatmul.mubr.f32.gmra.mrb[0].mxu0 %v424
        %v696 = vpop.f32.mrb[0].mxu0
        %v697 = vadd.f32 %v467, %v696
        %v698 = vpop.f32.mrb[0].mxu0
        %v699 = vadd.f32 %v471, %v698
        %700 = vmatprep.mubr.f32.mxu0 0.0
        %701 = vmatmul.mubr.f32.gmra.mrb[0].mxu0 %v425
        %v702 = vpop.f32.mrb[0].mxu0
        %v703 = vadd.f32 %v467, %v702
        %v704 = vpop.f32.mrb[0].mxu0
        %v705 = vadd.f32 %v471, %v704
        %706 = vmatprep.mubr.f32.mxu0 0.0
        %707 = vmatmul.mubr.f32.gmra.mrb[0].mxu0 %v426
        %v708 = vpop.f32.mrb[0].mxu0
        %v709 = vadd.f32 %v467, %v708
        %v710 = vpop.f32.mrb[0].mxu0
        %v711 = vadd.f32 %v471, %v710
        %712 = vmatprep.mubr.f32.mxu0 0.0
        %713 = vmatmul.mubr.f32.gmra.mrb[0].mxu0 %v427
        %v714 = vpop.f32.mrb[0].mxu0
        %v715 = vadd.f32 %v467, %v714
        %v716 = vpop.f32.mrb[0].mxu0
        %v717 = vadd.f32 %v471, %v716
        %718 = vmatprep.mubr.f32.mxu0 0.0
        %719 = vmatmul.mubr.f32.gmra.mrb[0].mxu0 %v428
        %v720 = vpop.f32.mrb[0].mxu0
        %v721 = vadd.f32 %v467, %v720
        %v722 = vpop.f32.mrb[0].mxu0
        %v723 = vadd.f32 %v471, %v722
        %724 = vmatprep.mubr.f32.mxu0 0.0
        %725 = vmatmul.mubr.f32.gmra.mrb[0].mxu0 %v429
        %v726 = vpop.f32.mrb[0].mxu0
        %v727 = vadd.f32 %v467, %v726
        %v728 = vpop.f32.mrb[0].mxu0
        %v729 = vadd.f32 %v471, %v728
        %730 = vdwg.mxu0
        %v731 = vpack.c.bf16 %v549, %v543
        %v732 = vpack.c.bf16 %v561, %v555
        %v733 = vpack.c.bf16 %v573, %v567
        %v734 = vpack.c.bf16 %v585, %v579
        %v735 = vpack.c.bf16 %v597, %v591
        %v736 = vpack.c.bf16 %v609, %v603
        %v737 = vpack.c.bf16 %v621, %v615
        %v738 = vpack.c.bf16 %v633, %v627
        %v739 = vpack.c.bf16 %v645, %v639
        %v740 = vpack.c.bf16 %v657, %v651
        %v741 = vpack.c.bf16 %v669, %v663
        %v742 = vpack.c.bf16 %v681, %v675
        %v743 = vpack.c.bf16 %v693, %v687
        %v744 = vpack.c.bf16 %v705, %v699
        %v745 = vpack.c.bf16 %v717, %v711
        %v746 = vpack.c.bf16 %v729, %v723
        %v763 = vunpack.c.l.b16 %v731
        %v764 = vunpack.c.h.b16 %v731
        %v765 = vunpack.c.l.b16 %v732
        %v766 = vunpack.c.h.b16 %v732
        %v767 = vunpack.c.l.b16 %v733
        %v768 = vunpack.c.h.b16 %v733
        %v769 = vunpack.c.l.b16 %v734
        %v770 = vunpack.c.h.b16 %v734
        %v771 = vunpack.c.l.b16 %v735
        %v772 = vunpack.c.h.b16 %v735
        %v773 = vunpack.c.l.b16 %v736
        %v774 = vunpack.c.h.b16 %v736
        %v775 = vunpack.c.l.b16 %v737
        %v776 = vunpack.c.h.b16 %v737
        %v777 = vunpack.c.l.b16 %v738
        %v778 = vunpack.c.h.b16 %v738
        %v779 = vunpack.c.l.b16 %v739
        %v780 = vunpack.c.h.b16 %v739
        %v781 = vunpack.c.l.b16 %v740
        %v782 = vunpack.c.h.b16 %v740
        %v783 = vunpack.c.l.b16 %v741
        %v784 = vunpack.c.h.b16 %v741
        %v785 = vunpack.c.l.b16 %v742
        %v786 = vunpack.c.h.b16 %v742
        %v787 = vunpack.c.l.b16 %v743
        %v788 = vunpack.c.h.b16 %v743
        %v789 = vunpack.c.l.b16 %v744
        %v790 = vunpack.c.h.b16 %v744
        %v791 = vunpack.c.l.b16 %v745
        %v792 = vunpack.c.h.b16 %v745
        %v793 = vunpack.c.l.b16 %v746
        %v794 = vunpack.c.h.b16 %v746
        %v795 = vpack.c.b16 %v763, %v763
        %v796 = vpack.c.b16 %v764, %v764
        %v797 = vpack.c.b16 %v765, %v765
        %v798 = vpack.c.b16 %v766, %v766
        %v799 = vpack.c.b16 %v767, %v767
        %v800 = vpack.c.b16 %v768, %v768
        %v801 = vpack.c.b16 %v769, %v769
        %v802 = vpack.c.b16 %v770, %v770
        %v803 = vpack.c.b16 %v771, %v771
        %v804 = vpack.c.b16 %v772, %v772
        %v805 = vpack.c.b16 %v773, %v773
        %v806 = vpack.c.b16 %v774, %v774
        %v807 = vpack.c.b16 %v775, %v775
        %v808 = vpack.c.b16 %v776, %v776
        %v809 = vpack.c.b16 %v777, %v777
        %v810 = vpack.c.b16 %v778, %v778
        %v811 = vpack.c.b16 %v779, %v779
        %v812 = vpack.c.b16 %v780, %v780
        %v813 = vpack.c.b16 %v781, %v781
        %v814 = vpack.c.b16 %v782, %v782
        %v815 = vpack.c.b16 %v783, %v783
        %v816 = vpack.c.b16 %v784, %v784
        %v817 = vpack.c.b16 %v785, %v785
        %v818 = vpack.c.b16 %v786, %v786
        %v819 = vpack.c.b16 %v787, %v787
        %v820 = vpack.c.b16 %v788, %v788
        %v821 = vpack.c.b16 %v789, %v789
        %v822 = vpack.c.b16 %v790, %v790
        %v823 = vpack.c.b16 %v791, %v791
        %v824 = vpack.c.b16 %v792, %v792
        %v825 = vpack.c.b16 %v793, %v793
        %v826 = vpack.c.b16 %v794, %v794
        %859 = vst [vmem:[%s362] sm:$0xf] %v795
        %860 = vst [vmem:[%s362 + $0x4] sm:$0xf] %v796
        %861 = vst [vmem:[%s362 + $0x8] sm:$0xf] %v797
        %862 = vst [vmem:[%s362 + $0xc] sm:$0xf] %v798
        %863 = vst [vmem:[%s362 + $0x10] sm:$0xf] %v799
        %864 = vst [vmem:[%s362 + $0x14] sm:$0xf] %v800
        %865 = vst [vmem:[%s362 + $0x18] sm:$0xf] %v801
        %866 = vst [vmem:[%s362 + $0x1c] sm:$0xf] %v802
        %867 = vst [vmem:[%s362 + $0x20] sm:$0xf] %v803
        %868 = vst [vmem:[%s362 + $0x24] sm:$0xf] %v804
        %869 = vst [vmem:[%s362 + $0x28] sm:$0xf] %v805
        %870 = vst [vmem:[%s362 + $0x2c] sm:$0xf] %v806
        %871 = vst [vmem:[%s362 + $0x30] sm:$0xf] %v807
        %872 = vst [vmem:[%s362 + $0x34] sm:$0xf] %v808
        %873 = vst [vmem:[%s362 + $0x38] sm:$0xf] %v809
        %874 = vst [vmem:[%s362 + $0x3c] sm:$0xf] %v810
        %875 = vst [vmem:[%s362 + $0x40] sm:$0xf] %v811
        %876 = vst [vmem:[%s362 + $0x44] sm:$0xf] %v812
        %877 = vst [vmem:[%s362 + $0x48] sm:$0xf] %v813
        %878 = vst [vmem:[%s362 + $0x4c] sm:$0xf] %v814
        %879 = vst [vmem:[%s362 + $0x50] sm:$0xf] %v815
        %880 = vst [vmem:[%s362 + $0x54] sm:$0xf] %v816
        %881 = vst [vmem:[%s362 + $0x58] sm:$0xf] %v817
        %882 = vst [vmem:[%s362 + $0x5c] sm:$0xf] %v818
        %883 = vst [vmem:[%s362 + $0x60] sm:$0xf] %v819
        %884 = vst [vmem:[%s362 + $0x64] sm:$0xf] %v820
        %885 = vst [vmem:[%s362 + $0x68] sm:$0xf] %v821
        %886 = vst [vmem:[%s362 + $0x6c] sm:$0xf] %v822
        %887 = vst [vmem:[%s362 + $0x70] sm:$0xf] %v823
        %888 = vst [vmem:[%s362 + $0x74] sm:$0xf] %v824
        %889 = vst [vmem:[%s362 + $0x78] sm:$0xf] %v825
        %890 = vst [vmem:[%s362 + $0x7c] sm:$0xf] %v826
        %v891 = vld [vmem:[#allocation2] sm:$0xff]
        %v892 = vld [vmem:[#allocation2 + $0x8] sm:$0xff]
        %v893 = vld [vmem:[#allocation2 + $0x10] sm:$0xff]
        %v894 = vld [vmem:[#allocation2 + $0x18] sm:$0xff]
        %v895 = vld [vmem:[#allocation2 + $0x20] sm:$0xff]
        %v896 = vld [vmem:[#allocation2 + $0x28] sm:$0xff]
        %v897 = vld [vmem:[#allocation2 + $0x30] sm:$0xff]
        %v898 = vld [vmem:[#allocation2 + $0x38] sm:$0xff]
        %v899 = vld [vmem:[#allocation2 + $0x40] sm:$0xff]
        %v900 = vld [vmem:[#allocation2 + $0x48] sm:$0xff]
        %v901 = vld [vmem:[#allocation2 + $0x50] sm:$0xff]
        %v902 = vld [vmem:[#allocation2 + $0x58] sm:$0xff]
        %v903 = vld [vmem:[#allocation2 + $0x60] sm:$0xff]
        %v904 = vld [vmem:[#allocation2 + $0x68] sm:$0xff]
        %v905 = vld [vmem:[#allocation2 + $0x70] sm:$0xff]
        %v906 = vld [vmem:[#allocation2 + $0x78] sm:$0xff]
        %v907 = vld [vmem:[%s323] sm:$0xff]
        %v908 = vld [vmem:[%s323 + $0x8] sm:$0xff]
        %v909 = vld [vmem:[%s323 + $0x10] sm:$0xff]
        %v910 = vld [vmem:[%s323 + $0x18] sm:$0xff]
        %v911 = vld [vmem:[%s323 + $0x20] sm:$0xff]
        %v912 = vld [vmem:[%s323 + $0x28] sm:$0xff]
        %v913 = vld [vmem:[%s323 + $0x30] sm:$0xff]
        %v914 = vld [vmem:[%s323 + $0x38] sm:$0xff]
        %v915 = vunpack.c.l.s8.bf16 %v907
        %v916 = vunpack.c.l.s8.bf16 %v908
        %v917 = vunpack.c.h.s8.bf16 %v907
        %v918 = vunpack.c.h.s8.bf16 %v908
        %v919 = vunpack.c.l.s8.bf16 %v909
        %v920 = vunpack.c.l.s8.bf16 %v910
        %v921 = vunpack.c.h.s8.bf16 %v909
        %v922 = vunpack.c.h.s8.bf16 %v910
        %v923 = vunpack.c.l.s8.bf16 %v911
        %v924 = vunpack.c.l.s8.bf16 %v912
        %v925 = vunpack.c.h.s8.bf16 %v911
        %v926 = vunpack.c.h.s8.bf16 %v912
        %v927 = vunpack.c.l.s8.bf16 %v913
        %v928 = vunpack.c.l.s8.bf16 %v914
        %v929 = vunpack.c.h.s8.bf16 %v913
        %v930 = vunpack.c.h.s8.bf16 %v914
        %v931 = vpack.c.bf16 %v547, %v541
        %v932 = vpack.c.bf16 %v559, %v553
        %v933 = vpack.c.bf16 %v571, %v565
        %v934 = vpack.c.bf16 %v583, %v577
        %v935 = vpack.c.bf16 %v595, %v589
        %v936 = vpack.c.bf16 %v607, %v601
        %v937 = vpack.c.bf16 %v619, %v613
        %v938 = vpack.c.bf16 %v631, %v625
        %v939 = vpack.c.bf16 %v643, %v637
        %v940 = vpack.c.bf16 %v655, %v649
        %v941 = vpack.c.bf16 %v667, %v661
        %v942 = vpack.c.bf16 %v679, %v673
        %v943 = vpack.c.bf16 %v691, %v685
        %v944 = vpack.c.bf16 %v703, %v697
        %v945 = vpack.c.bf16 %v715, %v709
        %v946 = vpack.c.bf16 %v727, %v721
        %947 = vmatprep.subr.bf16.mxu0 0
        %948 = vmatpush1.bf16.msra.mxu0 %v931
        %949 = vmatprep.subr.bf16.mxu0 0
        %950 = vmatpush1.bf16.msra.mxu0 %v932
        %951 = vmatprep.subr.bf16.mxu0 0
        %952 = vmatpush1.bf16.msra.mxu0 %v933
        %953 = vmatprep.subr.bf16.mxu0 0
        %954 = vmatpush1.bf16.msra.mxu0 %v934
        %955 = vmatprep.subr.bf16.mxu0 0
        %956 = vmatpush1.bf16.msra.mxu0 %v935
        %957 = vmatprep.subr.bf16.mxu0 0
        %958 = vmatpush1.bf16.msra.mxu0 %v936
        %959 = vmatprep.subr.bf16.mxu0 0
        %960 = vmatpush1.bf16.msra.mxu0 %v937
        %961 = vmatprep.subr.bf16.mxu0 0
        %962 = vmatpush1.bf16.msra.mxu0 %v938
        %963 = vmatprep.subr.bf16.mxu0 0
        %964 = vmatpush1.bf16.msra.mxu0 %v939
        %965 = vmatprep.subr.bf16.mxu0 0
        %966 = vmatpush1.bf16.msra.mxu0 %v940
        %967 = vmatprep.subr.bf16.mxu0 0
        %968 = vmatpush1.bf16.msra.mxu0 %v941
        %969 = vmatprep.subr.bf16.mxu0 0
        %970 = vmatpush1.bf16.msra.mxu0 %v942
        %971 = vmatprep.subr.bf16.mxu0 0
        %972 = vmatpush1.bf16.msra.mxu0 %v943
        %973 = vmatprep.subr.bf16.mxu0 0
        %974 = vmatpush1.bf16.msra.mxu0 %v944
        %975 = vmatprep.subr.bf16.mxu0 0
        %976 = vmatpush1.bf16.msra.mxu0 %v945
        %977 = vmatprep.subr.bf16.mxu0 0
        %978 = vmatpush1.bf16.msra.mxu0 %v946
        %979 = vmatprep.mubr.bf16.mxu0 %v916
        %980 = vmatmul.mubr.bf16.gmra.mrb[0].mxu0 %v915
        %v981 = vpop.f32.mrb[0].mxu0
        %v982 = vadd.f32 0.0, %v981
        %v983 = vpop.f32.mrb[0].mxu0
        %v984 = vpop.f32.mrb[0].mxu0
        %v985 = vadd.f32 0.0, %v984
        %v986 = vpop.f32.mrb[0].mxu0
        %987 = vmatprep.mubr.bf16.mxu0 %v918
        %988 = vmatmul.mubr.bf16.gmra.mrb[0].mxu0 %v917
        %v989 = vpop.f32.mrb[0].mxu0
        %v990 = vadd.f32 0.0, %v989
        %v991 = vpop.f32.mrb[0].mxu0
        %v992 = vpop.f32.mrb[0].mxu0
        %v993 = vadd.f32 0.0, %v992
        %v994 = vpop.f32.mrb[0].mxu0
        %995 = vmatprep.mubr.bf16.mxu0 %v920
        %996 = vmatmul.mubr.bf16.gmra.mrb[0].mxu0 %v919
        %v997 = vpop.f32.mrb[0].mxu0
        %v998 = vadd.f32 0.0, %v997
        %v999 = vpop.f32.mrb[0].mxu0
        %v1000 = vpop.f32.mrb[0].mxu0
        %v1001 = vadd.f32 0.0, %v1000
        %v1002 = vpop.f32.mrb[0].mxu0
        %1003 = vmatprep.mubr.bf16.mxu0 %v922
        %1004 = vmatmul.mubr.bf16.gmra.mrb[0].mxu0 %v921
        %v1005 = vpop.f32.mrb[0].mxu0
        %v1006 = vadd.f32 0.0, %v1005
        %v1007 = vpop.f32.mrb[0].mxu0
        %v1008 = vpop.f32.mrb[0].mxu0
        %v1009 = vadd.f32 0.0, %v1008
        %v1010 = vpop.f32.mrb[0].mxu0
        %1011 = vmatprep.mubr.bf16.mxu0 %v924
        %1012 = vmatmul.mubr.bf16.gmra.mrb[0].mxu0 %v923
        %v1013 = vpop.f32.mrb[0].mxu0
        %v1014 = vadd.f32 0.0, %v1013
        %v1015 = vpop.f32.mrb[0].mxu0
        %v1016 = vpop.f32.mrb[0].mxu0
        %v1017 = vadd.f32 0.0, %v1016
        %v1018 = vpop.f32.mrb[0].mxu0
        %1019 = vmatprep.mubr.bf16.mxu0 %v926
        %1020 = vmatmul.mubr.bf16.gmra.mrb[0].mxu0 %v925
        %v1021 = vpop.f32.mrb[0].mxu0
        %v1022 = vadd.f32 0.0, %v1021
        %v1023 = vpop.f32.mrb[0].mxu0
        %v1024 = vpop.f32.mrb[0].mxu0
        %v1025 = vadd.f32 0.0, %v1024
        %v1026 = vpop.f32.mrb[0].mxu0
        %1027 = vmatprep.mubr.bf16.mxu0 %v928
        %1028 = vmatmul.mubr.bf16.gmra.mrb[0].mxu0 %v927
        %v1029 = vpop.f32.mrb[0].mxu0
        %v1030 = vadd.f32 0.0, %v1029
        %v1031 = vpop.f32.mrb[0].mxu0
        %v1032 = vpop.f32.mrb[0].mxu0
        %v1033 = vadd.f32 0.0, %v1032
        %v1034 = vpop.f32.mrb[0].mxu0
        %1035 = vmatprep.mubr.bf16.mxu0 %v930
        %1036 = vmatmul.mubr.bf16.gmra.mrb[0].mxu0 %v929
        %v1037 = vpop.f32.mrb[0].mxu0
        %v1038 = vadd.f32 0.0, %v1037
        %v1039 = vpop.f32.mrb[0].mxu0
        %v1040 = vpop.f32.mrb[0].mxu0
        %v1041 = vadd.f32 0.0, %v1040
        %v1042 = vpop.f32.mrb[0].mxu0
        %1043 = vdwg.mxu0
        %v1044 = vadd.f32 %v891, %v982
        %v1045 = vadd.f32 %v892, %v985
        %v1046 = vadd.f32 %v893, %v990
        %v1047 = vadd.f32 %v894, %v993
        %v1048 = vadd.f32 %v895, %v998
        %v1049 = vadd.f32 %v896, %v1001
        %v1050 = vadd.f32 %v897, %v1006
        %v1051 = vadd.f32 %v898, %v1009
        %v1052 = vadd.f32 %v899, %v1014
        %v1053 = vadd.f32 %v900, %v1017
        %v1054 = vadd.f32 %v901, %v1022
        %v1055 = vadd.f32 %v902, %v1025
        %v1056 = vadd.f32 %v903, %v1030
        %v1057 = vadd.f32 %v904, %v1033
        %v1058 = vadd.f32 %v905, %v1038
        %v1059 = vadd.f32 %v906, %v1041
        %1060 = vst [vmem:[#allocation2] sm:$0xff] %v1044
        %1061 = vst [vmem:[#allocation2 + $0x8] sm:$0xff] %v1045
        %1062 = vst [vmem:[#allocation2 + $0x10] sm:$0xff] %v1046
        %1063 = vst [vmem:[#allocation2 + $0x18] sm:$0xff] %v1047
        %1064 = vst [vmem:[#allocation2 + $0x20] sm:$0xff] %v1048
        %1065 = vst [vmem:[#allocation2 + $0x28] sm:$0xff] %v1049
        %1066 = vst [vmem:[#allocation2 + $0x30] sm:$0xff] %v1050
        %1067 = vst [vmem:[#allocation2 + $0x38] sm:$0xff] %v1051
        %1068 = vst [vmem:[#allocation2 + $0x40] sm:$0xff] %v1052
        %1069 = vst [vmem:[#allocation2 + $0x48] sm:$0xff] %v1053
        %1070 = vst [vmem:[#allocation2 + $0x50] sm:$0xff] %v1054
        %1071 = vst [vmem:[#allocation2 + $0x58] sm:$0xff] %v1055
        %1072 = vst [vmem:[#allocation2 + $0x60] sm:$0xff] %v1056
        %1073 = vst [vmem:[#allocation2 + $0x68] sm:$0xff] %v1057
        %1074 = vst [vmem:[#allocation2 + $0x70] sm:$0xff] %v1058
        %1075 = vst [vmem:[#allocation2 + $0x78] sm:$0xff] %v1059
        // Predicated region
        $region61: #{tpu_custom_call.1} parent=39 // pred_check
          %p1076 = pneg %p378
        $region62: #{tpu_custom_call.1} parent=39 // pred_check_branch
          %1078 = sbr.rel (%p1076) target = $region64
        $region63: #{tpu_custom_call.1} parent=39 // pred_region
          %v1079 = vld [vmem:[#allocation2] sm:$0xff]
          %v1080 = vld [vmem:[#allocation2 + $0x8] sm:$0xff]
          %v1081 = vld [vmem:[#allocation2 + $0x10] sm:$0xff]
          %v1082 = vld [vmem:[#allocation2 + $0x18] sm:$0xff]
          %v1083 = vld [vmem:[#allocation2 + $0x20] sm:$0xff]
          %v1084 = vld [vmem:[#allocation2 + $0x28] sm:$0xff]
          %v1085 = vld [vmem:[#allocation2 + $0x30] sm:$0xff]
          %v1086 = vld [vmem:[#allocation2 + $0x38] sm:$0xff]
          %v1087 = vld [vmem:[#allocation2 + $0x40] sm:$0xff]
          %v1088 = vld [vmem:[#allocation2 + $0x48] sm:$0xff]
          %v1089 = vld [vmem:[#allocation2 + $0x50] sm:$0xff]
          %v1090 = vld [vmem:[#allocation2 + $0x58] sm:$0xff]
          %v1091 = vld [vmem:[#allocation2 + $0x60] sm:$0xff]
          %v1092 = vld [vmem:[#allocation2 + $0x68] sm:$0xff]
          %v1093 = vld [vmem:[#allocation2 + $0x70] sm:$0xff]
          %v1094 = vld [vmem:[#allocation2 + $0x78] sm:$0xff]
          %v1095 = vpack.c.bf16 %v1080, %v1079
          %v1096 = vpack.c.bf16 %v1082, %v1081
          %v1097 = vpack.c.bf16 %v1084, %v1083
          %v1098 = vpack.c.bf16 %v1086, %v1085
          %v1099 = vpack.c.bf16 %v1088, %v1087
          %v1100 = vpack.c.bf16 %v1090, %v1089
          %v1101 = vpack.c.bf16 %v1092, %v1091
          %v1102 = vpack.c.bf16 %v1094, %v1093
          %v1103 = vld [vmem:[#allocation9] sm:$0xf]
          %v1104 = vld [vmem:[#allocation9 + $0x4] sm:$0xf]
          %v1105 = vld [vmem:[#allocation9 + $0x8] sm:$0xf]
          %v1106 = vld [vmem:[#allocation9 + $0xc] sm:$0xf]
          %v1107 = vld [vmem:[#allocation9 + $0x10] sm:$0xf]
          %v1108 = vld [vmem:[#allocation9 + $0x14] sm:$0xf]
          %v1109 = vld [vmem:[#allocation9 + $0x18] sm:$0xf]
          %v1110 = vld [vmem:[#allocation9 + $0x1c] sm:$0xf]
          %v1111 = vld [vmem:[#allocation9 + $0x20] sm:$0xf]
          %v1112 = vld [vmem:[#allocation9 + $0x24] sm:$0xf]
          %v1113 = vld [vmem:[#allocation9 + $0x28] sm:$0xf]
          %v1114 = vld [vmem:[#allocation9 + $0x2c] sm:$0xf]
          %v1115 = vld [vmem:[#allocation9 + $0x30] sm:$0xf]
          %v1116 = vld [vmem:[#allocation9 + $0x34] sm:$0xf]
          %v1117 = vld [vmem:[#allocation9 + $0x38] sm:$0xf]
          %v1118 = vld [vmem:[#allocation9 + $0x3c] sm:$0xf]
          %v1135 = vunpack.c.l.b16 %v1103
          %v1136 = vunpack.c.l.b16 %v1104
          %v1137 = vunpack.c.l.b16 %v1105
          %v1138 = vunpack.c.l.b16 %v1106
          %v1139 = vunpack.c.l.b16 %v1107
          %v1140 = vunpack.c.l.b16 %v1108
          %v1141 = vunpack.c.l.b16 %v1109
          %v1142 = vunpack.c.l.b16 %v1110
          %v1143 = vunpack.c.l.b16 %v1111
          %v1144 = vunpack.c.l.b16 %v1112
          %v1145 = vunpack.c.l.b16 %v1113
          %v1146 = vunpack.c.l.b16 %v1114
          %v1147 = vunpack.c.l.b16 %v1115
          %v1148 = vunpack.c.l.b16 %v1116
          %v1149 = vunpack.c.l.b16 %v1117
          %v1150 = vunpack.c.l.b16 %v1118
          %v1151 = vpack.c.b16 %v1136, %v1135
          %v1152 = vpack.c.b16 %v1138, %v1137
          %v1153 = vpack.c.b16 %v1140, %v1139
          %v1154 = vpack.c.b16 %v1142, %v1141
          %v1155 = vpack.c.b16 %v1144, %v1143
          %v1156 = vpack.c.b16 %v1146, %v1145
          %v1157 = vpack.c.b16 %v1148, %v1147
          %v1158 = vpack.c.b16 %v1150, %v1149
          %1167 = vmatprep.subr.bf16.mxu0 0
          %1168 = vmatpush1.bf16.msra.mxu0 %v1151
          %1169 = vmatprep.subr.bf16.mxu0 0
          %1170 = vmatpush1.bf16.msra.mxu0 %v1152
          %1171 = vmatprep.subr.bf16.mxu0 0
          %1172 = vmatpush1.bf16.msra.mxu0 %v1153
          %1173 = vmatprep.subr.bf16.mxu0 0
          %1174 = vmatpush1.bf16.msra.mxu0 %v1154
          %1175 = vmatprep.subr.bf16.mxu0 0
          %1176 = vmatpush1.bf16.msra.mxu0 %v1155
          %1177 = vmatprep.subr.bf16.mxu0 0
          %1178 = vmatpush1.bf16.msra.mxu0 %v1156
          %1179 = vmatprep.subr.bf16.mxu0 0
          %1180 = vmatpush1.bf16.msra.mxu0 %v1157
          %1181 = vmatprep.subr.bf16.mxu0 0
          %1182 = vmatpush1.bf16.msra.mxu0 %v1158
          %1183 = vmatprep.subr.bf16.mxu0 0
          %1184 = vmatpush1.bf16.msra.mxu0 0
          %1185 = vmatprep.subr.bf16.mxu0 0
          %1186 = vmatpush1.bf16.msra.mxu0 0
          %1187 = vmatprep.subr.bf16.mxu0 0
          %1188 = vmatpush1.bf16.msra.mxu0 0
          %1189 = vmatprep.subr.bf16.mxu0 0
          %1190 = vmatpush1.bf16.msra.mxu0 0
          %1191 = vmatprep.subr.bf16.mxu0 0
          %1192 = vmatpush1.bf16.msra.mxu0 0
          %1193 = vmatprep.subr.bf16.mxu0 0
          %1194 = vmatpush1.bf16.msra.mxu0 0
          %1195 = vmatprep.subr.bf16.mxu0 0
          %1196 = vmatpush1.bf16.msra.mxu0 0
          %1197 = vmatprep.subr.bf16.mxu0 0
          %1198 = vmatpush1.bf16.msra.mxu0 0
          %1199 = vmatprep.mubr.bf16.mxu0 0
          %1200 = vmatmul.mubr.bf16.gmra.mrb[0].mxu0 %v1095
          %v1201 = vpop.f32.mrb[0].mxu0
          %v1202 = vadd.f32 0.0, %v1201
          %v1203 = vpop.f32.mrb[0].mxu0
          %v1204 = vpop.f32.mrb[0].mxu0
          %v1205 = vadd.f32 0.0, %v1204
          %v1206 = vpop.f32.mrb[0].mxu0
          %1207 = vmatprep.mubr.bf16.mxu0 0
          %1208 = vmatmul.mubr.bf16.gmra.mrb[0].mxu0 %v1096
          %v1209 = vpop.f32.mrb[0].mxu0
          %v1210 = vadd.f32 0.0, %v1209
          %v1211 = vpop.f32.mrb[0].mxu0
          %v1212 = vpop.f32.mrb[0].mxu0
          %v1213 = vadd.f32 0.0, %v1212
          %v1214 = vpop.f32.mrb[0].mxu0
          %1215 = vmatprep.mubr.bf16.mxu0 0
          %1216 = vmatmul.mubr.bf16.gmra.mrb[0].mxu0 %v1097
          %v1217 = vpop.f32.mrb[0].mxu0
          %v1218 = vadd.f32 0.0, %v1217
          %v1219 = vpop.f32.mrb[0].mxu0
          %v1220 = vpop.f32.mrb[0].mxu0
          %v1221 = vadd.f32 0.0, %v1220
          %v1222 = vpop.f32.mrb[0].mxu0
          %1223 = vmatprep.mubr.bf16.mxu0 0
          %1224 = vmatmul.mubr.bf16.gmra.mrb[0].mxu0 %v1098
          %v1225 = vpop.f32.mrb[0].mxu0
          %v1226 = vadd.f32 0.0, %v1225
          %v1227 = vpop.f32.mrb[0].mxu0
          %v1228 = vpop.f32.mrb[0].mxu0
          %v1229 = vadd.f32 0.0, %v1228
          %v1230 = vpop.f32.mrb[0].mxu0
          %1231 = vmatprep.mubr.bf16.mxu0 0
          %1232 = vmatmul.mubr.bf16.gmra.mrb[0].mxu0 %v1099
          %v1233 = vpop.f32.mrb[0].mxu0
          %v1234 = vadd.f32 0.0, %v1233
          %v1235 = vpop.f32.mrb[0].mxu0
          %v1236 = vpop.f32.mrb[0].mxu0
          %v1237 = vadd.f32 0.0, %v1236
          %v1238 = vpop.f32.mrb[0].mxu0
          %1239 = vmatprep.mubr.bf16.mxu0 0
          %1240 = vmatmul.mubr.bf16.gmra.mrb[0].mxu0 %v1100
          %v1241 = vpop.f32.mrb[0].mxu0
          %v1242 = vadd.f32 0.0, %v1241
          %v1243 = vpop.f32.mrb[0].mxu0
          %v1244 = vpop.f32.mrb[0].mxu0
          %v1245 = vadd.f32 0.0, %v1244
          %v1246 = vpop.f32.mrb[0].mxu0
          %1247 = vmatprep.mubr.bf16.mxu0 0
          %1248 = vmatmul.mubr.bf16.gmra.mrb[0].mxu0 %v1101
          %v1249 = vpop.f32.mrb[0].mxu0
          %v1250 = vadd.f32 0.0, %v1249
          %v1251 = vpop.f32.mrb[0].mxu0
          %v1252 = vpop.f32.mrb[0].mxu0
          %v1253 = vadd.f32 0.0, %v1252
          %v1254 = vpop.f32.mrb[0].mxu0
          %1255 = vmatprep.mubr.bf16.mxu0 0
          %1256 = vmatmul.mubr.bf16.gmra.mrb[0].mxu0 %v1102
          %v1257 = vpop.f32.mrb[0].mxu0
          %v1258 = vadd.f32 0.0, %v1257
          %v1259 = vpop.f32.mrb[0].mxu0
          %v1260 = vpop.f32.mrb[0].mxu0
          %v1261 = vadd.f32 0.0, %v1260
          %v1262 = vpop.f32.mrb[0].mxu0
          %1263 = vdwg.mxu0
          %v1264 = vpack.c.bf16 %v1205, %v1202
          %v1265 = vpack.c.bf16 %v1213, %v1210
          %v1266 = vpack.c.bf16 %v1221, %v1218
          %v1267 = vpack.c.bf16 %v1229, %v1226
          %v1268 = vpack.c.bf16 %v1237, %v1234
          %v1269 = vpack.c.bf16 %v1245, %v1242
          %v1270 = vpack.c.bf16 %v1253, %v1250
          %v1271 = vpack.c.bf16 %v1261, %v1258
          %v1280 = vunpack.c.l.b16 %v1264
          %v1281 = vunpack.c.h.b16 %v1264
          %v1282 = vunpack.c.l.b16 %v1265
          %v1283 = vunpack.c.h.b16 %v1265
          %v1284 = vunpack.c.l.b16 %v1266
          %v1285 = vunpack.c.h.b16 %v1266
          %v1286 = vunpack.c.l.b16 %v1267
          %v1287 = vunpack.c.h.b16 %v1267
          %v1288 = vunpack.c.l.b16 %v1268
          %v1289 = vunpack.c.h.b16 %v1268
          %v1290 = vunpack.c.l.b16 %v1269
          %v1291 = vunpack.c.h.b16 %v1269
          %v1292 = vunpack.c.l.b16 %v1270
          %v1293 = vunpack.c.h.b16 %v1270
          %v1294 = vunpack.c.l.b16 %v1271
          %v1295 = vunpack.c.h.b16 %v1271
          %v1296 = vpack.c.b16 %v1280, %v1280
          %v1297 = vpack.c.b16 %v1281, %v1281
          %v1298 = vpack.c.b16 %v1282, %v1282
          %v1299 = vpack.c.b16 %v1283, %v1283
          %v1300 = vpack.c.b16 %v1284, %v1284
          %v1301 = vpack.c.b16 %v1285, %v1285
          %v1302 = vpack.c.b16 %v1286, %v1286
          %v1303 = vpack.c.b16 %v1287, %v1287
          %v1304 = vpack.c.b16 %v1288, %v1288
          %v1305 = vpack.c.b16 %v1289, %v1289
          %v1306 = vpack.c.b16 %v1290, %v1290
          %v1307 = vpack.c.b16 %v1291, %v1291
          %v1308 = vpack.c.b16 %v1292, %v1292
          %v1309 = vpack.c.b16 %v1293, %v1293
          %v1310 = vpack.c.b16 %v1294, %v1294
          %v1311 = vpack.c.b16 %v1295, %v1295
          %1328 = vst [vmem:[%s369] sm:$0xf] %v1296
          %1329 = vst [vmem:[%s369 + $0x4] sm:$0xf] %v1297
          %1330 = vst [vmem:[%s369 + $0x8] sm:$0xf] %v1298
          %1331 = vst [vmem:[%s369 + $0xc] sm:$0xf] %v1299
          %1332 = vst [vmem:[%s369 + $0x10] sm:$0xf] %v1300
          %1333 = vst [vmem:[%s369 + $0x14] sm:$0xf] %v1301
          %1334 = vst [vmem:[%s369 + $0x18] sm:$0xf] %v1302
          %1335 = vst [vmem:[%s369 + $0x1c] sm:$0xf] %v1303
          %1336 = vst [vmem:[%s369 + $0x20] sm:$0xf] %v1304
          %1337 = vst [vmem:[%s369 + $0x24] sm:$0xf] %v1305
          %1338 = vst [vmem:[%s369 + $0x28] sm:$0xf] %v1306
          %1339 = vst [vmem:[%s369 + $0x2c] sm:$0xf] %v1307
          %1340 = vst [vmem:[%s369 + $0x30] sm:$0xf] %v1308
          %1341 = vst [vmem:[%s369 + $0x34] sm:$0xf] %v1309
          %1342 = vst [vmem:[%s369 + $0x38] sm:$0xf] %v1310
          %1343 = vst [vmem:[%s369 + $0x3c] sm:$0xf] %v1311
        $region64: #{tpu_custom_call.1} parent=39 // pred_fallthru
          _
        %s1344 = sand.u32 %s172, 1
        %s1345 = scalar_lea.sflag [#allocation5], %s1344
        %s1346 = sand.u32 %s172, 1
        %s1347 = smul.addr %s1346, 128
        %s1348 = scalar_lea.vmem [#allocation11], %s1347
        %s1349 = sand.u32 %s198, 1
        %s1350 = scalar_lea.sflag [#allocation13], %s1349
        %s1351 = sand.u32 %s198, 1
        %s1352 = smul.addr %s1351, 64
        %s1353 = scalar_lea.vmem [#allocation12], %s1352
        // Predicated region
        $region65: #{tpu_custom_call.1} parent=39 // pred_check
          %p1354 = pneg %p182
        $region66: #{tpu_custom_call.1} parent=39 // pred_check_branch
          %1356 = sbr.rel (%p1354) target = $region68
        $region67: #{tpu_custom_call.1} parent=39 // pred_region
          %s1357 = sadd.s32 %s35, %s36
          %s1358 = smul.u32 32, %s1357
          %s1360 = ssub.s32 2048, 2048
          %1361 = vsyncadd %s1345, %s1360
          %s1362 = smul.addr %s1358, 64
          %s1363 = scalar_lea.hbm %s5, %s1362
          %s1364 = sshll.u32 %s1348, 4
          %s1365 = int_to_ptr.vmem [resolvable:$true] %s1364
          %1370 = dma.vmem_to_hbm [thread:$0]  %s1365, 2048, %s1363, %s1345, 64, 64, 4
        $region68: #{tpu_custom_call.1} parent=39 // pred_fallthru
          _
        // Predicated region
        $region69: #{tpu_custom_call.1} parent=39 // pred_check
          %p1371 = pneg %p208
        $region70: #{tpu_custom_call.1} parent=39 // pred_check_branch
          %1373 = sbr.rel (%p1371) target = $region72
        $region71: #{tpu_custom_call.1} parent=39 // pred_region
          %s1374 = smul.u32 16, %s35
          %s1376 = ssub.s32 1024, 1024
          %1377 = vsyncadd %s1350, %s1376
          %s1378 = smul.addr %s1374, 64
          %s1379 = scalar_lea.hbm %s6, %s1378
          %s1380 = sshll.u32 %s1353, 4
          %s1381 = int_to_ptr.vmem [resolvable:$true] %s1380
          %1386 = dma.vmem_to_hbm [thread:$0]  %s1381, 1024, %s1379, %s1350, 64, 64, 4
        $region72: #{tpu_custom_call.1} parent=39 // pred_fallthru
          _
      $region40: #{tpu_custom_call.1} parent=5 // pred_fallthru
        _
      %p1387 = scmp.le.s32.totalorder 2, %s26
      // Predicated region
      $region73: #{tpu_custom_call.1} parent=5 // pred_check
        %p1388 = pneg %p1387
      $region74: #{tpu_custom_call.1} parent=5 // pred_check_branch
        %1390 = sbr.rel (%p1388) target = $region76
      $region75: #{tpu_custom_call.1} parent=5 // pred_region
        %s1391 = ssub.s32 %s26, 2
        // Predicated region
        $region77: #{tpu_custom_call.1} parent=75 // pred_check
          %p1392 = pneg %p188
        $region78: #{tpu_custom_call.1} parent=75 // pred_check_branch
          %1394 = sbr.rel (%p1392) target = $region80
        $region79: #{tpu_custom_call.1} parent=75 // pred_region
          %s1395 = sand.u32 %s173, 1
          %s1396 = scalar_lea.sflag [#allocation5], %s1395
          %s1397 = sand.u32 %s173, 1
          %s1398 = smul.addr %s1397, 128
          %s1399 = scalar_lea.vmem [#allocation11], %s1398
          %1400 = dma.done %s1396, 2048
        $region80: #{tpu_custom_call.1} parent=75 // pred_fallthru
          _
        // Predicated region
        $region81: #{tpu_custom_call.1} parent=75 // pred_check
          %p1401 = pneg %p214
        $region82: #{tpu_custom_call.1} parent=75 // pred_check_branch
          %1403 = sbr.rel (%p1401) target = $region84
        $region83: #{tpu_custom_call.1} parent=75 // pred_region
          %s1404 = sand.u32 %s199, 1
          %s1405 = scalar_lea.sflag [#allocation13], %s1404
          %s1406 = sand.u32 %s199, 1
          %s1407 = smul.addr %s1406, 64
          %s1408 = scalar_lea.vmem [#allocation12], %s1407
          %1409 = dma.done %s1405, 1024
        $region84: #{tpu_custom_call.1} parent=75 // pred_fallthru
          _
      $region76: #{tpu_custom_call.1} parent=5 // pred_fallthru
        _
    $region6: #{tpu_custom_call.1} parent=1 // loop_footer
      %s30 = sadd.s32 1, %s26
    $region7: #{tpu_custom_call.1} parent=1 // loop_footer_branch
      %25 = sbr.rel target = $region3
    $region8: #{tpu_custom_call.1} parent=1 // loop_exit
      _
    %1410 = vsyncpa [#allocation4], 1
    %s1411 = scalar_lea.sflag [#allocation4], 1
    %1412 = vsyncpa %s1411, 1
    %1413 = vsyncpa [#allocation7], 1
    %s1414 = scalar_lea.sflag [#allocation7], 1
    %1415 = vsyncpa %s1414, 1
    %1416 = vsyncpa [#allocation10], 1
    %1417 = vsyncpa [#allocation5], 1
    %s1418 = scalar_lea.sflag [#allocation5], 1
    %1419 = vsyncpa %s1418, 1
    %1420 = vsyncpa [#allocation13], 1
    %s1421 = scalar_lea.sflag [#allocation13], 1
    %1422 = vsyncpa %s1421, 1

// kernel: tpu_custom_call.1
$region0: #{tpu_custom_call.1}
  #allocation0 [shape = 'u32[]', space=smem, size = 0x4, offset = 0x4, fixed_abs, tag = 'smem constant byte address 0x4 - core index']
  #allocation1 [shape = 'u32[144,128]{1,0:T(1,128)}', space=vmem, size = 0x12000, scoped, tag = 'internal scratch']
  #allocation2 [shape = 'f32[128,128]{1,0:T(8,128)}', space=vmem, size = 0x10000, scoped, tag = 'scratch operand']
  %s0 = inlined_call_operand.hbm [shape: f32[512,128], index: 0, kind: input, shape index: {}]
  %s1 = inlined_call_operand.hbm [shape: s8[128,512], index: 1, kind: input, shape index: {}]
  %s2 = inlined_call_operand.hbm [shape: f32[128,256], index: 2, kind: input, shape index: {}]
  %s3 = inlined_call_operand.vmem [shape: f32[1,256], index: 3, kind: input, shape index: {}]
  %s4 = inlined_call_operand.hbm [shape: bf16[128,128], index: 4, kind: input, shape index: {}]
  %s5 = inlined_call_operand.hbm [shape: bf16[512,128], index: 5, kind: output, shape index: {0}]
  %s6 = inlined_call_operand.hbm [shape: bf16[256,128], index: 6, kind: output, shape index: {1}]
  %7 = xla_tuple %s5, %s6
  %s8 = sld [smem:[#allocation0]]
  $region85: #{tpu_custom_call.1} parent=0
    _
  %s10 = ssub.s32 1, %s8
  %s11 = scalar_select 0, %s10, %s8
  $region1: #{tpu_custom_call.1} parent=0
    #allocation3 [shape = 'u8[262144]{0}', space=vmem, size = 0x40000, scoped, tag = 'input window, operand 0']
    #allocation4 [shape = 's32[2]{0}', space=sflag, size = 0x8, scoped, tag = 'scoped memory for tpu_custom_call.1']
    #allocation5 [shape = 's32[2]{0}', space=sflag, size = 0x8, scoped, tag = 'scoped memory for tpu_custom_call.1']
    #allocation6 [shape = 'u8[65536]{0}', space=vmem, size = 0x10000, scoped, tag = 'input window, operand 1']
    #allocation7 [shape = 's32[2]{0}', space=sflag, size = 0x8, scoped, tag = 'scoped memory for tpu_custom_call.1']
    #allocation8 [shape = 'u8[131072]{0}', space=vmem, size = 0x20000, scoped, tag = 'input window, operand 2, single buffered']
    #allocation9 [shape = 'u8[32768]{0}', space=vmem, size = 0x8000, scoped, tag = 'input window, operand 4, single buffered']
    #allocation10 [shape = 's32[1]{0}', space=sflag, size = 0x4, scoped, tag = 'scoped memory for tpu_custom_call.1']
    #allocation11 [shape = 'u8[131072]{0}', space=vmem, size = 0x20000, scoped, tag = 'output window, operand 0']
    #allocation12 [shape = 'u8[65536]{0}', space=vmem, size = 0x10000, scoped, tag = 'output window, operand 1']
    #allocation13 [shape = 's32[2]{0}', space=sflag, size = 0x8, scoped, tag = 'scoped memory for tpu_custom_call.1']
    %12 = vsyncpa [#allocation4], 0
    %s13 = scalar_lea.sflag [#allocation4], 1
    %14 = vsyncpa %s13, 0
    %15 = vsyncpa [#allocation7], 0
    %s16 = scalar_lea.sflag [#allocation7], 1
    %17 = vsyncpa %s16, 0
    %18 = vsyncpa [#allocation10], 0
    %19 = vsyncpa [#allocation5], 0
    %s20 = scalar_lea.sflag [#allocation5], 1
    %21 = vsyncpa %s20, 0
    %22 = vsyncpa [#allocation13], 0
    %s23 = scalar_lea.sflag [#allocation13], 1
    %24 = vsyncpa %s23, 0
    loop: start=0, step=1, limit=4
    $region2: #{tpu_custom_call.1} parent=1 // loop_pre_header
      _
    $region3: #{tpu_custom_call.1} parent=1 // loop_header
      %s26 = sphi 0, %s30
      %p27 = scmp.ge.s32.totalorder %s26, 4
      %s33 = sphi 0, %s45
      %s34 = sphi 0, %s41
      %s35 = sphi 0, %s33
      %s36 = sphi 0, %s34
      %s37 = sphi 0, %s35
      %s38 = sphi 0, %s36
      %s50 = sphi 0, %s52
      %s53 = sphi 0, %s50
      %s54 = sphi 0, %s53
      %s70 = sphi 0, %s54
      %s78 = sphi 0, %s80
      %s81 = sphi 0, %s78
      %s82 = sphi 0, %s81
      %s98 = sphi 0, %s82
      %s102 = sphi 0, %s102
      %s104 = sphi 0, %s102
      %s105 = sphi 0, %s104
      %s119 = sphi 0, %s105
      %s123 = sphi 0, %s123
      %s125 = sphi 0, %s123
      %s126 = sphi 0, %s125
      %s140 = sphi 0, %s126
      %s144 = sphi 0, %s144
      %s146 = sphi 0, %s144
      %s147 = sphi 0, %s146
      %s161 = sphi 0, %s147
      %s169 = sphi 0, %s171
      %s172 = sphi 0, %s169
      %s173 = sphi 0, %s172
      %s189 = sphi 0, %s173
      %s195 = sphi 0, %s197
      %s198 = sphi 0, %s195
      %s199 = sphi 0, %s198
      %s215 = sphi 0, %s199
    $region4: #{tpu_custom_call.1} parent=1 // loop_header_branch
      %29 = sbr.rel (%p27) target = $region8
    $region5: #{tpu_custom_call.1} parent=1 // loop_body
      %s31 = ssub.s32 %s26, 1
      %s32 = ssub.s32 %s26, 2
      %s39 = sadd.s32 1, %s34
      %p40 = scmp.ge.s32.totalorder %s39, 1
      %s41 = scalar_select %p40, 0, %s39
      %s42 = sadd.s32 1, %s33
      %s43 = scalar_select %p40, %s42, %s33
      %p44 = scmp.ge.s32.totalorder %s43, 2
      %s45 = scalar_select %p44, 0, %s43
      %s46 = sadd.s32 %s33, %s34
      %s47 = sadd.s32 %s45, %s41
      %s48 = ssub.s32 %s46, %s47
      %p49 = scmp.eq.s32.totalorder %s48, 0
      %s51 = sadd.s32 %s50, 1
      %s52 = scalar_select %p49, %s50, %s51
      %p55 = pneg %p49
      %p56 = scmp.eq.s32.totalorder %s26, 1
      %p57 = por %p55, %p56
      %p58 = scmp.ne.s32.totalorder %s50, %s53
      %p59 = scmp.eq.s32.totalorder %s26, 0
      %p60 = por %p58, %p59
      %p61 = scmp.ne.s32.totalorder %s50, %s53
      %p62 = scmp.eq.s32.totalorder %s31, 1
      %p63 = por %p61, %p62
      %p64 = scmp.ne.s32.totalorder %s53, %s54
      %p65 = scmp.eq.s32.totalorder %s31, 0
      %p66 = por %p64, %p65
      %p67 = scmp.ne.s32.totalorder %s53, %s54
      %p68 = scmp.eq.s32.totalorder %s32, 1
      %p69 = por %p67, %p68
      %p71 = scmp.ne.s32.totalorder %s54, %s70
      %p72 = scmp.eq.s32.totalorder %s32, 0
      %p73 = por %p71, %p72
      %s74 = sadd.s32 %s33, %s34
      %s75 = sadd.s32 %s45, %s41
      %s76 = ssub.s32 %s74, %s75
      %p77 = scmp.eq.s32.totalorder %s76, 0
      %s79 = sadd.s32 %s78, 1
      %s80 = scalar_select %p77, %s78, %s79
      %p83 = pneg %p77
      %p84 = scmp.eq.s32.totalorder %s26, 1
      %p85 = por %p83, %p84
      %p86 = scmp.ne.s32.totalorder %s78, %s81
      %p87 = scmp.eq.s32.totalorder %s26, 0
      %p88 = por %p86, %p87
      %p89 = scmp.ne.s32.totalorder %s78, %s81
      %p90 = scmp.eq.s32.totalorder %s31, 1
      %p91 = por %p89, %p90
      %p92 = scmp.ne.s32.totalorder %s81, %s82
      %p93 = scmp.eq.s32.totalorder %s31, 0
      %p94 = por %p92, %p93
      %p95 = scmp.ne.s32.totalorder %s81, %s82
      %p96 = scmp.eq.s32.totalorder %s32, 1
      %p97 = por %p95, %p96
      %p99 = scmp.ne.s32.totalorder %s82, %s98
      %p100 = scmp.eq.s32.totalorder %s32, 0
      %p101 = por %p99, %p100
      %s103 = sadd.s32 %s102, 1
      %p106 = scmp.eq.s32.totalorder %s26, 1
      %p107 = scmp.ne.s32.totalorder %s102, %s104
      %p108 = scmp.eq.s32.totalorder %s26, 0
      %p109 = por %p107, %p108
      %p110 = scmp.ne.s32.totalorder %s102, %s104
      %p111 = scmp.eq.s32.totalorder %s31, 1
      %p112 = por %p110, %p111
      %p113 = scmp.ne.s32.totalorder %s104, %s105
      %p114 = scmp.eq.s32.totalorder %s31, 0
      %p115 = por %p113, %p114
      %p116 = scmp.ne.s32.totalorder %s104, %s105
      %p117 = scmp.eq.s32.totalorder %s32, 1
      %p118 = por %p116, %p117
      %p120 = scmp.ne.s32.totalorder %s105, %s119
      %p121 = scmp.eq.s32.totalorder %s32, 0
      %p122 = por %p120, %p121
      %s124 = sadd.s32 %s123, 1
      %p127 = scmp.eq.s32.totalorder %s26, 1
      %p128 = scmp.ne.s32.totalorder %s123, %s125
      %p129 = scmp.eq.s32.totalorder %s26, 0
      %p130 = por %p128, %p129
      %p131 = scmp.ne.s32.totalorder %s123, %s125
      %p132 = scmp.eq.s32.totalorder %s31, 1
      %p133 = por %p131, %p132
      %p134 = scmp.ne.s32.totalorder %s125, %s126
      %p135 = scmp.eq.s32.totalorder %s31, 0
      %p136 = por %p134, %p135
      %p137 = scmp.ne.s32.totalorder %s125, %s126
      %p138 = scmp.eq.s32.totalorder %s32, 1
      %p139 = por %p137, %p138
      %p141 = scmp.ne.s32.totalorder %s126, %s140
      %p142 = scmp.eq.s32.totalorder %s32, 0
      %p143 = por %p141, %p142
      %s145 = sadd.s32 %s144, 1
      %p148 = scmp.eq.s32.totalorder %s26, 1
      %p149 = scmp.ne.s32.totalorder %s144, %s146
      %p150 = scmp.eq.s32.totalorder %s26, 0
      %p151 = por %p149, %p150
      %p152 = scmp.ne.s32.totalorder %s144, %s146
      %p153 = scmp.eq.s32.totalorder %s31, 1
      %p154 = por %p152, %p153
      %p155 = scmp.ne.s32.totalorder %s146, %s147
      %p156 = scmp.eq.s32.totalorder %s31, 0
      %p157 = por %p155, %p156
      %p158 = scmp.ne.s32.totalorder %s146, %s147
      %p159 = scmp.eq.s32.totalorder %s32, 1
      %p160 = por %p158, %p159
      %p162 = scmp.ne.s32.totalorder %s147, %s161
      %p163 = scmp.eq.s32.totalorder %s32, 0
      %p164 = por %p162, %p163
      %s165 = sadd.s32 %s33, %s34
      %s166 = sadd.s32 %s45, %s41
      %s167 = ssub.s32 %s165, %s166
      %p168 = scmp.eq.s32.totalorder %s167, 0
      %s170 = sadd.s32 %s169, 1
      %s171 = scalar_select %p168, %s169, %s170
      %p174 = pneg %p168
      %p175 = scmp.eq.s32.totalorder %s26, 1
      %p176 = por %p174, %p175
      %p177 = scmp.ne.s32.totalorder %s169, %s172
      %p178 = scmp.eq.s32.totalorder %s26, 0
      %p179 = por %p177, %p178
      %p180 = scmp.ne.s32.totalorder %s169, %s172
      %p181 = scmp.eq.s32.totalorder %s31, 1
      %p182 = por %p180, %p181
      %p183 = scmp.ne.s32.totalorder %s172, %s173
      %p184 = scmp.eq.s32.totalorder %s31, 0
      %p185 = por %p183, %p184
      %p186 = scmp.ne.s32.totalorder %s172, %s173
      %p187 = scmp.eq.s32.totalorder %s32, 1
      %p188 = por %p186, %p187
      %p190 = scmp.ne.s32.totalorder %s173, %s189
      %p191 = scmp.eq.s32.totalorder %s32, 0
      %p192 = por %p190, %p191
      %s193 = ssub.s32 %s33, %s45
      %p194 = scmp.eq.s32.totalorder %s193, 0
      %s196 = sadd.s32 %s195, 1
      %s197 = scalar_select %p194, %s195, %s196
      %p200 = pneg %p194
      %p201 = scmp.eq.s32.totalorder %s26, 1
      %p202 = por %p200, %p201
      %p203 = scmp.ne.s32.totalorder %s195, %s198
      %p204 = scmp.eq.s32.totalorder %s26, 0
      %p205 = por %p203, %p204
      %p206 = scmp.ne.s32.totalorder %s195, %s198
      %p207 = scmp.eq.s32.totalorder %s31, 1
      %p208 = por %p206, %p207
      %p209 = scmp.ne.s32.totalorder %s198, %s199
      %p210 = scmp.eq.s32.totalorder %s31, 0
      %p211 = por %p209, %p210
      %p212 = scmp.ne.s32.totalorder %s198, %s199
      %p213 = scmp.eq.s32.totalorder %s32, 1
      %p214 = por %p212, %p213
      %p216 = scmp.ne.s32.totalorder %s199, %s215
      %p217 = scmp.eq.s32.totalorder %s32, 0
      %p218 = por %p216, %p217
      %p219 = scmp.le.s32.totalorder 1, %s26
      %p220 = scmp.lt.s32.totalorder %s26, 3
      %p221 = pnand %p219, %p220
      %p222 = pneg %p221
      // Predicated region
      $region9: #{tpu_custom_call.1} parent=5 // pred_check
        _
      $region10: #{tpu_custom_call.1} parent=5 // pred_check_branch
        %224 = sbr.rel (%p221) target = $region12
      $region11: #{tpu_custom_call.1} parent=5 // pred_region
        %s225 = ssub.s32 %s26, 1
        // Predicated region
        $region13: #{tpu_custom_call.1} parent=11 // pred_check
          %p226 = pneg %p115
        $region14: #{tpu_custom_call.1} parent=11 // pred_check_branch
          %228 = sbr.rel (%p226) target = $region16
        $region15: #{tpu_custom_call.1} parent=11 // pred_region
          %s230 = ssub.s32 4096, 4096
          %231 = vsyncadd [#allocation7], %s230
          %s232 = sshll.u32 [#allocation8], 4
          %s233 = int_to_ptr.vmem [resolvable:$true] %s232
          %238 = dma.hbm_to_vmem [thread:$0]  %s2, 4096, %s233, [#allocation7], 256, 256, 16
        $region16: #{tpu_custom_call.1} parent=11 // pred_fallthru
          _
        // Predicated region
        $region17: #{tpu_custom_call.1} parent=11 // pred_check
          %p239 = pneg %p136
        $region18: #{tpu_custom_call.1} parent=11 // pred_check_branch
          %241 = sbr.rel (%p239) target = $region20
        $region19: #{tpu_custom_call.1} parent=11 // pred_region
          _
        $region20: #{tpu_custom_call.1} parent=11 // pred_fallthru
          _
        // Predicated region
        $region21: #{tpu_custom_call.1} parent=11 // pred_check
          %p242 = pneg %p157
        $region22: #{tpu_custom_call.1} parent=11 // pred_check_branch
          %244 = sbr.rel (%p242) target = $region24
        $region23: #{tpu_custom_call.1} parent=11 // pred_region
          %s246 = ssub.s32 1024, 1024
          %247 = vsyncadd [#allocation10], %s246
          %s248 = sshll.u32 [#allocation9], 4
          %s249 = int_to_ptr.vmem [resolvable:$true] %s248
          %254 = dma.hbm_to_vmem [thread:$0]  %s4, 1024, %s249, [#allocation10], 64, 64, 4
        $region24: #{tpu_custom_call.1} parent=11 // pred_fallthru
          _
      $region12: #{tpu_custom_call.1} parent=5 // pred_fallthru
        _
      %p255 = scmp.lt.s32.totalorder %s26, 2
      // Predicated region
      $region25: #{tpu_custom_call.1} parent=5 // pred_check
        %p256 = pneg %p255
      $region26: #{tpu_custom_call.1} parent=5 // pred_check_branch
        %258 = sbr.rel (%p256) target = $region28
      $region27: #{tpu_custom_call.1} parent=5 // pred_region
        // Predicated region
        $region29: #{tpu_custom_call.1} parent=27 // pred_check
          %p259 = pneg %p60
        $region30: #{tpu_custom_call.1} parent=27 // pred_check_branch
          %261 = sbr.rel (%p259) target = $region32
        $region31: #{tpu_custom_call.1} parent=27 // pred_region
          %s262 = sand.u32 %s50, 1
          %s263 = scalar_lea.sflag [#allocation4], %s262
          %s264 = sand.u32 %s50, 1
          %s265 = smul.addr %s264, 256
          %s266 = scalar_lea.vmem [#allocation3], %s265
          %s267 = sadd.s32 %s33, %s34
          %s268 = smul.u32 32, %s267
          %s270 = ssub.s32 4096, 4096
          %271 = vsyncadd %s263, %s270
          %s272 = smul.addr %s268, 128
          %s273 = scalar_lea.hbm %s0, %s272
          %s274 = sshll.u32 %s266, 4
          %s275 = int_to_ptr.vmem [resolvable:$true] %s274
          %280 = dma.hbm_to_vmem [thread:$0]  %s273, 4096, %s275, %s263, 128, 128, 8
        $region32: #{tpu_custom_call.1} parent=27 // pred_fallthru
          _
        // Predicated region
        $region33: #{tpu_custom_call.1} parent=27 // pred_check
          %p281 = pneg %p88
        $region34: #{tpu_custom_call.1} parent=27 // pred_check_branch
          %283 = sbr.rel (%p281) target = $region36
        $region35: #{tpu_custom_call.1} parent=27 // pred_region
          %s284 = sand.u32 %s26, 1
          %s285 = scalar_lea.sflag [#allocation7], %s284
          %s286 = sand.u32 %s78, 1
          %s287 = smul.addr %s286, 64
          %s288 = scalar_lea.vmem [#allocation6], %s287
          %s289 = sadd.s32 %s33, %s34
          %s290 = smul.u32 2, %s289
          %s292 = ssub.s32 1024, 1024
          %293 = vsyncadd %s285, %s292
          %s294 = smul.addr %s290, 128
          %s295 = scalar_lea.hbm %s1, %s294
          %s296 = sshll.u32 %s288, 4
          %s297 = int_to_ptr.vmem [resolvable:$true] %s296
          %302 = dma.hbm_to_vmem [thread:$0]  %s295, 1024, %s297, %s285, 512, 256, 16
        $region36: #{tpu_custom_call.1} parent=27 // pred_fallthru
          _
      $region28: #{tpu_custom_call.1} parent=5 // pred_fallthru
        _
      %p303 = scmp.le.s32.totalorder 1, %s26
      %p304 = scmp.lt.s32.totalorder %s26, 3
      %p305 = pnand %p303, %p304
      %p306 = pneg %p305
      // Predicated region
      $region37: #{tpu_custom_call.1} parent=5 // pred_check
        _
      $region38: #{tpu_custom_call.1} parent=5 // pred_check_branch
        %308 = sbr.rel (%p305) target = $region40
      $region39: #{tpu_custom_call.1} parent=5 // pred_region
        %s309 = ssub.s32 %s26, 1
        %s310 = sand.u32 %s53, 1
        %s311 = scalar_lea.sflag [#allocation4], %s310
        %s312 = sand.u32 %s53, 1
        %s313 = smul.addr %s312, 256
        %s314 = scalar_lea.vmem [#allocation3], %s313
        // Predicated region
        $region41: #{tpu_custom_call.1} parent=39 // pred_check
          %p315 = pneg %p66
        $region42: #{tpu_custom_call.1} parent=39 // pred_check_branch
          %317 = sbr.rel (%p315) target = $region44
        $region43: #{tpu_custom_call.1} parent=39 // pred_region
          %318 = dma.done %s311, 4096
        $region44: #{tpu_custom_call.1} parent=39 // pred_fallthru
          _
        %s319 = sand.u32 %s31, 1
        %s320 = scalar_lea.sflag [#allocation7], %s319
        %s321 = sand.u32 %s81, 1
        %s322 = smul.addr %s321, 64
        %s323 = scalar_lea.vmem [#allocation6], %s322
        // Predicated region
        $region45: #{tpu_custom_call.1} parent=39 // pred_check
          %p324 = pneg %p94
        $region46: #{tpu_custom_call.1} parent=39 // pred_check_branch
          %326 = sbr.rel (%p324) target = $region48
        $region47: #{tpu_custom_call.1} parent=39 // pred_region
          %327 = dma.done %s320, 1024
        $region48: #{tpu_custom_call.1} parent=39 // pred_fallthru
          _
        // Predicated region
        $region49: #{tpu_custom_call.1} parent=39 // pred_check
          %p328 = pneg %p115
        $region50: #{tpu_custom_call.1} parent=39 // pred_check_branch
          %330 = sbr.rel (%p328) target = $region52
        $region51: #{tpu_custom_call.1} parent=39 // pred_region
          %331 = dma.done [#allocation7], 4096
        $region52: #{tpu_custom_call.1} parent=39 // pred_fallthru
          _
        // Predicated region
        $region53: #{tpu_custom_call.1} parent=39 // pred_check
          %p332 = pneg %p157
        $region54: #{tpu_custom_call.1} parent=39 // pred_check_branch
          %334 = sbr.rel (%p332) target = $region56
        $region55: #{tpu_custom_call.1} parent=39 // pred_region
          %335 = dma.done [#allocation10], 1024
        $region56: #{tpu_custom_call.1} parent=39 // pred_fallthru
          _
        %s336 = sand.u32 %s53, 1
        %s337 = scalar_lea.sflag [#allocation4], %s336
        %s338 = sand.u32 %s53, 1
        %s339 = smul.addr %s338, 256
        %s340 = scalar_lea.vmem [#allocation3], %s339
        %p341 = pneg %p66
        %p342 = pneg %p63
        %s343 = sand.u32 %s31, 1
        %s344 = scalar_lea.sflag [#allocation7], %s343
        %s345 = sand.u32 %s81, 1
        %s346 = smul.addr %s345, 64
        %s347 = scalar_lea.vmem [#allocation6], %s346
        %p348 = pneg %p94
        %p349 = pneg %p91
        %p350 = pneg %p115
        %p351 = pneg %p112
        %p352 = pneg %p136
        %p353 = pneg %p133
        %p354 = pneg %p157
        %p355 = pneg %p154
        %p356 = pneg %p185
        %p357 = pneg %p182
        %s358 = sand.u32 %s172, 1
        %s359 = scalar_lea.sflag [#allocation5], %s358
        %s360 = sand.u32 %s172, 1
        %s361 = smul.addr %s360, 128
        %s362 = scalar_lea.vmem [#allocation11], %s361
        %p363 = pneg %p211
        %p364 = pneg %p208
        %s365 = sand.u32 %s198, 1
        %s366 = scalar_lea.sflag [#allocation13], %s365
        %s367 = sand.u32 %s198, 1
        %s368 = smul.addr %s367, 64
        %s369 = scalar_lea.vmem [#allocation12], %s368
        %s370 = sadd.s32 %s35, %s36
        %s371 = smul.u32 32, %s370
        %s372 = sadd.s32 %s35, %s36
        %s373 = smul.u32 2, %s372
        %s374 = sadd.s32 %s35, %s36
        %s375 = smul.u32 32, %s374
        %s376 = smul.u32 16, %s35
        %p378 = scmp.eq.s32.totalorder %s36, 0
        // Predicated region
        $region57: #{tpu_custom_call.1} parent=39 // pred_check
          %p379 = pneg %p378
        $region58: #{tpu_custom_call.1} parent=39 // pred_check_branch
          %381 = sbr.rel (%p379) target = $region60
        $region59: #{tpu_custom_call.1} parent=39 // pred_region
          %382 = vst [vmem:[#allocation2] sm:$0xff] 0.0
          %383 = vst [vmem:[#allocation2 + $0x8] sm:$0xff] 0.0
          %384 = vst [vmem:[#allocation2 + $0x10] sm:$0xff] 0.0
          %385 = vst [vmem:[#allocation2 + $0x18] sm:$0xff] 0.0
          %386 = vst [vmem:[#allocation2 + $0x20] sm:$0xff] 0.0
          %387 = vst [vmem:[#allocation2 + $0x28] sm:$0xff] 0.0
          %388 = vst [vmem:[#allocation2 + $0x30] sm:$0xff] 0.0
          %389 = vst [vmem:[#allocation2 + $0x38] sm:$0xff] 0.0
          %390 = vst [vmem:[#allocation2 + $0x40] sm:$0xff] 0.0
          %391 = vst [vmem:[#allocation2 + $0x48] sm:$0xff] 0.0
          %392 = vst [vmem:[#allocation2 + $0x50] sm:$0xff] 0.0
          %393 = vst [vmem:[#allocation2 + $0x58] sm:$0xff] 0.0
          %394 = vst [vmem:[#allocation2 + $0x60] sm:$0xff] 0.0
          %395 = vst [vmem:[#allocation2 + $0x68] sm:$0xff] 0.0
          %396 = vst [vmem:[#allocation2 + $0x70] sm:$0xff] 0.0
          %397 = vst [vmem:[#allocation2 + $0x78] sm:$0xff] 0.0
        $region60: #{tpu_custom_call.1} parent=39 // pred_fallthru
          _
        %v398 = vld [vmem:[%s314] sm:$0xff]
        %v399 = vld [vmem:[%s314 + $0x8] sm:$0xff]
        %v400 = vld [vmem:[%s314 + $0x10] sm:$0xff]
        %v401 = vld [vmem:[%s314 + $0x18] sm:$0xff]
        %v402 = vld [vmem:[%s314 + $0x20] sm:$0xff]
        %v403 = vld [vmem:[%s314 + $0x28] sm:$0xff]
        %v404 = vld [vmem:[%s314 + $0x30] sm:$0xff]
        %v405 = vld [vmem:[%s314 + $0x38] sm:$0xff]
        %v406 = vld [vmem:[%s314 + $0x40] sm:$0xff]
        %v407 = vld [vmem:[%s314 + $0x48] sm:$0xff]
        %v408 = vld [vmem:[%s314 + $0x50] sm:$0xff]
        %v409 = vld [vmem:[%s314 + $0x58] sm:$0xff]
        %v410 = vld [vmem:[%s314 + $0x60] sm:$0xff]
        %v411 = vld [vmem:[%s314 + $0x68] sm:$0xff]
        %v412 = vld [vmem:[%s314 + $0x70] sm:$0xff]
        %v413 = vld [vmem:[%s314 + $0x78] sm:$0xff]
        %v414 = vld [vmem:[%s314 + $0x80] sm:$0xff]
        %v415 = vld [vmem:[%s314 + $0x88] sm:$0xff]
        %v416 = vld [vmem:[%s314 + $0x90] sm:$0xff]
        %v417 = vld [vmem:[%s314 + $0x98] sm:$0xff]
        %v418 = vld [vmem:[%s314 + $0xa0] sm:$0xff]
        %v419 = vld [vmem:[%s314 + $0xa8] sm:$0xff]
        %v420 = vld [vmem:[%s314 + $0xb0] sm:$0xff]
        %v421 = vld [vmem:[%s314 + $0xb8] sm:$0xff]
        %v422 = vld [vmem:[%s314 + $0xc0] sm:$0xff]
        %v423 = vld [vmem:[%s314 + $0xc8] sm:$0xff]
        %v424 = vld [vmem:[%s314 + $0xd0] sm:$0xff]
        %v425 = vld [vmem:[%s314 + $0xd8] sm:$0xff]
        %v426 = vld [vmem:[%s314 + $0xe0] sm:$0xff]
        %v427 = vld [vmem:[%s314 + $0xe8] sm:$0xff]
        %v428 = vld [vmem:[%s314 + $0xf0] sm:$0xff]
        %v429 = vld [vmem:[%s314 + $0xf8] sm:$0xff]
        %v430 = vld [vmem:[#allocation8] sm:$0xff]
        %v431 = vld [vmem:[#allocation8 + $0x8] sm:$0xff]
        %v432 = vld [vmem:[#allocation8 + $0x10] sm:$0xff]
        %v433 = vld [vmem:[#allocation8 + $0x18] sm:$0xff]
        %v434 = vld [vmem:[#allocation8 + $0x20] sm:$0xff]
        %v435 = vld [vmem:[#allocation8 + $0x28] sm:$0xff]
        %v436 = vld [vmem:[#allocation8 + $0x30] sm:$0xff]
        %v437 = vld [vmem:[#allocation8 + $0x38] sm:$0xff]
        %v438 = vld [vmem:[#allocation8 + $0x40] sm:$0xff]
        %v439 = vld [vmem:[#allocation8 + $0x48] sm:$0xff]
        %v440 = vld [vmem:[#allocation8 + $0x50] sm:$0xff]
        %v441 = vld [vmem:[#allocation8 + $0x58] sm:$0xff]
        %v442 = vld [vmem:[#allocation8 + $0x60] sm:$0xff]
        %v443 = vld [vmem:[#allocation8 + $0x68] sm:$0xff]
        %v444 = vld [vmem:[#allocation8 + $0x70] sm:$0xff]
        %v445 = vld [vmem:[#allocation8 + $0x78] sm:$0xff]
        %v446 = vld [vmem:[#allocation8 + $0x80] sm:$0xff]
        %v447 = vld [vmem:[#allocation8 + $0x88] sm:$0xff]
        %v448 = vld [vmem:[#allocation8 + $0x90] sm:$0xff]
        %v449 = vld [vmem:[#allocation8 + $0x98] sm:$0xff]
        %v450 = vld [vmem:[#allocation8 + $0xa0] sm:$0xff]
        %v451 = vld [vmem:[#allocation8 + $0xa8] sm:$0xff]
        %v452 = vld [vmem:[#allocation8 + $0xb0] sm:$0xff]
        %v453 = vld [vmem:[#allocation8 + $0xb8] sm:$0xff]
        %v454 = vld [vmem:[#allocation8 + $0xc0] sm:$0xff]
        %v455 = vld [vmem:[#allocation8 + $0xc8] sm:$0xff]
        %v456 = vld [vmem:[#allocation8 + $0xd0] sm:$0xff]
        %v457 = vld [vmem:[#allocation8 + $0xd8] sm:$0xff]
        %v458 = vld [vmem:[#allocation8 + $0xe0] sm:$0xff]
        %v459 = vld [vmem:[#allocation8 + $0xe8] sm:$0xff]
        %v460 = vld [vmem:[#allocation8 + $0xf0] sm:$0xff]
        %v461 = vld [vmem:[#allocation8 + $0xf8] sm:$0xff]
        %v462 = vld [vmem:[%s3] sm:$0x3]
        %v464 = vlaneseq
        %v465 = vshrl.u32 %v464, 7
        %v466 = vsub.s32 0, %v465
        %v467 = vrot.slane %v462, %v466
        %v468 = vlaneseq
        %v469 = vshrl.u32 %v468, 7
        %v470 = vsub.s32 1, %v469
        %v471 = vrot.slane %v462, %v470
        %474 = vmatprep.subr.mxu0 %v431
        %475 = vmatpush1.msra.mxu0 %v430
        %476 = vmatprep.subr.mxu0 %v433
        %477 = vmatpush1.msra.mxu0 %v432
        %478 = vmatprep.subr.mxu0 %v435
        %479 = vmatpush1.msra.mxu0 %v434
        %480 = vmatprep.subr.mxu0 %v437
        %481 = vmatpush1.msra.mxu0 %v436
        %482 = vmatprep.subr.mxu0 %v439
        %483 = vmatpush1.msra.mxu0 %v438
        %484 = vmatprep.subr.mxu0 %v441
        %485 = vmatpush1.msra.mxu0 %v440
        %486 = vmatprep.subr.mxu0 %v443
        %487 = vmatpush1.msra.mxu0 %v442
        %488 = vmatprep.subr.mxu0 %v445
        %489 = vmatpush1.msra.mxu0 %v444
        %490 = vmatprep.subr.mxu0 %v447
        %491 = vmatpush1.msra.mxu0 %v446
        %492 = vmatprep.subr.mxu0 %v449
        %493 = vmatpush1.msra.mxu0 %v448
        %494 = vmatprep.subr.mxu0 %v451
        %495 = vmatpush1.msra.mxu0 %v450
        %496 = vmatprep.subr.mxu0 %v453
        %497 = vmatpush1.msra.mxu0 %v452
        %498 = vmatprep.subr.mxu0 %v455
        %499 = vmatpush1.msra.mxu0 %v454
        %500 = vmatprep.subr.mxu0 %v457
        %501 = vmatpush1.msra.mxu0 %v456
        %502 = vmatprep.subr.mxu0 %v459
        %503 = vmatpush1.msra.mxu0 %v458
        %504 = vmatprep.subr.mxu0 %v461
        %505 = vmatpush1.msra.mxu0 %v460
        %506 = vmatprep.subr.mxu0 0.0
        %507 = vmatpush1.msra.mxu0 0.0
        %508 = vmatprep.subr.mxu0 0.0
        %509 = vmatpush1.msra.mxu0 0.0
        %510 = vmatprep.subr.mxu0 0.0
        %511 = vmatpush1.msra.mxu0 0.0
        %512 = vmatprep.subr.mxu0 0.0
        %513 = vmatpush1.msra.mxu0 0.0
        %514 = vmatprep.subr.mxu0 0.0
        %515 = vmatpush1.msra.mxu0 0.0
        %516 = vmatprep.subr.mxu0 0.0
        %517 = vmatpush1.msra.mxu0 0.0
        %518 = vmatprep.subr.mxu0 0.0
        %519 = vmatpush1.msra.mxu0 0.0
        %520 = vmatprep.subr.mxu0 0.0
        %521 = vmatpush1.msra.mxu0 0.0
        %522 = vmatprep.subr.mxu0 0.0
        %523 = vmatpush1.msra.mxu0 0.0
        %524 = vmatprep.subr.mxu0 0.0
        %525 = vmatpush1.msra.mxu0 0.0
        %526 = vmatprep.subr.mxu0 0.0
        %527 = vmatpush1.msra.mxu0 0.0
        %528 = vmatprep.subr.mxu0 0.0
        %529 = vmatpush1.msra.mxu0 0.0
        %530 = vmatprep.subr.mxu0 0.0
        %531 = vmatpush1.msra.mxu0 0.0
        %532 = vmatprep.subr.mxu0 0.0
        %533 = vmatpush1.msra.mxu0 0.0
        %534 = vmatprep.subr.mxu0 0.0
        %535 = vmatpush1.msra.mxu0 0.0
        %536 = vmatprep.subr.mxu0 0.0
        %537 = vmatpush1.msra.mxu0 0.0
        %538 = vmatprep.mubr.f32.mxu0 0.0
        %539 = vmatmul.mubr.f32.gmra.mrb[0].mxu0 %v398
        %v540 = vpop.f32.mrb[0].mxu0
        %v541 = vadd.f32 %v467, %v540
        %v542 = vpop.f32.mrb[0].mxu0
        %v543 = vadd.f32 %v471, %v542
        %544 = vmatprep.mubr.f32.mxu0 0.0
        %545 = vmatmul.mubr.f32.gmra.mrb[0].mxu0 %v399
        %v546 = vpop.f32.mrb[0].mxu0
        %v547 = vadd.f32 %v467, %v546
        %v548 = vpop.f32.mrb[0].mxu0
        %v549 = vadd.f32 %v471, %v548
        %550 = vmatprep.mubr.f32.mxu0 0.0
        %551 = vmatmul.mubr.f32.gmra.mrb[0].mxu0 %v400
        %v552 = vpop.f32.mrb[0].mxu0
        %v553 = vadd.f32 %v467, %v552
        %v554 = vpop.f32.mrb[0].mxu0
        %v555 = vadd.f32 %v471, %v554
        %556 = vmatprep.mubr.f32.mxu0 0.0
        %557 = vmatmul.mubr.f32.gmra.mrb[0].mxu0 %v401
        %v558 = vpop.f32.mrb[0].mxu0
        %v559 = vadd.f32 %v467, %v558
        %v560 = vpop.f32.mrb[0].mxu0
        %v561 = vadd.f32 %v471, %v560
        %562 = vmatprep.mubr.f32.mxu0 0.0
        %563 = vmatmul.mubr.f32.gmra.mrb[0].mxu0 %v402
        %v564 = vpop.f32.mrb[0].mxu0
        %v565 = vadd.f32 %v467, %v564
        %v566 = vpop.f32.mrb[0].mxu0
        %v567 = vadd.f32 %v471, %v566
        %568 = vmatprep.mubr.f32.mxu0 0.0
        %569 = vmatmul.mubr.f32.gmra.mrb[0].mxu0 %v403
        %v570 = vpop.f32.mrb[0].mxu0
        %v571 = vadd.f32 %v467, %v570
        %v572 = vpop.f32.mrb[0].mxu0
        %v573 = vadd.f32 %v471, %v572
        %574 = vmatprep.mubr.f32.mxu0 0.0
        %575 = vmatmul.mubr.f32.gmra.mrb[0].mxu0 %v404
        %v576 = vpop.f32.mrb[0].mxu0
        %v577 = vadd.f32 %v467, %v576
        %v578 = vpop.f32.mrb[0].mxu0
        %v579 = vadd.f32 %v471, %v578
        %580 = vmatprep.mubr.f32.mxu0 0.0
        %581 = vmatmul.mubr.f32.gmra.mrb[0].mxu0 %v405
        %v582 = vpop.f32.mrb[0].mxu0
        %v583 = vadd.f32 %v467, %v582
        %v584 = vpop.f32.mrb[0].mxu0
        %v585 = vadd.f32 %v471, %v584
        %586 = vmatprep.mubr.f32.mxu0 0.0
        %587 = vmatmul.mubr.f32.gmra.mrb[0].mxu0 %v406
        %v588 = vpop.f32.mrb[0].mxu0
        %v589 = vadd.f32 %v467, %v588
        %v590 = vpop.f32.mrb[0].mxu0
        %v591 = vadd.f32 %v471, %v590
        %592 = vmatprep.mubr.f32.mxu0 0.0
        %593 = vmatmul.mubr.f32.gmra.mrb[0].mxu0 %v407
        %v594 = vpop.f32.mrb[0].mxu0
        %v595 = vadd.f32 %v467, %v594
        %v596 = vpop.f32.mrb[0].mxu0
        %v597 = vadd.f32 %v471, %v596
        %598 = vmatprep.mubr.f32.mxu0 0.0
        %599 = vmatmul.mubr.f32.gmra.mrb[0].mxu0 %v408
        %v600 = vpop.f32.mrb[0].mxu0
        %v601 = vadd.f32 %v467, %v600
        %v602 = vpop.f32.mrb[0].mxu0
        %v603 = vadd.f32 %v471, %v602
        %604 = vmatprep.mubr.f32.mxu0 0.0
        %605 = vmatmul.mubr.f32.gmra.mrb[0].mxu0 %v409
        %v606 = vpop.f32.mrb[0].mxu0
        %v607 = vadd.f32 %v467, %v606
        %v608 = vpop.f32.mrb[0].mxu0
        %v609 = vadd.f32 %v471, %v608
        %610 = vmatprep.mubr.f32.mxu0 0.0
        %611 = vmatmul.mubr.f32.gmra.mrb[0].mxu0 %v410
        %v612 = vpop.f32.mrb[0].mxu0
        %v613 = vadd.f32 %v467, %v612
        %v614 = vpop.f32.mrb[0].mxu0
        %v615 = vadd.f32 %v471, %v614
        %616 = vmatprep.mubr.f32.mxu0 0.0
        %617 = vmatmul.mubr.f32.gmra.mrb[0].mxu0 %v411
        %v618 = vpop.f32.mrb[0].mxu0
        %v619 = vadd.f32 %v467, %v618
        %v620 = vpop.f32.mrb[0].mxu0
        %v621 = vadd.f32 %v471, %v620
        %622 = vmatprep.mubr.f32.mxu0 0.0
        %623 = vmatmul.mubr.f32.gmra.mrb[0].mxu0 %v412
        %v624 = vpop.f32.mrb[0].mxu0
        %v625 = vadd.f32 %v467, %v624
        %v626 = vpop.f32.mrb[0].mxu0
        %v627 = vadd.f32 %v471, %v626
        %628 = vmatprep.mubr.f32.mxu0 0.0
        %629 = vmatmul.mubr.f32.gmra.mrb[0].mxu0 %v413
        %v630 = vpop.f32.mrb[0].mxu0
        %v631 = vadd.f32 %v467, %v630
        %v632 = vpop.f32.mrb[0].mxu0
        %v633 = vadd.f32 %v471, %v632
        %634 = vmatprep.mubr.f32.mxu0 0.0
        %635 = vmatmul.mubr.f32.gmra.mrb[0].mxu0 %v414
        %v636 = vpop.f32.mrb[0].mxu0
        %v637 = vadd.f32 %v467, %v636
        %v638 = vpop.f32.mrb[0].mxu0
        %v639 = vadd.f32 %v471, %v638
        %640 = vmatprep.mubr.f32.mxu0 0.0
        %641 = vmatmul.mubr.f32.gmra.mrb[0].mxu0 %v415
        %v642 = vpop.f32.mrb[0].mxu0
        %v643 = vadd.f32 %v467, %v642
        %v644 = vpop.f32.mrb[0].mxu0
        %v645 = vadd.f32 %v471, %v644
        %646 = vmatprep.mubr.f32.mxu0 0.0
        %647 = vmatmul.mubr.f32.gmra.mrb[0].mxu0 %v416
        %v648 = vpop.f32.mrb[0].mxu0
        %v649 = vadd.f32 %v467, %v648
        %v650 = vpop.f32.mrb[0].mxu0
        %v651 = vadd.f32 %v471, %v650
        %652 = vmatprep.mubr.f32.mxu0 0.0
        %653 = vmatmul.mubr.f32.gmra.mrb[0].mxu0 %v417
        %v654 = vpop.f32.mrb[0].mxu0
        %v655 = vadd.f32 %v467, %v654
        %v656 = vpop.f32.mrb[0].mxu0
        %v657 = vadd.f32 %v471, %v656
        %658 = vmatprep.mubr.f32.mxu0 0.0
        %659 = vmatmul.mubr.f32.gmra.mrb[0].mxu0 %v418
        %v660 = vpop.f32.mrb[0].mxu0
        %v661 = vadd.f32 %v467, %v660
        %v662 = vpop.f32.mrb[0].mxu0
        %v663 = vadd.f32 %v471, %v662
        %664 = vmatprep.mubr.f32.mxu0 0.0
        %665 = vmatmul.mubr.f32.gmra.mrb[0].mxu0 %v419
        %v666 = vpop.f32.mrb[0].mxu0
        %v667 = vadd.f32 %v467, %v666
        %v668 = vpop.f32.mrb[0].mxu0
        %v669 = vadd.f32 %v471, %v668
        %670 = vmatprep.mubr.f32.mxu0 0.0
        %671 = vmatmul.mubr.f32.gmra.mrb[0].mxu0 %v420
        %v672 = vpop.f32.mrb[0].mxu0
        %v673 = vadd.f32 %v467, %v672
        %v674 = vpop.f32.mrb[0].mxu0
        %v675 = vadd.f32 %v471, %v674
        %676 = vmatprep.mubr.f32.mxu0 0.0
        %677 = vmatmul.mubr.f32.gmra.mrb[0].mxu0 %v421
        %v678 = vpop.f32.mrb[0].mxu0
        %v679 = vadd.f32 %v467, %v678
        %v680 = vpop.f32.mrb[0].mxu0
        %v681 = vadd.f32 %v471, %v680
        %682 = vmatprep.mubr.f32.mxu0 0.0
        %683 = vmatmul.mubr.f32.gmra.mrb[0].mxu0 %v422
        %v684 = vpop.f32.mrb[0].mxu0
        %v685 = vadd.f32 %v467, %v684
        %v686 = vpop.f32.mrb[0].mxu0
        %v687 = vadd.f32 %v471, %v686
        %688 = vmatprep.mubr.f32.mxu0 0.0
        %689 = vmatmul.mubr.f32.gmra.mrb[0].mxu0 %v423
        %v690 = vpop.f32.mrb[0].mxu0
        %v691 = vadd.f32 %v467, %v690
        %v692 = vpop.f32.mrb[0].mxu0
        %v693 = vadd.f32 %v471, %v692
        %694 = vmatprep.mubr.f32.mxu0 0.0
        %695 = vmatmul.mubr.f32.gmra.mrb[0].mxu0 %v424
        %v696 = vpop.f32.mrb[0].mxu0
        %v697 = vadd.f32 %v467, %v696
        %v698 = vpop.f32.mrb[0].mxu0
        %v699 = vadd.f32 %v471, %v698
        %700 = vmatprep.mubr.f32.mxu0 0.0
        %701 = vmatmul.mubr.f32.gmra.mrb[0].mxu0 %v425
        %v702 = vpop.f32.mrb[0].mxu0
        %v703 = vadd.f32 %v467, %v702
        %v704 = vpop.f32.mrb[0].mxu0
        %v705 = vadd.f32 %v471, %v704
        %706 = vmatprep.mubr.f32.mxu0 0.0
        %707 = vmatmul.mubr.f32.gmra.mrb[0].mxu0 %v426
        %v708 = vpop.f32.mrb[0].mxu0
        %v709 = vadd.f32 %v467, %v708
        %v710 = vpop.f32.mrb[0].mxu0
        %v711 = vadd.f32 %v471, %v710
        %712 = vmatprep.mubr.f32.mxu0 0.0
        %713 = vmatmul.mubr.f32.gmra.mrb[0].mxu0 %v427
        %v714 = vpop.f32.mrb[0].mxu0
        %v715 = vadd.f32 %v467, %v714
        %v716 = vpop.f32.mrb[0].mxu0
        %v717 = vadd.f32 %v471, %v716
        %718 = vmatprep.mubr.f32.mxu0 0.0
        %719 = vmatmul.mubr.f32.gmra.mrb[0].mxu0 %v428
        %v720 = vpop.f32.mrb[0].mxu0
        %v721 = vadd.f32 %v467, %v720
        %v722 = vpop.f32.mrb[0].mxu0
        %v723 = vadd.f32 %v471, %v722
        %724 = vmatprep.mubr.f32.mxu0 0.0
        %725 = vmatmul.mubr.f32.gmra.mrb[0].mxu0 %v429
        %v726 = vpop.f32.mrb[0].mxu0
        %v727 = vadd.f32 %v467, %v726
        %v728 = vpop.f32.mrb[0].mxu0
        %v729 = vadd.f32 %v471, %v728
        %730 = vdwg.mxu0
        %v731 = vpack.c.bf16 %v549, %v543
        %v732 = vpack.c.bf16 %v561, %v555
        %v733 = vpack.c.bf16 %v573, %v567
        %v734 = vpack.c.bf16 %v585, %v579
        %v735 = vpack.c.bf16 %v597, %v591
        %v736 = vpack.c.bf16 %v609, %v603
        %v737 = vpack.c.bf16 %v621, %v615
        %v738 = vpack.c.bf16 %v633, %v627
        %v739 = vpack.c.bf16 %v645, %v639
        %v740 = vpack.c.bf16 %v657, %v651
        %v741 = vpack.c.bf16 %v669, %v663
        %v742 = vpack.c.bf16 %v681, %v675
        %v743 = vpack.c.bf16 %v693, %v687
        %v744 = vpack.c.bf16 %v705, %v699
        %v745 = vpack.c.bf16 %v717, %v711
        %v746 = vpack.c.bf16 %v729, %v723
        %v763 = vunpack.c.l.b16 %v731
        %v764 = vunpack.c.h.b16 %v731
        %v765 = vunpack.c.l.b16 %v732
        %v766 = vunpack.c.h.b16 %v732
        %v767 = vunpack.c.l.b16 %v733
        %v768 = vunpack.c.h.b16 %v733
        %v769 = vunpack.c.l.b16 %v734
        %v770 = vunpack.c.h.b16 %v734
        %v771 = vunpack.c.l.b16 %v735
        %v772 = vunpack.c.h.b16 %v735
        %v773 = vunpack.c.l.b16 %v736
        %v774 = vunpack.c.h.b16 %v736
        %v775 = vunpack.c.l.b16 %v737
        %v776 = vunpack.c.h.b16 %v737
        %v777 = vunpack.c.l.b16 %v738
        %v778 = vunpack.c.h.b16 %v738
        %v779 = vunpack.c.l.b16 %v739
        %v780 = vunpack.c.h.b16 %v739
        %v781 = vunpack.c.l.b16 %v740
        %v782 = vunpack.c.h.b16 %v740
        %v783 = vunpack.c.l.b16 %v741
        %v784 = vunpack.c.h.b16 %v741
        %v785 = vunpack.c.l.b16 %v742
        %v786 = vunpack.c.h.b16 %v742
        %v787 = vunpack.c.l.b16 %v743
        %v788 = vunpack.c.h.b16 %v743
        %v789 = vunpack.c.l.b16 %v744
        %v790 = vunpack.c.h.b16 %v744
        %v791 = vunpack.c.l.b16 %v745
        %v792 = vunpack.c.h.b16 %v745
        %v793 = vunpack.c.l.b16 %v746
        %v794 = vunpack.c.h.b16 %v746
        %v795 = vpack.c.b16 %v763, %v763
        %v796 = vpack.c.b16 %v764, %v764
        %v797 = vpack.c.b16 %v765, %v765
        %v798 = vpack.c.b16 %v766, %v766
        %v799 = vpack.c.b16 %v767, %v767
        %v800 = vpack.c.b16 %v768, %v768
        %v801 = vpack.c.b16 %v769, %v769
        %v802 = vpack.c.b16 %v770, %v770
        %v803 = vpack.c.b16 %v771, %v771
        %v804 = vpack.c.b16 %v772, %v772
        %v805 = vpack.c.b16 %v773, %v773
        %v806 = vpack.c.b16 %v774, %v774
        %v807 = vpack.c.b16 %v775, %v775
        %v808 = vpack.c.b16 %v776, %v776
        %v809 = vpack.c.b16 %v777, %v777
        %v810 = vpack.c.b16 %v778, %v778
        %v811 = vpack.c.b16 %v779, %v779
        %v812 = vpack.c.b16 %v780, %v780
        %v813 = vpack.c.b16 %v781, %v781
        %v814 = vpack.c.b16 %v782, %v782
        %v815 = vpack.c.b16 %v783, %v783
        %v816 = vpack.c.b16 %v784, %v784
        %v817 = vpack.c.b16 %v785, %v785
        %v818 = vpack.c.b16 %v786, %v786
        %v819 = vpack.c.b16 %v787, %v787
        %v820 = vpack.c.b16 %v788, %v788
        %v821 = vpack.c.b16 %v789, %v789
        %v822 = vpack.c.b16 %v790, %v790
        %v823 = vpack.c.b16 %v791, %v791
        %v824 = vpack.c.b16 %v792, %v792
        %v825 = vpack.c.b16 %v793, %v793
        %v826 = vpack.c.b16 %v794, %v794
        %859 = vst [vmem:[%s362] sm:$0xf] %v795
        %860 = vst [vmem:[%s362 + $0x4] sm:$0xf] %v796
        %861 = vst [vmem:[%s362 + $0x8] sm:$0xf] %v797
        %862 = vst [vmem:[%s362 + $0xc] sm:$0xf] %v798
        %863 = vst [vmem:[%s362 + $0x10] sm:$0xf] %v799
        %864 = vst [vmem:[%s362 + $0x14] sm:$0xf] %v800
        %865 = vst [vmem:[%s362 + $0x18] sm:$0xf] %v801
        %866 = vst [vmem:[%s362 + $0x1c] sm:$0xf] %v802
        %867 = vst [vmem:[%s362 + $0x20] sm:$0xf] %v803
        %868 = vst [vmem:[%s362 + $0x24] sm:$0xf] %v804
        %869 = vst [vmem:[%s362 + $0x28] sm:$0xf] %v805
        %870 = vst [vmem:[%s362 + $0x2c] sm:$0xf] %v806
        %871 = vst [vmem:[%s362 + $0x30] sm:$0xf] %v807
        %872 = vst [vmem:[%s362 + $0x34] sm:$0xf] %v808
        %873 = vst [vmem:[%s362 + $0x38] sm:$0xf] %v809
        %874 = vst [vmem:[%s362 + $0x3c] sm:$0xf] %v810
        %875 = vst [vmem:[%s362 + $0x40] sm:$0xf] %v811
        %876 = vst [vmem:[%s362 + $0x44] sm:$0xf] %v812
        %877 = vst [vmem:[%s362 + $0x48] sm:$0xf] %v813
        %878 = vst [vmem:[%s362 + $0x4c] sm:$0xf] %v814
        %879 = vst [vmem:[%s362 + $0x50] sm:$0xf] %v815
        %880 = vst [vmem:[%s362 + $0x54] sm:$0xf] %v816
        %881 = vst [vmem:[%s362 + $0x58] sm:$0xf] %v817
        %882 = vst [vmem:[%s362 + $0x5c] sm:$0xf] %v818
        %883 = vst [vmem:[%s362 + $0x60] sm:$0xf] %v819
        %884 = vst [vmem:[%s362 + $0x64] sm:$0xf] %v820
        %885 = vst [vmem:[%s362 + $0x68] sm:$0xf] %v821
        %886 = vst [vmem:[%s362 + $0x6c] sm:$0xf] %v822
        %887 = vst [vmem:[%s362 + $0x70] sm:$0xf] %v823
        %888 = vst [vmem:[%s362 + $0x74] sm:$0xf] %v824
        %889 = vst [vmem:[%s362 + $0x78] sm:$0xf] %v825
        %890 = vst [vmem:[%s362 + $0x7c] sm:$0xf] %v826
        %v891 = vld [vmem:[#allocation2] sm:$0xff]
        %v892 = vld [vmem:[#allocation2 + $0x8] sm:$0xff]
        %v893 = vld [vmem:[#allocation2 + $0x10] sm:$0xff]
        %v894 = vld [vmem:[#allocation2 + $0x18] sm:$0xff]
        %v895 = vld [vmem:[#allocation2 + $0x20] sm:$0xff]
        %v896 = vld [vmem:[#allocation2 + $0x28] sm:$0xff]
        %v897 = vld [vmem:[#allocation2 + $0x30] sm:$0xff]
        %v898 = vld [vmem:[#allocation2 + $0x38] sm:$0xff]
        %v899 = vld [vmem:[#allocation2 + $0x40] sm:$0xff]
        %v900 = vld [vmem:[#allocation2 + $0x48] sm:$0xff]
        %v901 = vld [vmem:[#allocation2 + $0x50] sm:$0xff]
        %v902 = vld [vmem:[#allocation2 + $0x58] sm:$0xff]
        %v903 = vld [vmem:[#allocation2 + $0x60] sm:$0xff]
        %v904 = vld [vmem:[#allocation2 + $0x68] sm:$0xff]
        %v905 = vld [vmem:[#allocation2 + $0x70] sm:$0xff]
        %v906 = vld [vmem:[#allocation2 + $0x78] sm:$0xff]
        %v907 = vld [vmem:[%s323] sm:$0xff]
        %v908 = vld [vmem:[%s323 + $0x8] sm:$0xff]
        %v909 = vld [vmem:[%s323 + $0x10] sm:$0xff]
        %v910 = vld [vmem:[%s323 + $0x18] sm:$0xff]
        %v911 = vld [vmem:[%s323 + $0x20] sm:$0xff]
        %v912 = vld [vmem:[%s323 + $0x28] sm:$0xff]
        %v913 = vld [vmem:[%s323 + $0x30] sm:$0xff]
        %v914 = vld [vmem:[%s323 + $0x38] sm:$0xff]
        %v915 = vunpack.c.l.s8.bf16 %v907
        %v916 = vunpack.c.l.s8.bf16 %v908
        %v917 = vunpack.c.h.s8.bf16 %v907
        %v918 = vunpack.c.h.s8.bf16 %v908
        %v919 = vunpack.c.l.s8.bf16 %v909
        %v920 = vunpack.c.l.s8.bf16 %v910
        %v921 = vunpack.c.h.s8.bf16 %v909
        %v922 = vunpack.c.h.s8.bf16 %v910
        %v923 = vunpack.c.l.s8.bf16 %v911
        %v924 = vunpack.c.l.s8.bf16 %v912
        %v925 = vunpack.c.h.s8.bf16 %v911
        %v926 = vunpack.c.h.s8.bf16 %v912
        %v927 = vunpack.c.l.s8.bf16 %v913
        %v928 = vunpack.c.l.s8.bf16 %v914
        %v929 = vunpack.c.h.s8.bf16 %v913
        %v930 = vunpack.c.h.s8.bf16 %v914
        %v931 = vpack.c.bf16 %v547, %v541
        %v932 = vpack.c.bf16 %v559, %v553
        %v933 = vpack.c.bf16 %v571, %v565
        %v934 = vpack.c.bf16 %v583, %v577
        %v935 = vpack.c.bf16 %v595, %v589
        %v936 = vpack.c.bf16 %v607, %v601
        %v937 = vpack.c.bf16 %v619, %v613
        %v938 = vpack.c.bf16 %v631, %v625
        %v939 = vpack.c.bf16 %v643, %v637
        %v940 = vpack.c.bf16 %v655, %v649
        %v941 = vpack.c.bf16 %v667, %v661
        %v942 = vpack.c.bf16 %v679, %v673
        %v943 = vpack.c.bf16 %v691, %v685
        %v944 = vpack.c.bf16 %v703, %v697
        %v945 = vpack.c.bf16 %v715, %v709
        %v946 = vpack.c.bf16 %v727, %v721
        %947 = vmatprep.subr.bf16.mxu0 0
        %948 = vmatpush1.bf16.msra.mxu0 %v931
        %949 = vmatprep.subr.bf16.mxu0 0
        %950 = vmatpush1.bf16.msra.mxu0 %v932
        %951 = vmatprep.subr.bf16.mxu0 0
        %952 = vmatpush1.bf16.msra.mxu0 %v933
        %953 = vmatprep.subr.bf16.mxu0 0
        %954 = vmatpush1.bf16.msra.mxu0 %v934
        %955 = vmatprep.subr.bf16.mxu0 0
        %956 = vmatpush1.bf16.msra.mxu0 %v935
        %957 = vmatprep.subr.bf16.mxu0 0
        %958 = vmatpush1.bf16.msra.mxu0 %v936
        %959 = vmatprep.subr.bf16.mxu0 0
        %960 = vmatpush1.bf16.msra.mxu0 %v937
        %961 = vmatprep.subr.bf16.mxu0 0
        %962 = vmatpush1.bf16.msra.mxu0 %v938
        %963 = vmatprep.subr.bf16.mxu0 0
        %964 = vmatpush1.bf16.msra.mxu0 %v939
        %965 = vmatprep.subr.bf16.mxu0 0
        %966 = vmatpush1.bf16.msra.mxu0 %v940
        %967 = vmatprep.subr.bf16.mxu0 0
        %968 = vmatpush1.bf16.msra.mxu0 %v941
        %969 = vmatprep.subr.bf16.mxu0 0
        %970 = vmatpush1.bf16.msra.mxu0 %v942
        %971 = vmatprep.subr.bf16.mxu0 0
        %972 = vmatpush1.bf16.msra.mxu0 %v943
        %973 = vmatprep.subr.bf16.mxu0 0
        %974 = vmatpush1.bf16.msra.mxu0 %v944
        %975 = vmatprep.subr.bf16.mxu0 0
        %976 = vmatpush1.bf16.msra.mxu0 %v945
        %977 = vmatprep.subr.bf16.mxu0 0
        %978 = vmatpush1.bf16.msra.mxu0 %v946
        %979 = vmatprep.mubr.bf16.mxu0 %v916
        %980 = vmatmul.mubr.bf16.gmra.mrb[0].mxu0 %v915
        %v981 = vpop.f32.mrb[0].mxu0
        %v982 = vadd.f32 0.0, %v981
        %v983 = vpop.f32.mrb[0].mxu0
        %v984 = vpop.f32.mrb[0].mxu0
        %v985 = vadd.f32 0.0, %v984
        %v986 = vpop.f32.mrb[0].mxu0
        %987 = vmatprep.mubr.bf16.mxu0 %v918
        %988 = vmatmul.mubr.bf16.gmra.mrb[0].mxu0 %v917
        %v989 = vpop.f32.mrb[0].mxu0
        %v990 = vadd.f32 0.0, %v989
        %v991 = vpop.f32.mrb[0].mxu0
        %v992 = vpop.f32.mrb[0].mxu0
        %v993 = vadd.f32 0.0, %v992
        %v994 = vpop.f32.mrb[0].mxu0
        %995 = vmatprep.mubr.bf16.mxu0 %v920
        %996 = vmatmul.mubr.bf16.gmra.mrb[0].mxu0 %v919
        %v997 = vpop.f32.mrb[0].mxu0
        %v998 = vadd.f32 0.0, %v997
        %v999 = vpop.f32.mrb[0].mxu0
        %v1000 = vpop.f32.mrb[0].mxu0
        %v1001 = vadd.f32 0.0, %v1000
        %v1002 = vpop.f32.mrb[0].mxu0
        %1003 = vmatprep.mubr.bf16.mxu0 %v922
        %1004 = vmatmul.mubr.bf16.gmra.mrb[0].mxu0 %v921
        %v1005 = vpop.f32.mrb[0].mxu0
        %v1006 = vadd.f32 0.0, %v1005
        %v1007 = vpop.f32.mrb[0].mxu0
        %v1008 = vpop.f32.mrb[0].mxu0
        %v1009 = vadd.f32 0.0, %v1008
        %v1010 = vpop.f32.mrb[0].mxu0
        %1011 = vmatprep.mubr.bf16.mxu0 %v924
        %1012 = vmatmul.mubr.bf16.gmra.mrb[0].mxu0 %v923
        %v1013 = vpop.f32.mrb[0].mxu0
        %v1014 = vadd.f32 0.0, %v1013
        %v1015 = vpop.f32.mrb[0].mxu0
        %v1016 = vpop.f32.mrb[0].mxu0
        %v1017 = vadd.f32 0.0, %v1016
        %v1018 = vpop.f32.mrb[0].mxu0
        %1019 = vmatprep.mubr.bf16.mxu0 %v926
        %1020 = vmatmul.mubr.bf16.gmra.mrb[0].mxu0 %v925
        %v1021 = vpop.f32.mrb[0].mxu0
        %v1022 = vadd.f32 0.0, %v1021
        %v1023 = vpop.f32.mrb[0].mxu0
        %v1024 = vpop.f32.mrb[0].mxu0
        %v1025 = vadd.f32 0.0, %v1024
        %v1026 = vpop.f32.mrb[0].mxu0
        %1027 = vmatprep.mubr.bf16.mxu0 %v928
        %1028 = vmatmul.mubr.bf16.gmra.mrb[0].mxu0 %v927
        %v1029 = vpop.f32.mrb[0].mxu0
        %v1030 = vadd.f32 0.0, %v1029
        %v1031 = vpop.f32.mrb[0].mxu0
        %v1032 = vpop.f32.mrb[0].mxu0
        %v1033 = vadd.f32 0.0, %v1032
        %v1034 = vpop.f32.mrb[0].mxu0
        %1035 = vmatprep.mubr.bf16.mxu0 %v930
        %1036 = vmatmul.mubr.bf16.gmra.mrb[0].mxu0 %v929
        %v1037 = vpop.f32.mrb[0].mxu0
        %v1038 = vadd.f32 0.0, %v1037
        %v1039 = vpop.f32.mrb[0].mxu0
        %v1040 = vpop.f32.mrb[0].mxu0
        %v1041 = vadd.f32 0.0, %v1040
        %v1042 = vpop.f32.mrb[0].mxu0
        %1043 = vdwg.mxu0
        %v1044 = vadd.f32 %v891, %v982
        %v1045 = vadd.f32 %v892, %v985
        %v1046 = vadd.f32 %v893, %v990
        %v1047 = vadd.f32 %v894, %v993
        %v1048 = vadd.f32 %v895, %v998
        %v1049 = vadd.f32 %v896, %v1001
        %v1050 = vadd.f32 %v897, %v1006
        %v1051 = vadd.f32 %v898, %v1009
        %v1052 = vadd.f32 %v899, %v1014
        %v1053 = vadd.f32 %v900, %v1017
        %v1054 = vadd.f32 %v901, %v1022
        %v1055 = vadd.f32 %v902, %v1025
        %v1056 = vadd.f32 %v903, %v1030
        %v1057 = vadd.f32 %v904, %v1033
        %v1058 = vadd.f32 %v905, %v1038
        %v1059 = vadd.f32 %v906, %v1041
        %1060 = vst [vmem:[#allocation2] sm:$0xff] %v1044
        %1061 = vst [vmem:[#allocation2 + $0x8] sm:$0xff] %v1045
        %1062 = vst [vmem:[#allocation2 + $0x10] sm:$0xff] %v1046
        %1063 = vst [vmem:[#allocation2 + $0x18] sm:$0xff] %v1047
        %1064 = vst [vmem:[#allocation2 + $0x20] sm:$0xff] %v1048
        %1065 = vst [vmem:[#allocation2 + $0x28] sm:$0xff] %v1049
        %1066 = vst [vmem:[#allocation2 + $0x30] sm:$0xff] %v1050
        %1067 = vst [vmem:[#allocation2 + $0x38] sm:$0xff] %v1051
        %1068 = vst [vmem:[#allocation2 + $0x40] sm:$0xff] %v1052
        %1069 = vst [vmem:[#allocation2 + $0x48] sm:$0xff] %v1053
        %1070 = vst [vmem:[#allocation2 + $0x50] sm:$0xff] %v1054
        %1071 = vst [vmem:[#allocation2 + $0x58] sm:$0xff] %v1055
        %1072 = vst [vmem:[#allocation2 + $0x60] sm:$0xff] %v1056
        %1073 = vst [vmem:[#allocation2 + $0x68] sm:$0xff] %v1057
        %1074 = vst [vmem:[#allocation2 + $0x70] sm:$0xff] %v1058
        %1075 = vst [vmem:[#allocation2 + $0x78] sm:$0xff] %v1059
        // Predicated region
        $region61: #{tpu_custom_call.1} parent=39 // pred_check
          %p1076 = pneg %p378
        $region62: #{tpu_custom_call.1} parent=39 // pred_check_branch
          %1078 = sbr.rel (%p1076) target = $region64
        $region63: #{tpu_custom_call.1} parent=39 // pred_region
          %v1079 = vld [vmem:[#allocation2] sm:$0xff]
          %v1080 = vld [vmem:[#allocation2 + $0x8] sm:$0xff]
          %v1081 = vld [vmem:[#allocation2 + $0x10] sm:$0xff]
          %v1082 = vld [vmem:[#allocation2 + $0x18] sm:$0xff]
          %v1083 = vld [vmem:[#allocation2 + $0x20] sm:$0xff]
          %v1084 = vld [vmem:[#allocation2 + $0x28] sm:$0xff]
          %v1085 = vld [vmem:[#allocation2 + $0x30] sm:$0xff]
          %v1086 = vld [vmem:[#allocation2 + $0x38] sm:$0xff]
          %v1087 = vld [vmem:[#allocation2 + $0x40] sm:$0xff]
          %v1088 = vld [vmem:[#allocation2 + $0x48] sm:$0xff]
          %v1089 = vld [vmem:[#allocation2 + $0x50] sm:$0xff]
          %v1090 = vld [vmem:[#allocation2 + $0x58] sm:$0xff]
          %v1091 = vld [vmem:[#allocation2 + $0x60] sm:$0xff]
          %v1092 = vld [vmem:[#allocation2 + $0x68] sm:$0xff]
          %v1093 = vld [vmem:[#allocation2 + $0x70] sm:$0xff]
          %v1094 = vld [vmem:[#allocation2 + $0x78] sm:$0xff]
          %v1095 = vpack.c.bf16 %v1080, %v1079
          %v1096 = vpack.c.bf16 %v1082, %v1081
          %v1097 = vpack.c.bf16 %v1084, %v1083
          %v1098 = vpack.c.bf16 %v1086, %v1085
          %v1099 = vpack.c.bf16 %v1088, %v1087
          %v1100 = vpack.c.bf16 %v1090, %v1089
          %v1101 = vpack.c.bf16 %v1092, %v1091
          %v1102 = vpack.c.bf16 %v1094, %v1093
          %v1103 = vld [vmem:[#allocation9] sm:$0xf]
          %v1104 = vld [vmem:[#allocation9 + $0x4] sm:$0xf]
          %v1105 = vld [vmem:[#allocation9 + $0x8] sm:$0xf]
          %v1106 = vld [vmem:[#allocation9 + $0xc] sm:$0xf]
          %v1107 = vld [vmem:[#allocation9 + $0x10] sm:$0xf]
          %v1108 = vld [vmem:[#allocation9 + $0x14] sm:$0xf]
          %v1109 = vld [vmem:[#allocation9 + $0x18] sm:$0xf]
          %v1110 = vld [vmem:[#allocation9 + $0x1c] sm:$0xf]
          %v1111 = vld [vmem:[#allocation9 + $0x20] sm:$0xf]
          %v1112 = vld [vmem:[#allocation9 + $0x24] sm:$0xf]
          %v1113 = vld [vmem:[#allocation9 + $0x28] sm:$0xf]
          %v1114 = vld [vmem:[#allocation9 + $0x2c] sm:$0xf]
          %v1115 = vld [vmem:[#allocation9 + $0x30] sm:$0xf]
          %v1116 = vld [vmem:[#allocation9 + $0x34] sm:$0xf]
          %v1117 = vld [vmem:[#allocation9 + $0x38] sm:$0xf]
          %v1118 = vld [vmem:[#allocation9 + $0x3c] sm:$0xf]
          %v1135 = vunpack.c.l.b16 %v1103
          %v1136 = vunpack.c.l.b16 %v1104
          %v1137 = vunpack.c.l.b16 %v1105
          %v1138 = vunpack.c.l.b16 %v1106
          %v1139 = vunpack.c.l.b16 %v1107
          %v1140 = vunpack.c.l.b16 %v1108
          %v1141 = vunpack.c.l.b16 %v1109
          %v1142 = vunpack.c.l.b16 %v1110
          %v1143 = vunpack.c.l.b16 %v1111
          %v1144 = vunpack.c.l.b16 %v1112
          %v1145 = vunpack.c.l.b16 %v1113
          %v1146 = vunpack.c.l.b16 %v1114
          %v1147 = vunpack.c.l.b16 %v1115
          %v1148 = vunpack.c.l.b16 %v1116
          %v1149 = vunpack.c.l.b16 %v1117
          %v1150 = vunpack.c.l.b16 %v1118
          %v1151 = vpack.c.b16 %v1136, %v1135
          %v1152 = vpack.c.b16 %v1138, %v1137
          %v1153 = vpack.c.b16 %v1140, %v1139
          %v1154 = vpack.c.b16 %v1142, %v1141
          %v1155 = vpack.c.b16 %v1144, %v1143
          %v1156 = vpack.c.b16 %v1146, %v1145
          %v1157 = vpack.c.b16 %v1148, %v1147
          %v1158 = vpack.c.b16 %v1150, %v1149
          %1167 = vmatprep.subr.bf16.mxu0 0
          %1168 = vmatpush1.bf16.msra.mxu0 %v1151
          %1169 = vmatprep.subr.bf16.mxu0 0
          %1170 = vmatpush1.bf16.msra.mxu0 %v1152
          %1171 = vmatprep.subr.bf16.mxu0 0
          %1172 = vmatpush1.bf16.msra.mxu0 %v1153
          %1173 = vmatprep.subr.bf16.mxu0 0
          %1174 = vmatpush1.bf16.msra.mxu0 %v1154
          %1175 = vmatprep.subr.bf16.mxu0 0
          %1176 = vmatpush1.bf16.msra.mxu0 %v1155
          %1177 = vmatprep.subr.bf16.mxu0 0
          %1178 = vmatpush1.bf16.msra.mxu0 %v1156
          %1179 = vmatprep.subr.bf16.mxu0 0
          %1180 = vmatpush1.bf16.msra.mxu0 %v1157
          %1181 = vmatprep.subr.bf16.mxu0 0
          %1182 = vmatpush1.bf16.msra.mxu0 %v1158
          %1183 = vmatprep.subr.bf16.mxu0 0
          %1184 = vmatpush1.bf16.msra.mxu0 0
          %1185 = vmatprep.subr.bf16.mxu0 0
          %1186 = vmatpush1.bf16.msra.mxu0 0
          %1187 = vmatprep.subr.bf16.mxu0 0
          %1188 = vmatpush1.bf16.msra.mxu0 0
          %1189 = vmatprep.subr.bf16.mxu0 0
          %1190 = vmatpush1.bf16.msra.mxu0 0
          %1191 = vmatprep.subr.bf16.mxu0 0
          %1192 = vmatpush1.bf16.msra.mxu0 0
          %1193 = vmatprep.subr.bf16.mxu0 0
          %1194 = vmatpush1.bf16.msra.mxu0 0
          %1195 = vmatprep.subr.bf16.mxu0 0
          %1196 = vmatpush1.bf16.msra.mxu0 0
          %1197 = vmatprep.subr.bf16.mxu0 0
          %1198 = vmatpush1.bf16.msra.mxu0 0
          %1199 = vmatprep.mubr.bf16.mxu0 0
          %1200 = vmatmul.mubr.bf16.gmra.mrb[0].mxu0 %v1095
          %v1201 = vpop.f32.mrb[0].mxu0
          %v1202 = vadd.f32 0.0, %v1201
          %v1203 = vpop.f32.mrb[0].mxu0
          %v1204 = vpop.f32.mrb[0].mxu0
          %v1205 = vadd.f32 0.0, %v1204
          %v1206 = vpop.f32.mrb[0].mxu0
          %1207 = vmatprep.mubr.bf16.mxu0 0
          %1208 = vmatmul.mubr.bf16.gmra.mrb[0].mxu0 %v1096
          %v1209 = vpop.f32.mrb[0].mxu0
          %v1210 = vadd.f32 0.0, %v1209
          %v1211 = vpop.f32.mrb[0].mxu0
          %v1212 = vpop.f32.mrb[0].mxu0
          %v1213 = vadd.f32 0.0, %v1212
          %v1214 = vpop.f32.mrb[0].mxu0
          %1215 = vmatprep.mubr.bf16.mxu0 0
          %1216 = vmatmul.mubr.bf16.gmra.mrb[0].mxu0 %v1097
          %v1217 = vpop.f32.mrb[0].mxu0
          %v1218 = vadd.f32 0.0, %v1217
          %v1219 = vpop.f32.mrb[0].mxu0
          %v1220 = vpop.f32.mrb[0].mxu0
          %v1221 = vadd.f32 0.0, %v1220
          %v1222 = vpop.f32.mrb[0].mxu0
          %1223 = vmatprep.mubr.bf16.mxu0 0
          %1224 = vmatmul.mubr.bf16.gmra.mrb[0].mxu0 %v1098
          %v1225 = vpop.f32.mrb[0].mxu0
          %v1226 = vadd.f32 0.0, %v1225
          %v1227 = vpop.f32.mrb[0].mxu0
          %v1228 = vpop.f32.mrb[0].mxu0
          %v1229 = vadd.f32 0.0, %v1228
          %v1230 = vpop.f32.mrb[0].mxu0
          %1231 = vmatprep.mubr.bf16.mxu0 0
          %1232 = vmatmul.mubr.bf16.gmra.mrb[0].mxu0 %v1099
          %v1233 = vpop.f32.mrb[0].mxu0
          %v1234 = vadd.f32 0.0, %v1233
          %v1235 = vpop.f32.mrb[0].mxu0
          %v1236 = vpop.f32.mrb[0].mxu0
          %v1237 = vadd.f32 0.0, %v1236
          %v1238 = vpop.f32.mrb[0].mxu0
          %1239 = vmatprep.mubr.bf16.mxu0 0
          %1240 = vmatmul.mubr.bf16.gmra.mrb[0].mxu0 %v1100
          %v1241 = vpop.f32.mrb[0].mxu0
          %v1242 = vadd.f32 0.0, %v1241
          %v1243 = vpop.f32.mrb[0].mxu0
          %v1244 = vpop.f32.mrb[0].mxu0
          %v1245 = vadd.f32 0.0, %v1244
          %v1246 = vpop.f32.mrb[0].mxu0
          %1247 = vmatprep.mubr.bf16.mxu0 0
          %1248 = vmatmul.mubr.bf16.gmra.mrb[0].mxu0 %v1101
          %v1249 = vpop.f32.mrb[0].mxu0
          %v1250 = vadd.f32 0.0, %v1249
          %v1251 = vpop.f32.mrb[0].mxu0
          %v1252 = vpop.f32.mrb[0].mxu0
          %v1253 = vadd.f32 0.0, %v1252
          %v1254 = vpop.f32.mrb[0].mxu0
          %1255 = vmatprep.mubr.bf16.mxu0 0
          %1256 = vmatmul.mubr.bf16.gmra.mrb[0].mxu0 %v1102
          %v1257 = vpop.f32.mrb[0].mxu0
          %v1258 = vadd.f32 0.0, %v1257
          %v1259 = vpop.f32.mrb[0].mxu0
          %v1260 = vpop.f32.mrb[0].mxu0
          %v1261 = vadd.f32 0.0, %v1260
          %v1262 = vpop.f32.mrb[0].mxu0
          %1263 = vdwg.mxu0
          %v1264 = vpack.c.bf16 %v1205, %v1202
          %v1265 = vpack.c.bf16 %v1213, %v1210
          %v1266 = vpack.c.bf16 %v1221, %v1218
          %v1267 = vpack.c.bf16 %v1229, %v1226
          %v1268 = vpack.c.bf16 %v1237, %v1234
          %v1269 = vpack.c.bf16 %v1245, %v1242
          %v1270 = vpack.c.bf16 %v1253, %v1250
          %v1271 = vpack.c.bf16 %v1261, %v1258
          %v1280 = vunpack.c.l.b16 %v1264
          %v1281 = vunpack.c.h.b16 %v1264
          %v1282 = vunpack.c.l.b16 %v1265
          %v1283 = vunpack.c.h.b16 %v1265
          %v1284 = vunpack.c.l.b16 %v1266
          %v1285 = vunpack.c.h.b16 %v1266
          %v1286 = vunpack.c.l.b16 %v1267
          %v1287 = vunpack.c.h.b16 %v1267
          %v1288 = vunpack.c.l.b16 %v1268
          %v1289 = vunpack.c.h.b16 %v1268
          %v1290 = vunpack.c.l.b16 %v1269
          %v1291 = vunpack.c.h.b16 %v1269
          %v1292 = vunpack.c.l.b16 %v1270
          %v1293 = vunpack.c.h.b16 %v1270
          %v1294 = vunpack.c.l.b16 %v1271
          %v1295 = vunpack.c.h.b16 %v1271
          %v1296 = vpack.c.b16 %v1280, %v1280
          %v1297 = vpack.c.b16 %v1281, %v1281
          %v1298 = vpack.c.b16 %v1282, %v1282
          %v1299 = vpack.c.b16 %v1283, %v1283
          %v1300 = vpack.c.b16 %v1284, %v1284
          %v1301 = vpack.c.b16 %v1285, %v1285
          %v1302 = vpack.c.b16 %v1286, %v1286
          %v1303 = vpack.c.b16 %v1287, %v1287
          %v1304 = vpack.c.b16 %v1288, %v1288
          %v1305 = vpack.c.b16 %v1289, %v1289
          %v1306 = vpack.c.b16 %v1290, %v1290
          %v1307 = vpack.c.b16 %v1291, %v1291
          %v1308 = vpack.c.b16 %v1292, %v1292
          %v1309 = vpack.c.b16 %v1293, %v1293
          %v1310 = vpack.c.b16 %v1294, %v1294
          %v1311 = vpack.c.b16 %v1295, %v1295
          %1328 = vst [vmem:[%s369] sm:$0xf] %v1296
          %1329 = vst [vmem:[%s369 + $0x4] sm:$0xf] %v1297
          %1330 = vst [vmem:[%s369 + $0x8] sm:$0xf] %v1298
          %1331 = vst [vmem:[%s369 + $0xc] sm:$0xf] %v1299
          %1332 = vst [vmem:[%s369 + $0x10] sm:$0xf] %v1300
          %1333 = vst [vmem:[%s369 + $0x14] sm:$0xf] %v1301
          %1334 = vst [vmem:[%s369 + $0x18] sm:$0xf] %v1302
          %1335 = vst [vmem:[%s369 + $0x1c] sm:$0xf] %v1303
          %1336 = vst [vmem:[%s369 + $0x20] sm:$0xf] %v1304
          %1337 = vst [vmem:[%s369 + $0x24] sm:$0xf] %v1305
          %1338 = vst [vmem:[%s369 + $0x28] sm:$0xf] %v1306
          %1339 = vst [vmem:[%s369 + $0x2c] sm:$0xf] %v1307
          %1340 = vst [vmem:[%s369 + $0x30] sm:$0xf] %v1308
          %1341 = vst [vmem:[%s369 + $0x34] sm:$0xf] %v1309
          %1342 = vst [vmem:[%s369 + $0x38] sm:$0xf] %v1310
          %1343 = vst [vmem:[%s369 + $0x3c] sm:$0xf] %v1311
        $region64: #{tpu_custom_call.1} parent=39 // pred_fallthru
          _
        %s1344 = sand.u32 %s172, 1
        %s1345 = scalar_lea.sflag [#allocation5], %s1344
        %s1346 = sand.u32 %s172, 1
        %s1347 = smul.addr %s1346, 128
        %s1348 = scalar_lea.vmem [#allocation11], %s1347
        %s1349 = sand.u32 %s198, 1
        %s1350 = scalar_lea.sflag [#allocation13], %s1349
        %s1351 = sand.u32 %s198, 1
        %s1352 = smul.addr %s1351, 64
        %s1353 = scalar_lea.vmem [#allocation12], %s1352
        // Predicated region
        $region65: #{tpu_custom_call.1} parent=39 // pred_check
          %p1354 = pneg %p182
        $region66: #{tpu_custom_call.1} parent=39 // pred_check_branch
          %1356 = sbr.rel (%p1354) target = $region68
        $region67: #{tpu_custom_call.1} parent=39 // pred_region
          %s1357 = sadd.s32 %s35, %s36
          %s1358 = smul.u32 32, %s1357
          %s1360 = ssub.s32 2048, 2048
          %1361 = vsyncadd %s1345, %s1360
          %s1362 = smul.addr %s1358, 64
          %s1363 = scalar_lea.hbm %s5, %s1362
          %s1364 = sshll.u32 %s1348, 4
          %s1365 = int_to_ptr.vmem [resolvable:$true] %s1364
          %1370 = dma.vmem_to_hbm [thread:$0]  %s1365, 2048, %s1363, %s1345, 64, 64, 4
        $region68: #{tpu_custom_call.1} parent=39 // pred_fallthru
          _
        // Predicated region
        $region69: #{tpu_custom_call.1} parent=39 // pred_check
          %p1371 = pneg %p208
        $region70: #{tpu_custom_call.1} parent=39 // pred_check_branch
          %1373 = sbr.rel (%p1371) target = $region72
        $region71: #{tpu_custom_call.1} parent=39 // pred_region
          %s1374 = smul.u32 16, %s35
          %s1376 = ssub.s32 1024, 1024
          %1377 = vsyncadd %s1350, %s1376
          %s1378 = smul.addr %s1374, 64
          %s1379 = scalar_lea.hbm %s6, %s1378
          %s1380 = sshll.u32 %s1353, 4
          %s1381 = int_to_ptr.vmem [resolvable:$true] %s1380
          %1386 = dma.vmem_to_hbm [thread:$0]  %s1381, 1024, %s1379, %s1350, 64, 64, 4
        $region72: #{tpu_custom_call.1} parent=39 // pred_fallthru
          _
      $region40: #{tpu_custom_call.1} parent=5 // pred_fallthru
        _
      %p1387 = scmp.le.s32.totalorder 2, %s26
      // Predicated region
      $region73: #{tpu_custom_call.1} parent=5 // pred_check
        %p1388 = pneg %p1387
      $region74: #{tpu_custom_call.1} parent=5 // pred_check_branch
        %1390 = sbr.rel (%p1388) target = $region76
      $region75: #{tpu_custom_call.1} parent=5 // pred_region
        %s1391 = ssub.s32 %s26, 2
        // Predicated region
        $region77: #{tpu_custom_call.1} parent=75 // pred_check
          %p1392 = pneg %p188
        $region78: #{tpu_custom_call.1} parent=75 // pred_check_branch
          %1394 = sbr.rel (%p1392) target = $region80
        $region79: #{tpu_custom_call.1} parent=75 // pred_region
          %s1395 = sand.u32 %s173, 1
          %s1396 = scalar_lea.sflag [#allocation5], %s1395
          %s1397 = sand.u32 %s173, 1
          %s1398 = smul.addr %s1397, 128
          %s1399 = scalar_lea.vmem [#allocation11], %s1398
          %1400 = dma.done %s1396, 2048
        $region80: #{tpu_custom_call.1} parent=75 // pred_fallthru
          _
        // Predicated region
        $region81: #{tpu_custom_call.1} parent=75 // pred_check
          %p1401 = pneg %p214
        $region82: #{tpu_custom_call.1} parent=75 // pred_check_branch
          %1403 = sbr.rel (%p1401) target = $region84
        $region83: #{tpu_custom_call.1} parent=75 // pred_region
          %s1404 = sand.u32 %s199, 1
          %s1405 = scalar_lea.sflag [#allocation13], %s1404
          %s1406 = sand.u32 %s199, 1
          %s1407 = smul.addr %s1406, 64
          %s1408 = scalar_lea.vmem [#allocation12], %s1407
          %1409 = dma.done %s1405, 1024
        $region84: #{tpu_custom_call.1} parent=75 // pred_fallthru
          _
      $region76: #{tpu_custom_call.1} parent=5 // pred_fallthru
        _
    $region6: #{tpu_custom_call.1} parent=1 // loop_footer
      %s30 = sadd.s32 1, %s26
    $region7: #{tpu_custom_call.1} parent=1 // loop_footer_branch
      %25 = sbr.rel target = $region3
    $region8: #{tpu_custom_call.1} parent=1 // loop_exit
      _
    %1410 = vsyncpa [#allocation4], 1
    %s1411 = scalar_lea.sflag [#allocation4], 1
    %1412 = vsyncpa %s1411, 1
    %1413 = vsyncpa [#allocation7], 1
    %s1414 = scalar_lea.sflag [#allocation7], 1
    %1415 = vsyncpa %s1414, 1
    %1416 = vsyncpa [#allocation10], 1
    %1417 = vsyncpa [#allocation5], 1
    %s1418 = scalar_lea.sflag [#allocation5], 1
    %1419 = vsyncpa %s1418, 1
    %1420 = vsyncpa [#allocation13], 1
    %s1421 = scalar_lea.sflag [#allocation13], 1
    %1422 = vsyncpa %s1421, 1

</llo_original>
